<compile_context>
chip_gen: v7x
topology: tpu7x:2x2x1
jax: 0.10.0
libtpu: 0.0.40
codegen_flags: <defaults>
</compile_context>

<pallas_src>
import functools

import jax
import jax.numpy as jnp
import numpy as np
from jax import lax
from jax.experimental import pallas as pl
from jax.experimental.pallas import tpu as pltpu

_EPS = 1e-5


def _round_up(x, m):
    return ((x + m - 1) // m) * m


def _pick_row_tile(H, W, Ci, Co):
    """Largest divisor of H whose per-step working set stays ~<= 16 MiB."""
    per_row = W * (2 * (2 * Ci + 4 * Co)   # double-buffered in (bf16) / out (f32) blocks
                   + 2 * 2 * Ci            # bf16 halo scratch + one tap copy
                   + 4 * 4 * Co)           # f32 accumulator + matmul temps
    budget = 16 * 1024 * 1024
    target = int(max(8, min(H, budget // max(per_row, 1))))
    for th in range(target, 0, -1):
        if H % th == 0:
            return th
    return H


def conv3x3_kernel(xm_ref, xu_ref, xd_ref, w_ref, scale_ref, shift_ref,
                   y_ref, stats_ref, xpad_ref, *, apply_relu):
    """One (image, row-tile) step.

    xm_ref    : (1, TH, W, Ci) bf16  rows of this tile
    xu_ref    : (1, 1, W, Ci)  bf16  row above the tile (clamped at the edge)
    xd_ref    : (1, 1, W, Ci)  bf16  row below the tile (clamped at the edge)
    w_ref     : (9, Ci, Co)    bf16  conv weights, tap-major (dy, dx)
    scale_ref : (1, Ci) f32          per-channel input affine (BN1 fold; ones/zeros for layer 1)
    shift_ref : (1, Ci) f32
    y_ref     : (1, TH, W, Co)       conv output (bias NOT added - cancels under BN)
    stats_ref : (1, 1, 2, Co)  f32   per-(image, row-tile) [sum, sum_sq] partials
    xpad_ref  : (TH+2, W+2, Ci) bf16 VMEM halo scratch
    """
    _, TH, W, Ci = xm_ref.shape
    Co = y_ref.shape[-1]
    Hp, Wp = TH + 2, W + 2
    r = pl.program_id(1)
    last = pl.num_programs(1) - 1

    scale = scale_ref[...].reshape(1, 1, Ci).astype(jnp.float32)
    shift = shift_ref[...].reshape(1, 1, Ci).astype(jnp.float32)

    def aff(v):
        # f32 elementwise math (v5e VPU has no bf16 path); bf16 only at the MXU boundary.
        v = v.astype(jnp.float32) * scale + shift
        if apply_relu:
            v = jnp.maximum(v, 0.0)
        return v.astype(jnp.bfloat16)

    # Left / right zero halo columns (corners included).
    zcol = jnp.zeros((Hp, 1, Ci), jnp.bfloat16)
    xpad_ref[:, 0:1, :] = zcol
    xpad_ref[:, Wp - 1:Wp, :] = zcol

    # Interior rows of this tile (BN1+ReLU fused here for layer 2).
    xpad_ref[1:TH + 1, 1:W + 1, :] = aff(xm_ref[0])

    # Top / bottom halo rows: neighbor data, or zeros at the image edge.
    top = aff(xu_ref[0])                                        # (1, W, Ci)
    xpad_ref[0:1, 1:W + 1, :] = jnp.where(r == 0, jnp.zeros_like(top), top)
    bot = aff(xd_ref[0])
    xpad_ref[Hp - 1:Hp, 1:W + 1, :] = jnp.where(r == last, jnp.zeros_like(bot), bot)

    # Accumulating tap matmuls (f32 accumulation), no giant im2col patch.
    acc = jnp.zeros((TH * W, Co), jnp.float32)
    if Ci % 128 == 0:
        # Group the 3 dx taps per dy: K = 3*Ci >= 384 fills MXU depth on v6e/v7x.
        for dy in range(3):
            patch = jnp.concatenate(
                [xpad_ref[dy:dy + TH, dx:dx + W, :].reshape(TH * W, Ci)
                 for dx in range(3)], axis=1)                    # (TH*W, 3*Ci)
            wk = w_ref[3 * dy:3 * dy + 3].reshape(3 * Ci, Co)
            acc += jnp.dot(patch, wk, preferred_element_type=jnp.float32)
    else:
        # Tiny Cin (layer 1): one tap per dot, K = Ci.
        for dy in range(3):
            for dx in range(3):
                tap = xpad_ref[dy:dy + TH, dx:dx + W, :].reshape(TH * W, Ci)
                acc += jnp.dot(tap, w_ref[3 * dy + dx],
                               preferred_element_type=jnp.float32)

    # Per-(image, row-tile) BN partials (reduced across the batch in the wrapper).
    stats_ref[0, 0, 0:1, :] = jnp.sum(acc, axis=0, keepdims=True)
    stats_ref[0, 0, 1:2, :] = jnp.sum(acc * acc, axis=0, keepdims=True)

    y_ref[...] = acc.reshape(1, TH, W, Co).astype(y_ref.dtype)


def affine_relu_kernel(y_ref, scale_ref, shift_ref, o_ref):
    """o = max(y * scale + shift, 0): fused BatchNorm + ReLU."""
    C = y_ref.shape[-1]
    s = scale_ref[...].reshape(1, 1, 1, C).astype(jnp.float32)
    t = shift_ref[...].reshape(1, 1, 1, C).astype(jnp.float32)
    o_ref[...] = jnp.maximum(y_ref[...].astype(jnp.float32) * s + t,
                             0.0).astype(o_ref.dtype)


def _conv_layer(x, w, in_scale, in_shift, *, apply_relu, out_dtype, row_tile=None):
    """Row-tiled 3x3 conv; returns (conv output, per-(image,row-tile) BN partials)."""
    N, H, W, Ci = x.shape
    Co = w.shape[-1]
    TH = row_tile if (row_tile is not None and H % row_tile == 0) \
        else _pick_row_tile(H, W, Ci, Co)
    nrow = H // TH

    out_b = 2 if out_dtype == jnp.bfloat16 else 4
    est = (2 * (TH * W * Ci * 2 + 2 * W * Ci * 2 + TH * W * Co * out_b + 2 * Co * 4)
           + 2 * 9 * Ci * Co * 2
           + (TH + 2) * (W + 2) * Ci * 2
           + 6 * TH * W * max(Ci, Co) * 4)
    vmem_bytes = int(min(max(2 * est, 32 * 1024 * 1024), 56 * 1024 * 1024))

    kernel = functools.partial(conv3x3_kernel, apply_relu=apply_relu)
    return pl.pallas_call(
        kernel,
        out_shape=(jax.ShapeDtypeStruct((N, H, W, Co), out_dtype),
                   jax.ShapeDtypeStruct((N, nrow, 2, Co), jnp.float32)),
        grid_spec=pltpu.PrefetchScalarGridSpec(
            num_scalar_prefetch=0,
            grid=(N, nrow),
            in_specs=[
                pl.BlockSpec((1, TH, W, Ci), lambda n, r: (n, r, 0, 0)),
                # 1-row halo operands with edge-clamped row indices (edge rows
                # are overwritten with zeros inside the kernel).
                pl.BlockSpec((1, 1, W, Ci),
                             lambda n, r: (n, jnp.maximum(r * TH - 1, 0), 0, 0)),
                pl.BlockSpec((1, 1, W, Ci),
                             lambda n, r: (n, jnp.minimum(r * TH + TH, H - 1), 0, 0)),
                pl.BlockSpec((9, Ci, Co), lambda n, r: (0, 0, 0)),
                pl.BlockSpec((1, Ci), lambda n, r: (0, 0)),
                pl.BlockSpec((1, Ci), lambda n, r: (0, 0)),
            ],
            out_specs=[
                pl.BlockSpec((1, TH, W, Co), lambda n, r: (n, r, 0, 0)),
                pl.BlockSpec((1, 1, 2, Co), lambda n, r: (n, r, 0, 0)),
            ],
            scratch_shapes=[pltpu.VMEM((TH + 2, W + 2, Ci), jnp.bfloat16)],
        ),
        compiler_params=pltpu.CompilerParams(
            dimension_semantics=("parallel", "parallel"),
            vmem_limit_bytes=vmem_bytes),
    )(x, x, x, w, in_scale, in_shift)


def _affine_relu(y, scale, shift, *, row_tile=None):
    """Row-tiled fused per-channel affine + ReLU (lane-dense output)."""
    N, H, W, C = y.shape
    TH = row_tile if (row_tile is not None and H % row_tile == 0) \
        else _pick_row_tile(H, W, C, C)
    nrow = H // TH
    est = 4 * (2 * TH * W * C * 4) + 4 * C * 4
    vmem_bytes = int(min(max(2 * est, 32 * 1024 * 1024), 56 * 1024 * 1024))
    return pl.pallas_call(
        affine_relu_kernel,
        out_shape=jax.ShapeDtypeStruct((N, H, W, C), jnp.float32),
        grid_spec=pltpu.PrefetchScalarGridSpec(
            num_scalar_prefetch=0,
            grid=(N, nrow),
            in_specs=[
                pl.BlockSpec((1, TH, W, C), lambda n, r: (n, r, 0, 0)),
                pl.BlockSpec((1, C), lambda n, r: (0, 0)),
                pl.BlockSpec((1, C), lambda n, r: (0, 0)),
            ],
            out_specs=pl.BlockSpec((1, TH, W, C), lambda n, r: (n, r, 0, 0)),
        ),
        compiler_params=pltpu.CompilerParams(
            dimension_semantics=("parallel", "parallel"),
            vmem_limit_bytes=vmem_bytes),
    )(y, scale, shift)


def _bn_affine(stats, gamma, beta, *, count, eps=_EPS):
    """Fold training-mode BatchNorm into one per-channel affine.

    The conv bias cancels exactly under batch-stat BN:
      BN(conv + b) = (conv + b - (mean(conv) + b)) * inv_std = (conv - mean) * inv_std
    so it is not needed for the forward activation (only the unimplemented
    running-stat buffers would see it).
    """
    s = jnp.sum(stats[:, :, 0, :], axis=(0, 1))        # (C,)
    ss = jnp.sum(stats[:, :, 1, :], axis=(0, 1))       # (C,)
    m = s / count
    # TODO(synk): E[x^2]-E[x]^2 in f32 can lose precision at very large
    # count/activation magnitude; switch to per-tile centering if needed.
    var = jnp.maximum(ss / count - m * m, 0.0)          # biased batch variance
    scale = gamma * lax.rsqrt(var + eps)                # (1, C)
    shift = beta - m * scale                            # (1, C)
    return scale, shift


@functools.partial(jax.jit, static_argnames=("row_tile",))
def double_conv(x_nchw, w1, b1, g1, be1, w2, b2, g2, be2, *, row_tile=None):
    """Forward of DoubleConv: (Conv3x3 -> BN(train) -> ReLU) x 2, NCHW API."""
    del b1, b2  # conv biases cancel exactly under training-mode batch norm
    N, Cin, H, W = x_nchw.shape
    Cout = w1.shape[-1]
    Cop = _round_up(Cout, 128)          # lane-dense out-channel padding
    count = N * H * W

    # NCHW -> NHWC.  Layer-1 input channels stay unpadded in HBM (tiny Cin);
    # bf16 matches the precision the MXU operand uses anyway.
    x = jnp.transpose(x_nchw, (0, 2, 3, 1)).astype(jnp.bfloat16)

    def prep_w(w, cip, cop):
        ci, co = w.shape[2], w.shape[3]
        w = jnp.pad(w, ((0, 0), (0, 0), (0, cip - ci), (0, cop - co)))
        return w.reshape(9, cip, cop).astype(jnp.bfloat16)   # tap-major (dy, dx)

    def prep_c(v, cop):
        return jnp.pad(v, (0, cop - v.shape[0])).reshape(1, cop).astype(jnp.float32)

    w1p = prep_w(w1, Cin, Cop)
    w2p = prep_w(w2, Cop, Cop)
    g1p, be1p = prep_c(g1, Cop), prep_c(be1, Cop)
    g2p, be2p = prep_c(g2, Cop), prep_c(be2, Cop)

    # Layer 1: identity input affine; inter-layer activation stored in bf16
    # (it is only ever consumed as a bf16 MXU operand; BN1 stats are f32).
    one1 = jnp.ones((1, Cin), jnp.float32)
    zero1 = jnp.zeros((1, Cin), jnp.float32)
    y1, st1 = _conv_layer(x, w1p, one1, zero1, apply_relu=False,
                          out_dtype=jnp.bfloat16, row_tile=row_tile)
    scale1, shift1 = _bn_affine(st1, g1p, be1p, count=count)

    # Layer 2: BN1 + ReLU fused into conv2's input path.
    # TODO(synk): y2 could also be stored bf16 to halve its HBM round trip;
    # kept f32 so BN2 normalizes un-rounded values (tighter match to f32 module).
    y2, st2 = _conv_layer(y1, w2p, scale1, shift1, apply_relu=True,
                          out_dtype=jnp.float32, row_tile=row_tile)
    scale2, shift2 = _bn_affine(st2, g2p, be2p, count=count)

    # Final fused BN2 + ReLU, drop channel padding, back to NCHW.
    out = _affine_relu(y2, scale2, shift2, row_tile=row_tile)[..., :Cout]
    return jnp.transpose(out, (0, 3, 1, 2))


def ref_double_conv(x_nchw, w1, b1, g1, be1, w2, b2, g2, be2,
                    eps=_EPS, conv_dtype=jnp.float32):
    """Pure-JAX reference. conv_dtype=bfloat16 mirrors the kernel's MXU operand
    precision (f32 accumulation); conv_dtype=float32 is the full-f32 module."""
    x = jnp.transpose(x_nchw, (0, 2, 3, 1))

    def conv(h, w, b):
        y = lax.conv_general_dilated(
            h.astype(conv_dtype), w.astype(conv_dtype),
            window_strides=(1, 1), padding="SAME",
            dimension_numbers=("NHWC", "HWIO", "NHWC"),
            preferred_element_type=jnp.float32)
        return y + b

    def bn_relu(h, g, be):
        m = jnp.mean(h, axis=(0, 1, 2), keepdims=True)
        v = jnp.var(h, axis=(0, 1, 2), keepdims=True)
        return jnp.maximum((h - m) * lax.rsqrt(v + eps) * g + be, 0.0)

    h = bn_relu(conv(x, w1, b1), g1, be1)
    h = bn_relu(conv(h, w2, b2), g2, be2)
    return jnp.transpose(h, (0, 3, 1, 2))


if __name__ == "__main__":
    # Small deterministic setup: batch=2, in_channels=4, out_channels=8, 16x16.
    N, Cin, Cout, H, W = 2, 4, 8, 16, 16
    keys = jax.random.split(jax.random.PRNGKey(0), 9)

    x = jax.random.normal(keys[0], (N, Cin, H, W), jnp.float32)

    # Conv weights in HWIO (h, w, in, out); biases / BN affine per out-channel.
    w1 = 0.2 * jax.random.normal(keys[1], (3, 3, Cin, Cout), jnp.float32)
    b1 = 0.1 * jax.random.normal(keys[2], (Cout,), jnp.float32)
    g1 = 1.0 + 0.1 * jax.random.normal(keys[3], (Cout,), jnp.float32)
    be1 = 0.1 * jax.random.normal(keys[4], (Cout,), jnp.float32)

    w2 = 0.2 * jax.random.normal(keys[5], (3, 3, Cout, Cout), jnp.float32)
    b2 = 0.1 * jax.random.normal(keys[6], (Cout,), jnp.float32)
    g2 = 1.0 + 0.1 * jax.random.normal(keys[7], (Cout,), jnp.float32)
    be2 = 0.1 * jax.random.normal(keys[8], (Cout,), jnp.float32)

    args = (x, w1, b1, g1, be1, w2, b2, g2, be2)

    # row_tile=4 forces 4 row tiles per image so the halo/neighbor-row path is
    # exercised; the auto-picked tile uses exactly the same kernel code.
    out = jax.block_until_ready(double_conv(*args, row_tile=4))
    out_np = np.asarray(out)

    # Structural check vs a reference using the kernel's bf16 MXU operand
    # precision (extra slack for the bf16 inter-layer activation).
    ref_bf16 = np.asarray(ref_double_conv(*args, conv_dtype=jnp.bfloat16))
    if not np.allclose(out_np, ref_bf16, atol=2e-2, rtol=2e-2):
        err = float(np.max(np.abs(out_np - ref_bf16)))
        raise AssertionError(
            f"Pallas DoubleConv does not match bf16-matmul reference (max err {err})")

    # Sanity check vs full-f32 module semantics (bf16 rounding slack).
    ref_f32 = np.asarray(ref_double_conv(*args, conv_dtype=jnp.float32))
    if not np.allclose(out_np, ref_f32, atol=1e-1, rtol=1e-1):
        err = float(np.max(np.abs(out_np - ref_f32)))
        raise AssertionError(
            f"Pallas DoubleConv deviates too far from f32 reference (max err {err})")

    print("KERNEL_OK")
</pallas_src>

<mosaic_0001>
module attributes {stable_mosaic.version = 11 : i64} {
  func.func @conv3x3_kernel(%arg0: i32, %arg1: i32, %arg2: memref<1x4x16x4xbf16, #tpu.memory_space<vmem>>, %arg3: memref<1x1x16x4xbf16, #tpu.memory_space<vmem>>, %arg4: memref<1x1x16x4xbf16, #tpu.memory_space<vmem>>, %arg5: memref<9x4x128xbf16, #tpu.memory_space<vmem>>, %arg6: memref<1x4xf32, #tpu.memory_space<vmem>>, %arg7: memref<1x4xf32, #tpu.memory_space<vmem>>, %arg8: memref<1x4x16x128xbf16, #tpu.memory_space<vmem>>, %arg9: memref<1x1x2x128xf32, #tpu.memory_space<vmem>>, %arg10: memref<6x18x4xbf16, #tpu.memory_space<vmem>>) attributes {dimension_semantics = [#tpu.dimension_semantics<parallel>, #tpu.dimension_semantics<parallel>], iteration_bounds = array<i64: 2, 4>, scalar_prefetch = 0 : i64, scratch_operands = 1 : i64, tpu.core_type = #tpu.core_type<tc>, window_params = [{transform_indices = @transform_0, window_bounds = array<i64: 1, 4, 16, 4>}, {transform_indices = @transform_1, window_bounds = array<i64: 1, 1, 16, 4>}, {transform_indices = @transform_2, window_bounds = array<i64: 1, 1, 16, 4>}, {pipeline_mode = #tpu.pipeline_mode<synchronous>, transform_indices = @transform_3, window_bounds = array<i64: 9, 4, 128>}, {pipeline_mode = #tpu.pipeline_mode<synchronous>, transform_indices = @transform_4, window_bounds = array<i64: 1, 4>}, {pipeline_mode = #tpu.pipeline_mode<synchronous>, transform_indices = @transform_5, window_bounds = array<i64: 1, 4>}, {transform_indices = @transform_6, window_bounds = array<i64: 1, 4, 16, 128>}, {transform_indices = @transform_7, window_bounds = array<i64: 1, 1, 2, 128>}]} {
    %c0 = arith.constant 0 : index
    %c0_0 = arith.constant 0 : index
    %0 = vector.load %arg6[%c0, %c0_0] : memref<1x4xf32, #tpu.memory_space<vmem>>, vector<1x4xf32>
    %1 = vector.shape_cast %0 : vector<1x4xf32> to vector<1x1x4xf32>
    %c0_1 = arith.constant 0 : index
    %c0_2 = arith.constant 0 : index
    %2 = vector.load %arg7[%c0_1, %c0_2] : memref<1x4xf32, #tpu.memory_space<vmem>>, vector<1x4xf32>
    %3 = vector.shape_cast %2 : vector<1x4xf32> to vector<1x1x4xf32>
    %cst = arith.constant 0.000000e+00 : bf16
    %4 = vector.broadcast %cst : bf16 to vector<6x1x4xbf16>
    %c0_3 = arith.constant 0 : index
    %c0_4 = arith.constant 0 : index
    %c0_5 = arith.constant 0 : index
    %5 = vector.load %arg10[%c0_3, %c0_4, %c0_5] : memref<6x18x4xbf16, #tpu.memory_space<vmem>>, vector<6x1x4xbf16>
    tpu.vector_store %arg10[%c0_3, %c0_4, %c0_5], %4 {strides = array<i32>} : memref<6x18x4xbf16, #tpu.memory_space<vmem>>, vector<6x1x4xbf16>,
    %c0_6 = arith.constant 0 : index
    %c17 = arith.constant 17 : index
    %c0_7 = arith.constant 0 : index
    %6 = vector.load %arg10[%c0_6, %c17, %c0_7] : memref<6x18x4xbf16, #tpu.memory_space<vmem>>, vector<6x1x4xbf16>
    tpu.vector_store %arg10[%c0_6, %c17, %c0_7], %4 {strides = array<i32>} : memref<6x18x4xbf16, #tpu.memory_space<vmem>>, vector<6x1x4xbf16>,
    %c0_8 = arith.constant 0 : index
    %c0_9 = arith.constant 0 : index
    %c0_10 = arith.constant 0 : index
    %c0_11 = arith.constant 0 : index
    %7 = vector.load %arg2[%c0_8, %c0_9, %c0_10, %c0_11] : memref<1x4x16x4xbf16, #tpu.memory_space<vmem>>, vector<1x4x16x4xbf16>
    %8 = vector.shape_cast %7 : vector<1x4x16x4xbf16> to vector<4x16x4xbf16>
    %9 = arith.extf %8 : vector<4x16x4xbf16> to vector<4x16x4xf32>
    %10 = vector.broadcast %1 : vector<1x1x4xf32> to vector<4x16x4xf32>
    %11 = arith.mulf %9, %10 : vector<4x16x4xf32>
    %12 = vector.broadcast %3 : vector<1x1x4xf32> to vector<4x16x4xf32>
    %13 = arith.addf %11, %12 : vector<4x16x4xf32>
    %14 = arith.truncf %13 : vector<4x16x4xf32> to vector<4x16x4xbf16>
    %c1 = arith.constant 1 : index
    %c1_12 = arith.constant 1 : index
    %c0_13 = arith.constant 0 : index
    %15 = vector.load %arg10[%c1, %c1_12, %c0_13] : memref<6x18x4xbf16, #tpu.memory_space<vmem>>, vector<4x16x4xbf16>
    tpu.vector_store %arg10[%c1, %c1_12, %c0_13], %14 {strides = array<i32>} : memref<6x18x4xbf16, #tpu.memory_space<vmem>>, vector<4x16x4xbf16>,
    %c0_14 = arith.constant 0 : index
    %c0_15 = arith.constant 0 : index
    %c0_16 = arith.constant 0 : index
    %c0_17 = arith.constant 0 : index
    %16 = vector.load %arg3[%c0_14, %c0_15, %c0_16, %c0_17] : memref<1x1x16x4xbf16, #tpu.memory_space<vmem>>, vector<1x1x16x4xbf16>
    %17 = vector.shape_cast %16 : vector<1x1x16x4xbf16> to vector<1x16x4xbf16>
    %18 = arith.extf %17 : vector<1x16x4xbf16> to vector<1x16x4xf32>
    %19 = vector.broadcast %1 : vector<1x1x4xf32> to vector<1x16x4xf32>
    %20 = arith.mulf %18, %19 : vector<1x16x4xf32>
    %21 = vector.broadcast %3 : vector<1x1x4xf32> to vector<1x16x4xf32>
    %22 = arith.addf %20, %21 : vector<1x16x4xf32>
    %23 = arith.truncf %22 : vector<1x16x4xf32> to vector<1x16x4xbf16>
    %c0_i32 = arith.constant 0 : i32
    %24 = arith.cmpi eq, %arg1, %c0_i32 : i32
    %cst_18 = arith.constant 0.000000e+00 : bf16
    %25 = vector.broadcast %cst_18 : bf16 to vector<1x16x4xbf16>
    %26 = arith.select %24, %25, %23 : vector<1x16x4xbf16>
    %c0_19 = arith.constant 0 : index
    %c1_20 = arith.constant 1 : index
    %c0_21 = arith.constant 0 : index
    %27 = vector.load %arg10[%c0_19, %c1_20, %c0_21] : memref<6x18x4xbf16, #tpu.memory_space<vmem>>, vector<1x16x4xbf16>
    tpu.vector_store %arg10[%c0_19, %c1_20, %c0_21], %26 {strides = array<i32>} : memref<6x18x4xbf16, #tpu.memory_space<vmem>>, vector<1x16x4xbf16>,
    %c0_22 = arith.constant 0 : index
    %c0_23 = arith.constant 0 : index
    %c0_24 = arith.constant 0 : index
    %c0_25 = arith.constant 0 : index
    %28 = vector.load %arg4[%c0_22, %c0_23, %c0_24, %c0_25] : memref<1x1x16x4xbf16, #tpu.memory_space<vmem>>, vector<1x1x16x4xbf16>
    %29 = vector.shape_cast %28 : vector<1x1x16x4xbf16> to vector<1x16x4xbf16>
    %30 = arith.extf %29 : vector<1x16x4xbf16> to vector<1x16x4xf32>
    %31 = vector.broadcast %1 : vector<1x1x4xf32> to vector<1x16x4xf32>
    %32 = arith.mulf %30, %31 : vector<1x16x4xf32>
    %33 = vector.broadcast %3 : vector<1x1x4xf32> to vector<1x16x4xf32>
    %34 = arith.addf %32, %33 : vector<1x16x4xf32>
    %35 = arith.truncf %34 : vector<1x16x4xf32> to vector<1x16x4xbf16>
    %c3_i32 = arith.constant 3 : i32
    %36 = arith.cmpi eq, %arg1, %c3_i32 : i32
    %cst_26 = arith.constant 0.000000e+00 : bf16
    %37 = vector.broadcast %cst_26 : bf16 to vector<1x16x4xbf16>
    %38 = arith.select %36, %37, %35 : vector<1x16x4xbf16>
    %c5 = arith.constant 5 : index
    %c1_27 = arith.constant 1 : index
    %c0_28 = arith.constant 0 : index
    %39 = vector.load %arg10[%c5, %c1_27, %c0_28] : memref<6x18x4xbf16, #tpu.memory_space<vmem>>, vector<1x16x4xbf16>
    tpu.vector_store %arg10[%c5, %c1_27, %c0_28], %38 {strides = array<i32>} : memref<6x18x4xbf16, #tpu.memory_space<vmem>>, vector<1x16x4xbf16>,
    %cst_29 = arith.constant 0.000000e+00 : f32
    %40 = vector.broadcast %cst_29 : f32 to vector<64x128xf32>
    %c0_30 = arith.constant 0 : index
    %c0_31 = arith.constant 0 : index
    %c0_32 = arith.constant 0 : index
    %41 = vector.load %arg10[%c0_30, %c0_31, %c0_32] : memref<6x18x4xbf16, #tpu.memory_space<vmem>>, vector<4x16x4xbf16>
    %42 = vector.shape_cast %41 : vector<4x16x4xbf16> to vector<64x4xbf16>
    %c0_33 = arith.constant 0 : index
    %c0_34 = arith.constant 0 : index
    %c0_35 = arith.constant 0 : index
    %43 = vector.load %arg5[%c0_33, %c0_34, %c0_35] : memref<9x4x128xbf16, #tpu.memory_space<vmem>>, vector<1x4x128xbf16>
    %44 = vector.shape_cast %43 : vector<1x4x128xbf16> to vector<4x128xbf16>
    %cst_36 = arith.constant dense<0.000000e+00> : vector<64x128xf32>
    %45 = tpu.matmul %42, %44, %cst_36 {dimension_numbers = #tpu.dot_dimension_numbers<[1], [0], [0], [1], [0, 0, 1, 1], [], []>} : vector<64x4xbf16>, vector<4x128xbf16>, vector<64x128xf32> -> vector<64x128xf32>
    %46 = arith.addf %40, %45 : vector<64x128xf32>
    %c0_37 = arith.constant 0 : index
    %c1_38 = arith.constant 1 : index
    %c0_39 = arith.constant 0 : index
    %47 = vector.load %arg10[%c0_37, %c1_38, %c0_39] : memref<6x18x4xbf16, #tpu.memory_space<vmem>>, vector<4x16x4xbf16>
    %48 = vector.shape_cast %47 : vector<4x16x4xbf16> to vector<64x4xbf16>
    %c1_40 = arith.constant 1 : index
    %c0_41 = arith.constant 0 : index
    %c0_42 = arith.constant 0 : index
    %49 = vector.load %arg5[%c1_40, %c0_41, %c0_42] : memref<9x4x128xbf16, #tpu.memory_space<vmem>>, vector<1x4x128xbf16>
    %50 = vector.shape_cast %49 : vector<1x4x128xbf16> to vector<4x128xbf16>
    %cst_43 = arith.constant dense<0.000000e+00> : vector<64x128xf32>
    %51 = tpu.matmul %48, %50, %cst_43 {dimension_numbers = #tpu.dot_dimension_numbers<[1], [0], [0], [1], [0, 0, 1, 1], [], []>} : vector<64x4xbf16>, vector<4x128xbf16>, vector<64x128xf32> -> vector<64x128xf32>
    %52 = arith.addf %46, %51 : vector<64x128xf32>
    %c0_44 = arith.constant 0 : index
    %c2 = arith.constant 2 : index
    %c0_45 = arith.constant 0 : index
    %53 = vector.load %arg10[%c0_44, %c2, %c0_45] : memref<6x18x4xbf16, #tpu.memory_space<vmem>>, vector<4x16x4xbf16>
    %54 = vector.shape_cast %53 : vector<4x16x4xbf16> to vector<64x4xbf16>
    %c2_46 = arith.constant 2 : index
    %c0_47 = arith.constant 0 : index
    %c0_48 = arith.constant 0 : index
    %55 = vector.load %arg5[%c2_46, %c0_47, %c0_48] : memref<9x4x128xbf16, #tpu.memory_space<vmem>>, vector<1x4x128xbf16>
    %56 = vector.shape_cast %55 : vector<1x4x128xbf16> to vector<4x128xbf16>
    %cst_49 = arith.constant dense<0.000000e+00> : vector<64x128xf32>
    %57 = tpu.matmul %54, %56, %cst_49 {dimension_numbers = #tpu.dot_dimension_numbers<[1], [0], [0], [1], [0, 0, 1, 1], [], []>} : vector<64x4xbf16>, vector<4x128xbf16>, vector<64x128xf32> -> vector<64x128xf32>
    %58 = arith.addf %52, %57 : vector<64x128xf32>
    %c1_50 = arith.constant 1 : index
    %c0_51 = arith.constant 0 : index
    %c0_52 = arith.constant 0 : index
    %59 = vector.load %arg10[%c1_50, %c0_51, %c0_52] : memref<6x18x4xbf16, #tpu.memory_space<vmem>>, vector<4x16x4xbf16>
    %60 = vector.shape_cast %59 : vector<4x16x4xbf16> to vector<64x4xbf16>
    %c3 = arith.constant 3 : index
    %c0_53 = arith.constant 0 : index
    %c0_54 = arith.constant 0 : index
    %61 = vector.load %arg5[%c3, %c0_53, %c0_54] : memref<9x4x128xbf16, #tpu.memory_space<vmem>>, vector<1x4x128xbf16>
    %62 = vector.shape_cast %61 : vector<1x4x128xbf16> to vector<4x128xbf16>
    %cst_55 = arith.constant dense<0.000000e+00> : vector<64x128xf32>
    %63 = tpu.matmul %60, %62, %cst_55 {dimension_numbers = #tpu.dot_dimension_numbers<[1], [0], [0], [1], [0, 0, 1, 1], [], []>} : vector<64x4xbf16>, vector<4x128xbf16>, vector<64x128xf32> -> vector<64x128xf32>
    %64 = arith.addf %58, %63 : vector<64x128xf32>
    %c1_56 = arith.constant 1 : index
    %c1_57 = arith.constant 1 : index
    %c0_58 = arith.constant 0 : index
    %65 = vector.load %arg10[%c1_56, %c1_57, %c0_58] : memref<6x18x4xbf16, #tpu.memory_space<vmem>>, vector<4x16x4xbf16>
    %66 = vector.shape_cast %65 : vector<4x16x4xbf16> to vector<64x4xbf16>
    %c4 = arith.constant 4 : index
    %c0_59 = arith.constant 0 : index
    %c0_60 = arith.constant 0 : index
    %67 = vector.load %arg5[%c4, %c0_59, %c0_60] : memref<9x4x128xbf16, #tpu.memory_space<vmem>>, vector<1x4x128xbf16>
    %68 = vector.shape_cast %67 : vector<1x4x128xbf16> to vector<4x128xbf16>
    %cst_61 = arith.constant dense<0.000000e+00> : vector<64x128xf32>
    %69 = tpu.matmul %66, %68, %cst_61 {dimension_numbers = #tpu.dot_dimension_numbers<[1], [0], [0], [1], [0, 0, 1, 1], [], []>} : vector<64x4xbf16>, vector<4x128xbf16>, vector<64x128xf32> -> vector<64x128xf32>
    %70 = arith.addf %64, %69 : vector<64x128xf32>
    %c1_62 = arith.constant 1 : index
    %c2_63 = arith.constant 2 : index
    %c0_64 = arith.constant 0 : index
    %71 = vector.load %arg10[%c1_62, %c2_63, %c0_64] : memref<6x18x4xbf16, #tpu.memory_space<vmem>>, vector<4x16x4xbf16>
    %72 = vector.shape_cast %71 : vector<4x16x4xbf16> to vector<64x4xbf16>
    %c5_65 = arith.constant 5 : index
    %c0_66 = arith.constant 0 : index
    %c0_67 = arith.constant 0 : index
    %73 = vector.load %arg5[%c5_65, %c0_66, %c0_67] : memref<9x4x128xbf16, #tpu.memory_space<vmem>>, vector<1x4x128xbf16>
    %74 = vector.shape_cast %73 : vector<1x4x128xbf16> to vector<4x128xbf16>
    %cst_68 = arith.constant dense<0.000000e+00> : vector<64x128xf32>
    %75 = tpu.matmul %72, %74, %cst_68 {dimension_numbers = #tpu.dot_dimension_numbers<[1], [0], [0], [1], [0, 0, 1, 1], [], []>} : vector<64x4xbf16>, vector<4x128xbf16>, vector<64x128xf32> -> vector<64x128xf32>
    %76 = arith.addf %70, %75 : vector<64x128xf32>
    %c2_69 = arith.constant 2 : index
    %c0_70 = arith.constant 0 : index
    %c0_71 = arith.constant 0 : index
    %77 = vector.load %arg10[%c2_69, %c0_70, %c0_71] : memref<6x18x4xbf16, #tpu.memory_space<vmem>>, vector<4x16x4xbf16>
    %78 = vector.shape_cast %77 : vector<4x16x4xbf16> to vector<64x4xbf16>
    %c6 = arith.constant 6 : index
    %c0_72 = arith.constant 0 : index
    %c0_73 = arith.constant 0 : index
    %79 = vector.load %arg5[%c6, %c0_72, %c0_73] : memref<9x4x128xbf16, #tpu.memory_space<vmem>>, vector<1x4x128xbf16>
    %80 = vector.shape_cast %79 : vector<1x4x128xbf16> to vector<4x128xbf16>
    %cst_74 = arith.constant dense<0.000000e+00> : vector<64x128xf32>
    %81 = tpu.matmul %78, %80, %cst_74 {dimension_numbers = #tpu.dot_dimension_numbers<[1], [0], [0], [1], [0, 0, 1, 1], [], []>} : vector<64x4xbf16>, vector<4x128xbf16>, vector<64x128xf32> -> vector<64x128xf32>
    %82 = arith.addf %76, %81 : vector<64x128xf32>
    %c2_75 = arith.constant 2 : index
    %c1_76 = arith.constant 1 : index
    %c0_77 = arith.constant 0 : index
    %83 = vector.load %arg10[%c2_75, %c1_76, %c0_77] : memref<6x18x4xbf16, #tpu.memory_space<vmem>>, vector<4x16x4xbf16>
    %84 = vector.shape_cast %83 : vector<4x16x4xbf16> to vector<64x4xbf16>
    %c7 = arith.constant 7 : index
    %c0_78 = arith.constant 0 : index
    %c0_79 = arith.constant 0 : index
    %85 = vector.load %arg5[%c7, %c0_78, %c0_79] : memref<9x4x128xbf16, #tpu.memory_space<vmem>>, vector<1x4x128xbf16>
    %86 = vector.shape_cast %85 : vector<1x4x128xbf16> to vector<4x128xbf16>
    %cst_80 = arith.constant dense<0.000000e+00> : vector<64x128xf32>
    %87 = tpu.matmul %84, %86, %cst_80 {dimension_numbers = #tpu.dot_dimension_numbers<[1], [0], [0], [1], [0, 0, 1, 1], [], []>} : vector<64x4xbf16>, vector<4x128xbf16>, vector<64x128xf32> -> vector<64x128xf32>
    %88 = arith.addf %82, %87 : vector<64x128xf32>
    %c2_81 = arith.constant 2 : index
    %c2_82 = arith.constant 2 : index
    %c0_83 = arith.constant 0 : index
    %89 = vector.load %arg10[%c2_81, %c2_82, %c0_83] : memref<6x18x4xbf16, #tpu.memory_space<vmem>>, vector<4x16x4xbf16>
    %90 = vector.shape_cast %89 : vector<4x16x4xbf16> to vector<64x4xbf16>
    %c8 = arith.constant 8 : index
    %c0_84 = arith.constant 0 : index
    %c0_85 = arith.constant 0 : index
    %91 = vector.load %arg5[%c8, %c0_84, %c0_85] : memref<9x4x128xbf16, #tpu.memory_space<vmem>>, vector<1x4x128xbf16>
    %92 = vector.shape_cast %91 : vector<1x4x128xbf16> to vector<4x128xbf16>
    %cst_86 = arith.constant dense<0.000000e+00> : vector<64x128xf32>
    %93 = tpu.matmul %90, %92, %cst_86 {dimension_numbers = #tpu.dot_dimension_numbers<[1], [0], [0], [1], [0, 0, 1, 1], [], []>} : vector<64x4xbf16>, vector<4x128xbf16>, vector<64x128xf32> -> vector<64x128xf32>
    %94 = arith.addf %88, %93 : vector<64x128xf32>
    %cst_87 = arith.constant dense<0.000000e+00> : vector<128xf32>
    %95 = vector.multi_reduction <add>, %94, %cst_87 [0] : vector<64x128xf32> to vector<128xf32>
    %96 = vector.shape_cast %95 : vector<128xf32> to vector<1x128xf32>
    %c0_88 = arith.constant 0 : index
    %c0_89 = arith.constant 0 : index
    %c0_90 = arith.constant 0 : index
    %c0_91 = arith.constant 0 : index
    %97 = vector.load %arg9[%c0_88, %c0_89, %c0_90, %c0_91] : memref<1x1x2x128xf32, #tpu.memory_space<vmem>>, vector<1x1x1x128xf32>
    %98 = vector.shape_cast %97 : vector<1x1x1x128xf32> to vector<1x128xf32>
    %99 = vector.shape_cast %96 : vector<1x128xf32> to vector<1x1x1x128xf32>
    tpu.vector_store %arg9[%c0_88, %c0_89, %c0_90, %c0_91], %99 {strides = array<i32>} : memref<1x1x2x128xf32, #tpu.memory_space<vmem>>, vector<1x1x1x128xf32>,
    %100 = arith.mulf %94, %94 : vector<64x128xf32>
    %cst_92 = arith.constant dense<0.000000e+00> : vector<128xf32>
    %101 = vector.multi_reduction <add>, %100, %cst_92 [0] : vector<64x128xf32> to vector<128xf32>
    %102 = vector.shape_cast %101 : vector<128xf32> to vector<1x128xf32>
    %c0_93 = arith.constant 0 : index
    %c0_94 = arith.constant 0 : index
    %c1_95 = arith.constant 1 : index
    %c0_96 = arith.constant 0 : index
    %103 = vector.load %arg9[%c0_93, %c0_94, %c1_95, %c0_96] : memref<1x1x2x128xf32, #tpu.memory_space<vmem>>, vector<1x1x1x128xf32>
    %104 = vector.shape_cast %103 : vector<1x1x1x128xf32> to vector<1x128xf32>
    %105 = vector.shape_cast %102 : vector<1x128xf32> to vector<1x1x1x128xf32>
    tpu.vector_store %arg9[%c0_93, %c0_94, %c1_95, %c0_96], %105 {strides = array<i32>} : memref<1x1x2x128xf32, #tpu.memory_space<vmem>>, vector<1x1x1x128xf32>,
    %106 = vector.shape_cast %94 : vector<64x128xf32> to vector<1x4x16x128xf32>
    %107 = arith.truncf %106 : vector<1x4x16x128xf32> to vector<1x4x16x128xbf16>
    %c0_97 = arith.constant 0 : index
    %c0_98 = arith.constant 0 : index
    %c0_99 = arith.constant 0 : index
    %c0_100 = arith.constant 0 : index
    %108 = vector.load %arg8[%c0_97, %c0_98, %c0_99, %c0_100] : memref<1x4x16x128xbf16, #tpu.memory_space<vmem>>, vector<1x4x16x128xbf16>
    tpu.vector_store %arg8[%c0_97, %c0_98, %c0_99, %c0_100], %107 {strides = array<i32>} : memref<1x4x16x128xbf16, #tpu.memory_space<vmem>>, vector<1x4x16x128xbf16>,
    return
  }
  func.func @transform_0(%arg0: i32, %arg1: i32) -> (i32, i32, i32, i32) {
    %c0_i32 = arith.constant 0 : i32
    %c0_i32_0 = arith.constant 0 : i32
    %c0_i32_1 = arith.constant 0 : i32
    return %arg0, %arg1, %c0_i32, %c0_i32_0 : i32, i32, i32, i32
  }
  func.func @transform_1(%arg0: i32, %arg1: i32) -> (i32, i32, i32, i32) {
    %c4_i32 = arith.constant 4 : i32
    %0 = arith.muli %arg1, %c4_i32 : i32
    %c1_i32 = arith.constant 1 : i32
    %1 = arith.subi %0, %c1_i32 : i32
    %c0_i32 = arith.constant 0 : i32
    %2 = arith.maxsi %1, %c0_i32 : i32
    %c0_i32_0 = arith.constant 0 : i32
    %c0_i32_1 = arith.constant 0 : i32
    %c0_i32_2 = arith.constant 0 : i32
    return %arg0, %2, %c0_i32_0, %c0_i32_1 : i32, i32, i32, i32
  }
  func.func @transform_2(%arg0: i32, %arg1: i32) -> (i32, i32, i32, i32) {
    %c4_i32 = arith.constant 4 : i32
    %0 = arith.muli %arg1, %c4_i32 : i32
    %c4_i32_0 = arith.constant 4 : i32
    %1 = arith.addi %0, %c4_i32_0 : i32
    %c15_i32 = arith.constant 15 : i32
    %2 = arith.minsi %1, %c15_i32 : i32
    %c0_i32 = arith.constant 0 : i32
    %c0_i32_1 = arith.constant 0 : i32
    %c0_i32_2 = arith.constant 0 : i32
    return %arg0, %2, %c0_i32, %c0_i32_1 : i32, i32, i32, i32
  }
  func.func @transform_3(%arg0: i32, %arg1: i32) -> (i32, i32, i32) {
    %c0_i32 = arith.constant 0 : i32
    %c0_i32_0 = arith.constant 0 : i32
    %c0_i32_1 = arith.constant 0 : i32
    %c0_i32_2 = arith.constant 0 : i32
    return %c0_i32, %c0_i32_0, %c0_i32_1 : i32, i32, i32
  }
  func.func @transform_4(%arg0: i32, %arg1: i32) -> (i32, i32) {
    %c0_i32 = arith.constant 0 : i32
    %c0_i32_0 = arith.constant 0 : i32
    %c0_i32_1 = arith.constant 0 : i32
    return %c0_i32, %c0_i32_0 : i32, i32
  }
  func.func @transform_5(%arg0: i32, %arg1: i32) -> (i32, i32) {
    %c0_i32 = arith.constant 0 : i32
    %c0_i32_0 = arith.constant 0 : i32
    %c0_i32_1 = arith.constant 0 : i32
    return %c0_i32, %c0_i32_0 : i32, i32
  }
  func.func @transform_6(%arg0: i32, %arg1: i32) -> (i32, i32, i32, i32) {
    %c0_i32 = arith.constant 0 : i32
    %c0_i32_0 = arith.constant 0 : i32
    %c0_i32_1 = arith.constant 0 : i32
    return %arg0, %arg1, %c0_i32, %c0_i32_0 : i32, i32, i32, i32
  }
  func.func @transform_7(%arg0: i32, %arg1: i32) -> (i32, i32, i32, i32) {
    %c0_i32 = arith.constant 0 : i32
    %c0_i32_0 = arith.constant 0 : i32
    %c0_i32_1 = arith.constant 0 : i32
    return %arg0, %arg1, %c0_i32, %c0_i32_0 : i32, i32, i32, i32
  }
}

module attributes {stable_mosaic.version = 11 : i64} {
  func.func @affine_relu_kernel(%arg0: i32, %arg1: i32, %arg2: memref<1x4x16x128xf32, #tpu.memory_space<vmem>>, %arg3: memref<1x128xf32, #tpu.memory_space<vmem>>, %arg4: memref<1x128xf32, #tpu.memory_space<vmem>>, %arg5: memref<1x4x16x128xf32, #tpu.memory_space<vmem>>) attributes {dimension_semantics = [#tpu.dimension_semantics<parallel>, #tpu.dimension_semantics<parallel>], iteration_bounds = array<i64: 2, 4>, scalar_prefetch = 0 : i64, scratch_operands = 0 : i64, tpu.core_type = #tpu.core_type<tc>, window_params = [{transform_indices = @transform_0, window_bounds = array<i64: 1, 4, 16, 128>}, {pipeline_mode = #tpu.pipeline_mode<synchronous>, transform_indices = @transform_1, window_bounds = array<i64: 1, 128>}, {pipeline_mode = #tpu.pipeline_mode<synchronous>, transform_indices = @transform_2, window_bounds = array<i64: 1, 128>}, {transform_indices = @transform_3, window_bounds = array<i64: 1, 4, 16, 128>}]} {
    %c0 = arith.constant 0 : index
    %c0_0 = arith.constant 0 : index
    %0 = vector.load %arg3[%c0, %c0_0] : memref<1x128xf32, #tpu.memory_space<vmem>>, vector<1x128xf32>
    %1 = vector.shape_cast %0 : vector<1x128xf32> to vector<1x1x1x128xf32>
    %c0_1 = arith.constant 0 : index
    %c0_2 = arith.constant 0 : index
    %2 = vector.load %arg4[%c0_1, %c0_2] : memref<1x128xf32, #tpu.memory_space<vmem>>, vector<1x128xf32>
    %3 = vector.shape_cast %2 : vector<1x128xf32> to vector<1x1x1x128xf32>
    %c0_3 = arith.constant 0 : index
    %c0_4 = arith.constant 0 : index
    %c0_5 = arith.constant 0 : index
    %c0_6 = arith.constant 0 : index
    %4 = vector.load %arg2[%c0_3, %c0_4, %c0_5, %c0_6] : memref<1x4x16x128xf32, #tpu.memory_space<vmem>>, vector<1x4x16x128xf32>
    %5 = vector.broadcast %1 : vector<1x1x1x128xf32> to vector<1x4x16x128xf32>
    %6 = arith.mulf %4, %5 : vector<1x4x16x128xf32>
    %7 = vector.broadcast %3 : vector<1x1x1x128xf32> to vector<1x4x16x128xf32>
    %8 = arith.addf %6, %7 : vector<1x4x16x128xf32>
    %cst = arith.constant 0.000000e+00 : f32
    %9 = vector.broadcast %cst : f32 to vector<1x4x16x128xf32>
    %10 = arith.maximumf %8, %9 : vector<1x4x16x128xf32>
    %c0_7 = arith.constant 0 : index
    %c0_8 = arith.constant 0 : index
    %c0_9 = arith.constant 0 : index
    %c0_10 = arith.constant 0 : index
    %11 = vector.load %arg5[%c0_7, %c0_8, %c0_9, %c0_10] : memref<1x4x16x128xf32, #tpu.memory_space<vmem>>, vector<1x4x16x128xf32>
    tpu.vector_store %arg5[%c0_7, %c0_8, %c0_9, %c0_10], %10 {strides = array<i32>} : memref<1x4x16x128xf32, #tpu.memory_space<vmem>>, vector<1x4x16x128xf32>,
    return
  }
  func.func @transform_0(%arg0: i32, %arg1: i32) -> (i32, i32, i32, i32) {
    %c0_i32 = arith.constant 0 : i32
    %c0_i32_0 = arith.constant 0 : i32
    %c0_i32_1 = arith.constant 0 : i32
    return %arg0, %arg1, %c0_i32, %c0_i32_0 : i32, i32, i32, i32
  }
  func.func @transform_1(%arg0: i32, %arg1: i32) -> (i32, i32) {
    %c0_i32 = arith.constant 0 : i32
    %c0_i32_0 = arith.constant 0 : i32
    %c0_i32_1 = arith.constant 0 : i32
    return %c0_i32, %c0_i32_0 : i32, i32
  }
  func.func @transform_2(%arg0: i32, %arg1: i32) -> (i32, i32) {
    %c0_i32 = arith.constant 0 : i32
    %c0_i32_0 = arith.constant 0 : i32
    %c0_i32_1 = arith.constant 0 : i32
    return %c0_i32, %c0_i32_0 : i32, i32
  }
  func.func @transform_3(%arg0: i32, %arg1: i32) -> (i32, i32, i32, i32) {
    %c0_i32 = arith.constant 0 : i32
    %c0_i32_0 = arith.constant 0 : i32
    %c0_i32_1 = arith.constant 0 : i32
    return %arg0, %arg1, %c0_i32, %c0_i32_0 : i32, i32, i32, i32
  }
}

module attributes {stable_mosaic.version = 11 : i64} {
  func.func @conv3x3_kernel(%arg0: i32, %arg1: i32, %arg2: memref<1x4x16x128xbf16, #tpu.memory_space<vmem>>, %arg3: memref<1x1x16x128xbf16, #tpu.memory_space<vmem>>, %arg4: memref<1x1x16x128xbf16, #tpu.memory_space<vmem>>, %arg5: memref<9x128x128xbf16, #tpu.memory_space<vmem>>, %arg6: memref<1x128xf32, #tpu.memory_space<vmem>>, %arg7: memref<1x128xf32, #tpu.memory_space<vmem>>, %arg8: memref<1x4x16x128xf32, #tpu.memory_space<vmem>>, %arg9: memref<1x1x2x128xf32, #tpu.memory_space<vmem>>, %arg10: memref<6x18x128xbf16, #tpu.memory_space<vmem>>) attributes {dimension_semantics = [#tpu.dimension_semantics<parallel>, #tpu.dimension_semantics<parallel>], iteration_bounds = array<i64: 2, 4>, scalar_prefetch = 0 : i64, scratch_operands = 1 : i64, tpu.core_type = #tpu.core_type<tc>, window_params = [{transform_indices = @transform_0, window_bounds = array<i64: 1, 4, 16, 128>}, {transform_indices = @transform_1, window_bounds = array<i64: 1, 1, 16, 128>}, {transform_indices = @transform_2, window_bounds = array<i64: 1, 1, 16, 128>}, {pipeline_mode = #tpu.pipeline_mode<synchronous>, transform_indices = @transform_3, window_bounds = array<i64: 9, 128, 128>}, {pipeline_mode = #tpu.pipeline_mode<synchronous>, transform_indices = @transform_4, window_bounds = array<i64: 1, 128>}, {pipeline_mode = #tpu.pipeline_mode<synchronous>, transform_indices = @transform_5, window_bounds = array<i64: 1, 128>}, {transform_indices = @transform_6, window_bounds = array<i64: 1, 4, 16, 128>}, {transform_indices = @transform_7, window_bounds = array<i64: 1, 1, 2, 128>}]} {
    %c0 = arith.constant 0 : index
    %c0_0 = arith.constant 0 : index
    %0 = vector.load %arg6[%c0, %c0_0] : memref<1x128xf32, #tpu.memory_space<vmem>>, vector<1x128xf32>
    %1 = vector.shape_cast %0 : vector<1x128xf32> to vector<1x1x128xf32>
    %c0_1 = arith.constant 0 : index
    %c0_2 = arith.constant 0 : index
    %2 = vector.load %arg7[%c0_1, %c0_2] : memref<1x128xf32, #tpu.memory_space<vmem>>, vector<1x128xf32>
    %3 = vector.shape_cast %2 : vector<1x128xf32> to vector<1x1x128xf32>
    %cst = arith.constant 0.000000e+00 : bf16
    %4 = vector.broadcast %cst : bf16 to vector<6x1x128xbf16>
    %c0_3 = arith.constant 0 : index
    %c0_4 = arith.constant 0 : index
    %c0_5 = arith.constant 0 : index
    %5 = vector.load %arg10[%c0_3, %c0_4, %c0_5] : memref<6x18x128xbf16, #tpu.memory_space<vmem>>, vector<6x1x128xbf16>
    tpu.vector_store %arg10[%c0_3, %c0_4, %c0_5], %4 {strides = array<i32>} : memref<6x18x128xbf16, #tpu.memory_space<vmem>>, vector<6x1x128xbf16>,
    %c0_6 = arith.constant 0 : index
    %c17 = arith.constant 17 : index
    %c0_7 = arith.constant 0 : index
    %6 = vector.load %arg10[%c0_6, %c17, %c0_7] : memref<6x18x128xbf16, #tpu.memory_space<vmem>>, vector<6x1x128xbf16>
    tpu.vector_store %arg10[%c0_6, %c17, %c0_7], %4 {strides = array<i32>} : memref<6x18x128xbf16, #tpu.memory_space<vmem>>, vector<6x1x128xbf16>,
    %c0_8 = arith.constant 0 : index
    %c0_9 = arith.constant 0 : index
    %c0_10 = arith.constant 0 : index
    %c0_11 = arith.constant 0 : index
    %7 = vector.load %arg2[%c0_8, %c0_9, %c0_10, %c0_11] : memref<1x4x16x128xbf16, #tpu.memory_space<vmem>>, vector<1x4x16x128xbf16>
    %8 = vector.shape_cast %7 : vector<1x4x16x128xbf16> to vector<4x16x128xbf16>
    %9 = arith.extf %8 : vector<4x16x128xbf16> to vector<4x16x128xf32>
    %10 = vector.broadcast %1 : vector<1x1x128xf32> to vector<4x16x128xf32>
    %11 = arith.mulf %9, %10 : vector<4x16x128xf32>
    %12 = vector.broadcast %3 : vector<1x1x128xf32> to vector<4x16x128xf32>
    %13 = arith.addf %11, %12 : vector<4x16x128xf32>
    %cst_12 = arith.constant 0.000000e+00 : f32
    %14 = vector.broadcast %cst_12 : f32 to vector<4x16x128xf32>
    %15 = arith.maximumf %13, %14 : vector<4x16x128xf32>
    %16 = arith.truncf %15 : vector<4x16x128xf32> to vector<4x16x128xbf16>
    %c1 = arith.constant 1 : index
    %c1_13 = arith.constant 1 : index
    %c0_14 = arith.constant 0 : index
    %17 = vector.load %arg10[%c1, %c1_13, %c0_14] : memref<6x18x128xbf16, #tpu.memory_space<vmem>>, vector<4x16x128xbf16>
    tpu.vector_store %arg10[%c1, %c1_13, %c0_14], %16 {strides = array<i32>} : memref<6x18x128xbf16, #tpu.memory_space<vmem>>, vector<4x16x128xbf16>,
    %c0_15 = arith.constant 0 : index
    %c0_16 = arith.constant 0 : index
    %c0_17 = arith.constant 0 : index
    %c0_18 = arith.constant 0 : index
    %18 = vector.load %arg3[%c0_15, %c0_16, %c0_17, %c0_18] : memref<1x1x16x128xbf16, #tpu.memory_space<vmem>>, vector<1x1x16x128xbf16>
    %19 = vector.shape_cast %18 : vector<1x1x16x128xbf16> to vector<1x16x128xbf16>
    %20 = arith.extf %19 : vector<1x16x128xbf16> to vector<1x16x128xf32>
    %21 = vector.broadcast %1 : vector<1x1x128xf32> to vector<1x16x128xf32>
    %22 = arith.mulf %20, %21 : vector<1x16x128xf32>
    %23 = vector.broadcast %3 : vector<1x1x128xf32> to vector<1x16x128xf32>
    %24 = arith.addf %22, %23 : vector<1x16x128xf32>
    %cst_19 = arith.constant 0.000000e+00 : f32
    %25 = vector.broadcast %cst_19 : f32 to vector<1x16x128xf32>
    %26 = arith.maximumf %24, %25 : vector<1x16x128xf32>
    %27 = arith.truncf %26 : vector<1x16x128xf32> to vector<1x16x128xbf16>
    %c0_i32 = arith.constant 0 : i32
    %28 = arith.cmpi eq, %arg1, %c0_i32 : i32
    %cst_20 = arith.constant 0.000000e+00 : bf16
    %29 = vector.broadcast %cst_20 : bf16 to vector<1x16x128xbf16>
    %30 = arith.select %28, %29, %27 : vector<1x16x128xbf16>
    %c0_21 = arith.constant 0 : index
    %c1_22 = arith.constant 1 : index
    %c0_23 = arith.constant 0 : index
    %31 = vector.load %arg10[%c0_21, %c1_22, %c0_23] : memref<6x18x128xbf16, #tpu.memory_space<vmem>>, vector<1x16x128xbf16>
    tpu.vector_store %arg10[%c0_21, %c1_22, %c0_23], %30 {strides = array<i32>} : memref<6x18x128xbf16, #tpu.memory_space<vmem>>, vector<1x16x128xbf16>,
    %c0_24 = arith.constant 0 : index
    %c0_25 = arith.constant 0 : index
    %c0_26 = arith.constant 0 : index
    %c0_27 = arith.constant 0 : index
    %32 = vector.load %arg4[%c0_24, %c0_25, %c0_26, %c0_27] : memref<1x1x16x128xbf16, #tpu.memory_space<vmem>>, vector<1x1x16x128xbf16>
    %33 = vector.shape_cast %32 : vector<1x1x16x128xbf16> to vector<1x16x128xbf16>
    %34 = arith.extf %33 : vector<1x16x128xbf16> to vector<1x16x128xf32>
    %35 = vector.broadcast %1 : vector<1x1x128xf32> to vector<1x16x128xf32>
    %36 = arith.mulf %34, %35 : vector<1x16x128xf32>
    %37 = vector.broadcast %3 : vector<1x1x128xf32> to vector<1x16x128xf32>
    %38 = arith.addf %36, %37 : vector<1x16x128xf32>
    %cst_28 = arith.constant 0.000000e+00 : f32
    %39 = vector.broadcast %cst_28 : f32 to vector<1x16x128xf32>
    %40 = arith.maximumf %38, %39 : vector<1x16x128xf32>
    %41 = arith.truncf %40 : vector<1x16x128xf32> to vector<1x16x128xbf16>
    %c3_i32 = arith.constant 3 : i32
    %42 = arith.cmpi eq, %arg1, %c3_i32 : i32
    %cst_29 = arith.constant 0.000000e+00 : bf16
    %43 = vector.broadcast %cst_29 : bf16 to vector<1x16x128xbf16>
    %44 = arith.select %42, %43, %41 : vector<1x16x128xbf16>
    %c5 = arith.constant 5 : index
    %c1_30 = arith.constant 1 : index
    %c0_31 = arith.constant 0 : index
    %45 = vector.load %arg10[%c5, %c1_30, %c0_31] : memref<6x18x128xbf16, #tpu.memory_space<vmem>>, vector<1x16x128xbf16>
    tpu.vector_store %arg10[%c5, %c1_30, %c0_31], %44 {strides = array<i32>} : memref<6x18x128xbf16, #tpu.memory_space<vmem>>, vector<1x16x128xbf16>,
    %cst_32 = arith.constant 0.000000e+00 : f32
    %46 = vector.broadcast %cst_32 : f32 to vector<64x128xf32>
    %c0_33 = arith.constant 0 : index
    %c0_34 = arith.constant 0 : index
    %c0_35 = arith.constant 0 : index
    %47 = vector.load %arg10[%c0_33, %c0_34, %c0_35] : memref<6x18x128xbf16, #tpu.memory_space<vmem>>, vector<4x16x128xbf16>
    %48 = vector.shape_cast %47 : vector<4x16x128xbf16> to vector<64x128xbf16>
    %c0_36 = arith.constant 0 : index
    %c1_37 = arith.constant 1 : index
    %c0_38 = arith.constant 0 : index
    %49 = vector.load %arg10[%c0_36, %c1_37, %c0_38] : memref<6x18x128xbf16, #tpu.memory_space<vmem>>, vector<4x16x128xbf16>
    %50 = vector.shape_cast %49 : vector<4x16x128xbf16> to vector<64x128xbf16>
    %c0_39 = arith.constant 0 : index
    %c2 = arith.constant 2 : index
    %c0_40 = arith.constant 0 : index
    %51 = vector.load %arg10[%c0_39, %c2, %c0_40] : memref<6x18x128xbf16, #tpu.memory_space<vmem>>, vector<4x16x128xbf16>
    %52 = vector.shape_cast %51 : vector<4x16x128xbf16> to vector<64x128xbf16>
    %53 = tpu.concatenate %48, %50, %52 in 1 : vector<64x128xbf16>, vector<64x128xbf16>, vector<64x128xbf16> -> vector<64x384xbf16>
    %c0_41 = arith.constant 0 : index
    %c0_42 = arith.constant 0 : index
    %c0_43 = arith.constant 0 : index
    %54 = vector.load %arg5[%c0_41, %c0_42, %c0_43] : memref<9x128x128xbf16, #tpu.memory_space<vmem>>, vector<3x128x128xbf16>
    %55 = vector.shape_cast %54 : vector<3x128x128xbf16> to vector<384x128xbf16>
    %cst_44 = arith.constant dense<0.000000e+00> : vector<64x128xf32>
    %56 = tpu.matmul %53, %55, %cst_44 {dimension_numbers = #tpu.dot_dimension_numbers<[1], [0], [0], [1], [0, 0, 1, 1], [], []>} : vector<64x384xbf16>, vector<384x128xbf16>, vector<64x128xf32> -> vector<64x128xf32>
    %57 = arith.addf %46, %56 : vector<64x128xf32>
    %c1_45 = arith.constant 1 : index
    %c0_46 = arith.constant 0 : index
    %c0_47 = arith.constant 0 : index
    %58 = vector.load %arg10[%c1_45, %c0_46, %c0_47] : memref<6x18x128xbf16, #tpu.memory_space<vmem>>, vector<4x16x128xbf16>
    %59 = vector.shape_cast %58 : vector<4x16x128xbf16> to vector<64x128xbf16>
    %c1_48 = arith.constant 1 : index
    %c1_49 = arith.constant 1 : index
    %c0_50 = arith.constant 0 : index
    %60 = vector.load %arg10[%c1_48, %c1_49, %c0_50] : memref<6x18x128xbf16, #tpu.memory_space<vmem>>, vector<4x16x128xbf16>
    %61 = vector.shape_cast %60 : vector<4x16x128xbf16> to vector<64x128xbf16>
    %c1_51 = arith.constant 1 : index
    %c2_52 = arith.constant 2 : index
    %c0_53 = arith.constant 0 : index
    %62 = vector.load %arg10[%c1_51, %c2_52, %c0_53] : memref<6x18x128xbf16, #tpu.memory_space<vmem>>, vector<4x16x128xbf16>
    %63 = vector.shape_cast %62 : vector<4x16x128xbf16> to vector<64x128xbf16>
    %64 = tpu.concatenate %59, %61, %63 in 1 : vector<64x128xbf16>, vector<64x128xbf16>, vector<64x128xbf16> -> vector<64x384xbf16>
    %c3 = arith.constant 3 : index
    %c0_54 = arith.constant 0 : index
    %c0_55 = arith.constant 0 : index
    %65 = vector.load %arg5[%c3, %c0_54, %c0_55] : memref<9x128x128xbf16, #tpu.memory_space<vmem>>, vector<3x128x128xbf16>
    %66 = vector.shape_cast %65 : vector<3x128x128xbf16> to vector<384x128xbf16>
    %cst_56 = arith.constant dense<0.000000e+00> : vector<64x128xf32>
    %67 = tpu.matmul %64, %66, %cst_56 {dimension_numbers = #tpu.dot_dimension_numbers<[1], [0], [0], [1], [0, 0, 1, 1], [], []>} : vector<64x384xbf16>, vector<384x128xbf16>, vector<64x128xf32> -> vector<64x128xf32>
    %68 = arith.addf %57, %67 : vector<64x128xf32>
    %c2_57 = arith.constant 2 : index
    %c0_58 = arith.constant 0 : index
    %c0_59 = arith.constant 0 : index
    %69 = vector.load %arg10[%c2_57, %c0_58, %c0_59] : memref<6x18x128xbf16, #tpu.memory_space<vmem>>, vector<4x16x128xbf16>
    %70 = vector.shape_cast %69 : vector<4x16x128xbf16> to vector<64x128xbf16>
    %c2_60 = arith.constant 2 : index
    %c1_61 = arith.constant 1 : index
    %c0_62 = arith.constant 0 : index
    %71 = vector.load %arg10[%c2_60, %c1_61, %c0_62] : memref<6x18x128xbf16, #tpu.memory_space<vmem>>, vector<4x16x128xbf16>
    %72 = vector.shape_cast %71 : vector<4x16x128xbf16> to vector<64x128xbf16>
    %c2_63 = arith.constant 2 : index
    %c2_64 = arith.constant 2 : index
    %c0_65 = arith.constant 0 : index
    %73 = vector.load %arg10[%c2_63, %c2_64, %c0_65] : memref<6x18x128xbf16, #tpu.memory_space<vmem>>, vector<4x16x128xbf16>
    %74 = vector.shape_cast %73 : vector<4x16x128xbf16> to vector<64x128xbf16>
    %75 = tpu.concatenate %70, %72, %74 in 1 : vector<64x128xbf16>, vector<64x128xbf16>, vector<64x128xbf16> -> vector<64x384xbf16>
    %c6 = arith.constant 6 : index
    %c0_66 = arith.constant 0 : index
    %c0_67 = arith.constant 0 : index
    %76 = vector.load %arg5[%c6, %c0_66, %c0_67] : memref<9x128x128xbf16, #tpu.memory_space<vmem>>, vector<3x128x128xbf16>
    %77 = vector.shape_cast %76 : vector<3x128x128xbf16> to vector<384x128xbf16>
    %cst_68 = arith.constant dense<0.000000e+00> : vector<64x128xf32>
    %78 = tpu.matmul %75, %77, %cst_68 {dimension_numbers = #tpu.dot_dimension_numbers<[1], [0], [0], [1], [0, 0, 1, 1], [], []>} : vector<64x384xbf16>, vector<384x128xbf16>, vector<64x128xf32> -> vector<64x128xf32>
    %79 = arith.addf %68, %78 : vector<64x128xf32>
    %cst_69 = arith.constant dense<0.000000e+00> : vector<128xf32>
    %80 = vector.multi_reduction <add>, %79, %cst_69 [0] : vector<64x128xf32> to vector<128xf32>
    %81 = vector.shape_cast %80 : vector<128xf32> to vector<1x128xf32>
    %c0_70 = arith.constant 0 : index
    %c0_71 = arith.constant 0 : index
    %c0_72 = arith.constant 0 : index
    %c0_73 = arith.constant 0 : index
    %82 = vector.load %arg9[%c0_70, %c0_71, %c0_72, %c0_73] : memref<1x1x2x128xf32, #tpu.memory_space<vmem>>, vector<1x1x1x128xf32>
    %83 = vector.shape_cast %82 : vector<1x1x1x128xf32> to vector<1x128xf32>
    %84 = vector.shape_cast %81 : vector<1x128xf32> to vector<1x1x1x128xf32>
    tpu.vector_store %arg9[%c0_70, %c0_71, %c0_72, %c0_73], %84 {strides = array<i32>} : memref<1x1x2x128xf32, #tpu.memory_space<vmem>>, vector<1x1x1x128xf32>,
    %85 = arith.mulf %79, %79 : vector<64x128xf32>
    %cst_74 = arith.constant dense<0.000000e+00> : vector<128xf32>
    %86 = vector.multi_reduction <add>, %85, %cst_74 [0] : vector<64x128xf32> to vector<128xf32>
    %87 = vector.shape_cast %86 : vector<128xf32> to vector<1x128xf32>
    %c0_75 = arith.constant 0 : index
    %c0_76 = arith.constant 0 : index
    %c1_77 = arith.constant 1 : index
    %c0_78 = arith.constant 0 : index
    %88 = vector.load %arg9[%c0_75, %c0_76, %c1_77, %c0_78] : memref<1x1x2x128xf32, #tpu.memory_space<vmem>>, vector<1x1x1x128xf32>
    %89 = vector.shape_cast %88 : vector<1x1x1x128xf32> to vector<1x128xf32>
    %90 = vector.shape_cast %87 : vector<1x128xf32> to vector<1x1x1x128xf32>
    tpu.vector_store %arg9[%c0_75, %c0_76, %c1_77, %c0_78], %90 {strides = array<i32>} : memref<1x1x2x128xf32, #tpu.memory_space<vmem>>, vector<1x1x1x128xf32>,
    %91 = vector.shape_cast %79 : vector<64x128xf32> to vector<1x4x16x128xf32>
    %c0_79 = arith.constant 0 : index
    %c0_80 = arith.constant 0 : index
    %c0_81 = arith.constant 0 : index
    %c0_82 = arith.constant 0 : index
    %92 = vector.load %arg8[%c0_79, %c0_80, %c0_81, %c0_82] : memref<1x4x16x128xf32, #tpu.memory_space<vmem>>, vector<1x4x16x128xf32>
    tpu.vector_store %arg8[%c0_79, %c0_80, %c0_81, %c0_82], %91 {strides = array<i32>} : memref<1x4x16x128xf32, #tpu.memory_space<vmem>>, vector<1x4x16x128xf32>,
    return
  }
  func.func @transform_0(%arg0: i32, %arg1: i32) -> (i32, i32, i32, i32) {
    %c0_i32 = arith.constant 0 : i32
    %c0_i32_0 = arith.constant 0 : i32
    %c0_i32_1 = arith.constant 0 : i32
    return %arg0, %arg1, %c0_i32, %c0_i32_0 : i32, i32, i32, i32
  }
  func.func @transform_1(%arg0: i32, %arg1: i32) -> (i32, i32, i32, i32) {
    %c4_i32 = arith.constant 4 : i32
    %0 = arith.muli %arg1, %c4_i32 : i32
    %c1_i32 = arith.constant 1 : i32
    %1 = arith.subi %0, %c1_i32 : i32
    %c0_i32 = arith.constant 0 : i32
    %2 = arith.maxsi %1, %c0_i32 : i32
    %c0_i32_0 = arith.constant 0 : i32
    %c0_i32_1 = arith.constant 0 : i32
    %c0_i32_2 = arith.constant 0 : i32
    return %arg0, %2, %c0_i32_0, %c0_i32_1 : i32, i32, i32, i32
  }
  func.func @transform_2(%arg0: i32, %arg1: i32) -> (i32, i32, i32, i32) {
    %c4_i32 = arith.constant 4 : i32
    %0 = arith.muli %arg1, %c4_i32 : i32
    %c4_i32_0 = arith.constant 4 : i32
    %1 = arith.addi %0, %c4_i32_0 : i32
    %c15_i32 = arith.constant 15 : i32
    %2 = arith.minsi %1, %c15_i32 : i32
    %c0_i32 = arith.constant 0 : i32
    %c0_i32_1 = arith.constant 0 : i32
    %c0_i32_2 = arith.constant 0 : i32
    return %arg0, %2, %c0_i32, %c0_i32_1 : i32, i32, i32, i32
  }
  func.func @transform_3(%arg0: i32, %arg1: i32) -> (i32, i32, i32) {
    %c0_i32 = arith.constant 0 : i32
    %c0_i32_0 = arith.constant 0 : i32
    %c0_i32_1 = arith.constant 0 : i32
    %c0_i32_2 = arith.constant 0 : i32
    return %c0_i32, %c0_i32_0, %c0_i32_1 : i32, i32, i32
  }
  func.func @transform_4(%arg0: i32, %arg1: i32) -> (i32, i32) {
    %c0_i32 = arith.constant 0 : i32
    %c0_i32_0 = arith.constant 0 : i32
    %c0_i32_1 = arith.constant 0 : i32
    return %c0_i32, %c0_i32_0 : i32, i32
  }
  func.func @transform_5(%arg0: i32, %arg1: i32) -> (i32, i32) {
    %c0_i32 = arith.constant 0 : i32
    %c0_i32_0 = arith.constant 0 : i32
    %c0_i32_1 = arith.constant 0 : i32
    return %c0_i32, %c0_i32_0 : i32, i32
  }
  func.func @transform_6(%arg0: i32, %arg1: i32) -> (i32, i32, i32, i32) {
    %c0_i32 = arith.constant 0 : i32
    %c0_i32_0 = arith.constant 0 : i32
    %c0_i32_1 = arith.constant 0 : i32
    return %arg0, %arg1, %c0_i32, %c0_i32_0 : i32, i32, i32, i32
  }
  func.func @transform_7(%arg0: i32, %arg1: i32) -> (i32, i32, i32, i32) {
    %c0_i32 = arith.constant 0 : i32
    %c0_i32_0 = arith.constant 0 : i32
    %c0_i32_1 = arith.constant 0 : i32
    return %arg0, %arg1, %c0_i32, %c0_i32_0 : i32, i32, i32, i32
  }
}

</mosaic_0001>

<llo_original>
// kernel: double_conv.5
$region0: #{double_conv.5}
  #allocation0 [shape = 'u32[]', space=smem, size = 0x4, offset = 0x4, fixed_abs, tag = 'smem constant byte address 0x4 - core index']
  #allocation1 [shape = 'u32[144,128]{1,0:T(1,128)}', space=vmem, size = 0x12000, scoped, tag = 'internal scratch']
  %s0 = inlined_call_operand.vmem [shape: f32[2,16,16,128], index: 0, kind: input, shape index: {}]
  %s1 = inlined_call_operand.vmem [shape: f32[1,128], index: 1, kind: input, shape index: {}]
  %s2 = inlined_call_operand.vmem [shape: f32[1,128], index: 2, kind: input, shape index: {}]
  %s3 = inlined_call_operand.vmem [shape: f32[2,16,16,128], index: 3, kind: output, shape index: {}]
  %s4 = sld [smem:[#allocation0]]
  $region45: #{double_conv.5} parent=0
    _
  %s6 = ssub.s32 1, %s4
  %s7 = scalar_select 0, %s6, %s4
  loop: start=0, step=1, limit=10
  $region2: #{double_conv.5} parent=0 // loop_pre_header
    _
  $region3: #{double_conv.5} parent=0 // loop_header
    %s9 = sphi 0, %s13
    %p10 = scmp.ge.s32.totalorder %s9, 10
    %s16 = sphi 0, %s28
    %s17 = sphi 0, %s24
    %s18 = sphi 0, %s16
    %s19 = sphi 0, %s17
    %s20 = sphi 0, %s18
    %s21 = sphi 0, %s19
    %s33 = sphi 0, %s35
    %s36 = sphi 0, %s33
    %s37 = sphi 0, %s36
    %s53 = sphi 0, %s37
    %s57 = sphi 0, %s57
    %s59 = sphi 0, %s57
    %s60 = sphi 0, %s59
    %s74 = sphi 0, %s60
    %s78 = sphi 0, %s78
    %s80 = sphi 0, %s78
    %s81 = sphi 0, %s80
    %s95 = sphi 0, %s81
    %s103 = sphi 0, %s105
    %s106 = sphi 0, %s103
    %s107 = sphi 0, %s106
    %s123 = sphi 0, %s107
  $region4: #{double_conv.5} parent=0 // loop_header_branch
    %12 = sbr.rel (%p10) target = $region8
  $region5: #{double_conv.5} parent=0 // loop_body
    %s14 = ssub.s32 %s9, 1
    %s15 = ssub.s32 %s9, 2
    %s22 = sadd.s32 1, %s17
    %p23 = scmp.ge.s32.totalorder %s22, 4
    %s24 = scalar_select %p23, 0, %s22
    %s25 = sadd.s32 1, %s16
    %s26 = scalar_select %p23, %s25, %s16
    %p27 = scmp.ge.s32.totalorder %s26, 2
    %s28 = scalar_select %p27, 0, %s26
    %s29 = ssub.s32 %s16, %s28
    %s30 = ssub.s32 %s17, %s24
    %s31 = sor.u32 %s29, %s30
    %p32 = scmp.eq.s32.totalorder %s31, 0
    %s34 = sadd.s32 %s33, 1
    %s35 = scalar_select %p32, %s33, %s34
    %p38 = pneg %p32
    %p39 = scmp.eq.s32.totalorder %s9, 7
    %p40 = por %p38, %p39
    %p41 = scmp.ne.s32.totalorder %s33, %s36
    %p42 = scmp.eq.s32.totalorder %s9, 0
    %p43 = por %p41, %p42
    %p44 = scmp.ne.s32.totalorder %s33, %s36
    %p45 = scmp.eq.s32.totalorder %s14, 7
    %p46 = por %p44, %p45
    %p47 = scmp.ne.s32.totalorder %s36, %s37
    %p48 = scmp.eq.s32.totalorder %s14, 0
    %p49 = por %p47, %p48
    %p50 = scmp.ne.s32.totalorder %s36, %s37
    %p51 = scmp.eq.s32.totalorder %s15, 7
    %p52 = por %p50, %p51
    %p54 = scmp.ne.s32.totalorder %s37, %s53
    %p55 = scmp.eq.s32.totalorder %s15, 0
    %p56 = por %p54, %p55
    %s58 = sadd.s32 %s57, 1
    %p61 = scmp.eq.s32.totalorder %s9, 7
    %p62 = scmp.ne.s32.totalorder %s57, %s59
    %p63 = scmp.eq.s32.totalorder %s9, 0
    %p64 = por %p62, %p63
    %p65 = scmp.ne.s32.totalorder %s57, %s59
    %p66 = scmp.eq.s32.totalorder %s14, 7
    %p67 = por %p65, %p66
    %p68 = scmp.ne.s32.totalorder %s59, %s60
    %p69 = scmp.eq.s32.totalorder %s14, 0
    %p70 = por %p68, %p69
    %p71 = scmp.ne.s32.totalorder %s59, %s60
    %p72 = scmp.eq.s32.totalorder %s15, 7
    %p73 = por %p71, %p72
    %p75 = scmp.ne.s32.totalorder %s60, %s74
    %p76 = scmp.eq.s32.totalorder %s15, 0
    %p77 = por %p75, %p76
    %s79 = sadd.s32 %s78, 1
    %p82 = scmp.eq.s32.totalorder %s9, 7
    %p83 = scmp.ne.s32.totalorder %s78, %s80
    %p84 = scmp.eq.s32.totalorder %s9, 0
    %p85 = por %p83, %p84
    %p86 = scmp.ne.s32.totalorder %s78, %s80
    %p87 = scmp.eq.s32.totalorder %s14, 7
    %p88 = por %p86, %p87
    %p89 = scmp.ne.s32.totalorder %s80, %s81
    %p90 = scmp.eq.s32.totalorder %s14, 0
    %p91 = por %p89, %p90
    %p92 = scmp.ne.s32.totalorder %s80, %s81
    %p93 = scmp.eq.s32.totalorder %s15, 7
    %p94 = por %p92, %p93
    %p96 = scmp.ne.s32.totalorder %s81, %s95
    %p97 = scmp.eq.s32.totalorder %s15, 0
    %p98 = por %p96, %p97
    %s99 = ssub.s32 %s16, %s28
    %s100 = ssub.s32 %s17, %s24
    %s101 = sor.u32 %s99, %s100
    %p102 = scmp.eq.s32.totalorder %s101, 0
    %s104 = sadd.s32 %s103, 1
    %s105 = scalar_select %p102, %s103, %s104
    %p108 = pneg %p102
    %p109 = scmp.eq.s32.totalorder %s9, 7
    %p110 = por %p108, %p109
    %p111 = scmp.ne.s32.totalorder %s103, %s106
    %p112 = scmp.eq.s32.totalorder %s9, 0
    %p113 = por %p111, %p112
    %p114 = scmp.ne.s32.totalorder %s103, %s106
    %p115 = scmp.eq.s32.totalorder %s14, 7
    %p116 = por %p114, %p115
    %p117 = scmp.ne.s32.totalorder %s106, %s107
    %p118 = scmp.eq.s32.totalorder %s14, 0
    %p119 = por %p117, %p118
    %p120 = scmp.ne.s32.totalorder %s106, %s107
    %p121 = scmp.eq.s32.totalorder %s15, 7
    %p122 = por %p120, %p121
    %p124 = scmp.ne.s32.totalorder %s107, %s123
    %p125 = scmp.eq.s32.totalorder %s15, 0
    %p126 = por %p124, %p125
    %p127 = scmp.le.s32.totalorder 1, %s9
    %p128 = scmp.lt.s32.totalorder %s9, 9
    %p129 = pnand %p127, %p128
    %p130 = pneg %p129
    // Predicated region
    $region9: #{double_conv.5} parent=5 // pred_check
      _
    $region10: #{double_conv.5} parent=5 // pred_check_branch
      %132 = sbr.rel (%p129) target = $region12
    $region11: #{double_conv.5} parent=5 // pred_region
      %s133 = ssub.s32 %s9, 1
      // Predicated region
      $region13: #{double_conv.5} parent=11 // pred_check
        %p134 = pneg %p70
      $region14: #{double_conv.5} parent=11 // pred_check_branch
        %136 = sbr.rel (%p134) target = $region16
      $region15: #{double_conv.5} parent=11 // pred_region
        _
      $region16: #{double_conv.5} parent=11 // pred_fallthru
        _
      // Predicated region
      $region17: #{double_conv.5} parent=11 // pred_check
        %p137 = pneg %p91
      $region18: #{double_conv.5} parent=11 // pred_check_branch
        %139 = sbr.rel (%p137) target = $region20
      $region19: #{double_conv.5} parent=11 // pred_region
        _
      $region20: #{double_conv.5} parent=11 // pred_fallthru
        _
    $region12: #{double_conv.5} parent=5 // pred_fallthru
      _
    %p140 = scmp.lt.s32.totalorder %s9, 8
    // Predicated region
    $region21: #{double_conv.5} parent=5 // pred_check
      %p141 = pneg %p140
    $region22: #{double_conv.5} parent=5 // pred_check_branch
      %143 = sbr.rel (%p141) target = $region24
    $region23: #{double_conv.5} parent=5 // pred_region
      // Predicated region
      $region25: #{double_conv.5} parent=23 // pred_check
        %p144 = pneg %p43
      $region26: #{double_conv.5} parent=23 // pred_check_branch
        %146 = sbr.rel (%p144) target = $region28
      $region27: #{double_conv.5} parent=23 // pred_region
        %s147 = smul.u32 4, %s17
        %p148 = scmp.lt.s32.totalorder %s16, 1
        %s149 = scalar_select %p148, %s16, 1
        %p150 = scmp.lt.s32.totalorder %s147, 15
        %s151 = scalar_select %p150, %s147, 15
        %s152 = smul.addr %s151, 2
        %s153 = smul.addr %s149, 32
        %s154 = sadd.s32 %s152, %s153
        %s155 = smul.addr %s154, 8
        %s156 = scalar_lea.vmem %s0, %s155
        %s157 = smul.u32 4, %s17
      $region28: #{double_conv.5} parent=23 // pred_fallthru
        _
    $region24: #{double_conv.5} parent=5 // pred_fallthru
      _
    %p158 = scmp.le.s32.totalorder 1, %s9
    %p159 = scmp.lt.s32.totalorder %s9, 9
    %p160 = pnand %p158, %p159
    %p161 = pneg %p160
    // Predicated region
    $region29: #{double_conv.5} parent=5 // pred_check
      _
    $region30: #{double_conv.5} parent=5 // pred_check_branch
      %163 = sbr.rel (%p160) target = $region32
    $region31: #{double_conv.5} parent=5 // pred_region
      %s164 = ssub.s32 %s9, 1
      %s165 = smul.u32 4, %s19
      %p166 = scmp.lt.s32.totalorder %s18, 1
      %s167 = scalar_select %p166, %s18, 1
      %p168 = scmp.lt.s32.totalorder %s165, 15
      %s169 = scalar_select %p168, %s165, 15
      %s170 = smul.addr %s169, 2
      %s171 = smul.addr %s167, 32
      %s172 = sadd.s32 %s170, %s171
      %s173 = smul.addr %s172, 8
      %s174 = scalar_lea.vmem %s0, %s173
      %p175 = pneg %p49
      %p176 = pneg %p46
      %p177 = pneg %p70
      %p178 = pneg %p67
      %p179 = pneg %p91
      %p180 = pneg %p88
      %p181 = pneg %p119
      %p182 = pneg %p116
      %s183 = smul.u32 4, %s19
      %p184 = scmp.lt.s32.totalorder %s18, 1
      %s185 = scalar_select %p184, %s18, 1
      %p186 = scmp.lt.s32.totalorder %s183, 15
      %s187 = scalar_select %p186, %s183, 15
      %s188 = smul.addr %s187, 2
      %s189 = smul.addr %s185, 32
      %s190 = sadd.s32 %s188, %s189
      %s191 = smul.addr %s190, 8
      %s192 = scalar_lea.vmem %s3, %s191
      %s193 = smul.u32 4, %s19
      %p194 = scmp.lt.s32.totalorder %s18, 1
      %s195 = scalar_select %p194, %s18, 1
      %p196 = scmp.lt.s32.totalorder %s193, 15
      %s197 = scalar_select %p196, %s193, 15
      %s198 = smul.addr %s197, 2
      %s199 = smul.addr %s195, 32
      %s200 = sadd.s32 %s198, %s199
      %s201 = smul.addr %s200, 8
      %s202 = scalar_lea.vmem %s0, %s201
      %s203 = smul.u32 4, %s19
      %s204 = smul.u32 4, %s19
      %p205 = scmp.lt.s32.totalorder %s18, 1
      %s206 = scalar_select %p205, %s18, 1
      %p207 = scmp.lt.s32.totalorder %s204, 15
      %s208 = scalar_select %p207, %s204, 15
      %s209 = smul.addr %s208, 2
      %s210 = smul.addr %s206, 32
      %s211 = sadd.s32 %s209, %s210
      %s212 = smul.addr %s211, 8
      %s213 = scalar_lea.vmem %s3, %s212
      %s214 = smul.u32 4, %s19
      %v215 = vld [vmem:[%s1] sm:$0x1]
      %v216 = vld [vmem:[%s2] sm:$0x1]
      %v217 = vld [vmem:[%s202] sm:$0xff]
      %v218 = vld [vmem:[%s202 + $0x8] sm:$0xff]
      %v219 = vld [vmem:[%s202 + $0x10] sm:$0xff]
      %v220 = vld [vmem:[%s202 + $0x18] sm:$0xff]
      %v221 = vld [vmem:[%s202 + $0x20] sm:$0xff]
      %v222 = vld [vmem:[%s202 + $0x28] sm:$0xff]
      %v223 = vld [vmem:[%s202 + $0x30] sm:$0xff]
      %v224 = vld [vmem:[%s202 + $0x38] sm:$0xff]
      %v226 = vlaneseq
      %v227 = vshrl.u32 %v226, 7
      %v228 = vsub.s32 0, %v227
      %v229 = vrot.slane %v215, %v228
      %v231 = vmul.f32 %v217, %v229
      %v232 = vmul.f32 %v218, %v229
      %v233 = vmul.f32 %v219, %v229
      %v234 = vmul.f32 %v220, %v229
      %v235 = vmul.f32 %v221, %v229
      %v236 = vmul.f32 %v222, %v229
      %v237 = vmul.f32 %v223, %v229
      %v238 = vmul.f32 %v224, %v229
      %v240 = vlaneseq
      %v241 = vshrl.u32 %v240, 7
      %v242 = vsub.s32 0, %v241
      %v243 = vrot.slane %v216, %v242
      %v245 = vadd.f32 %v231, %v243
      %v246 = vadd.f32 %v232, %v243
      %v247 = vadd.f32 %v233, %v243
      %v248 = vadd.f32 %v234, %v243
      %v249 = vadd.f32 %v235, %v243
      %v250 = vadd.f32 %v236, %v243
      %v251 = vadd.f32 %v237, %v243
      %v252 = vadd.f32 %v238, %v243
      %v253 = vmax.f32 %v245, 0.0
      %v254 = vmax.f32 %v246, 0.0
      %v255 = vmax.f32 %v247, 0.0
      %v256 = vmax.f32 %v248, 0.0
      %v257 = vmax.f32 %v249, 0.0
      %v258 = vmax.f32 %v250, 0.0
      %v259 = vmax.f32 %v251, 0.0
      %v260 = vmax.f32 %v252, 0.0
      %261 = vst [vmem:[%s213] sm:$0xff] %v253
      %262 = vst [vmem:[%s213 + $0x8] sm:$0xff] %v254
      %263 = vst [vmem:[%s213 + $0x10] sm:$0xff] %v255
      %264 = vst [vmem:[%s213 + $0x18] sm:$0xff] %v256
      %265 = vst [vmem:[%s213 + $0x20] sm:$0xff] %v257
      %266 = vst [vmem:[%s213 + $0x28] sm:$0xff] %v258
      %267 = vst [vmem:[%s213 + $0x30] sm:$0xff] %v259
      %268 = vst [vmem:[%s213 + $0x38] sm:$0xff] %v260
      %s269 = smul.u32 4, %s19
      %p270 = scmp.lt.s32.totalorder %s18, 1
      %s271 = scalar_select %p270, %s18, 1
      %p272 = scmp.lt.s32.totalorder %s269, 15
      %s273 = scalar_select %p272, %s269, 15
      %s274 = smul.addr %s273, 2
      %s275 = smul.addr %s271, 32
      %s276 = sadd.s32 %s274, %s275
      %s277 = smul.addr %s276, 8
      %s278 = scalar_lea.vmem %s3, %s277
      // Predicated region
      $region33: #{double_conv.5} parent=31 // pred_check
        %p279 = pneg %p116
      $region34: #{double_conv.5} parent=31 // pred_check_branch
        %281 = sbr.rel (%p279) target = $region36
      $region35: #{double_conv.5} parent=31 // pred_region
        %s282 = smul.u32 4, %s19
      $region36: #{double_conv.5} parent=31 // pred_fallthru
        _
    $region32: #{double_conv.5} parent=5 // pred_fallthru
      _
    %p283 = scmp.le.s32.totalorder 2, %s9
    // Predicated region
    $region37: #{double_conv.5} parent=5 // pred_check
      %p284 = pneg %p283
    $region38: #{double_conv.5} parent=5 // pred_check_branch
      %286 = sbr.rel (%p284) target = $region40
    $region39: #{double_conv.5} parent=5 // pred_region
      %s287 = ssub.s32 %s9, 2
      // Predicated region
      $region41: #{double_conv.5} parent=39 // pred_check
        %p288 = pneg %p122
      $region42: #{double_conv.5} parent=39 // pred_check_branch
        %290 = sbr.rel (%p288) target = $region44
      $region43: #{double_conv.5} parent=39 // pred_region
        %s291 = smul.u32 4, %s21
        %p292 = scmp.lt.s32.totalorder %s20, 1
        %s293 = scalar_select %p292, %s20, 1
        %p294 = scmp.lt.s32.totalorder %s291, 15
        %s295 = scalar_select %p294, %s291, 15
        %s296 = smul.addr %s295, 2
        %s297 = smul.addr %s293, 32
        %s298 = sadd.s32 %s296, %s297
        %s299 = smul.addr %s298, 8
        %s300 = scalar_lea.vmem %s3, %s299
      $region44: #{double_conv.5} parent=39 // pred_fallthru
        _
    $region40: #{double_conv.5} parent=5 // pred_fallthru
      _
  $region6: #{double_conv.5} parent=0 // loop_footer
    %s13 = sadd.s32 1, %s9
  $region7: #{double_conv.5} parent=0 // loop_footer_branch
    %8 = sbr.rel target = $region3
  $region8: #{double_conv.5} parent=0 // loop_exit
    _

// kernel: double_conv.3
$region0: #{double_conv.3}
  #allocation0 [shape = 'u32[]', space=smem, size = 0x4, offset = 0x4, fixed_abs, tag = 'smem constant byte address 0x4 - core index']
  #allocation1 [shape = 'u32[144,128]{1,0:T(1,128)}', space=vmem, size = 0x12000, scoped, tag = 'internal scratch']
  #allocation2 [shape = 'bf16[6,18,4]{2,1,0:T(8,128)(2,1)}', space=vmem, size = 0x9000, scoped, tag = 'scratch operand']
  %s0 = inlined_call_operand.vmem [shape: bf16[2,16,16,4], index: 0, kind: input, shape index: {}, may-alias: {0,1,2}]
  %s1 = inlined_call_operand.vmem [shape: bf16[2,16,16,4], index: 1, kind: input, shape index: {}, may-alias: {0,1,2}]
  %s2 = inlined_call_operand.vmem [shape: bf16[2,16,16,4], index: 2, kind: input, shape index: {}, may-alias: {0,1,2}]
  %s3 = inlined_call_operand.vmem [shape: bf16[9,4,128], index: 3, kind: input, shape index: {}]
  %s4 = inlined_call_operand.vmem [shape: f32[1,4], index: 4, kind: input, shape index: {}]
  %s5 = inlined_call_operand.vmem [shape: f32[1,4], index: 5, kind: input, shape index: {}]
  %s6 = inlined_call_operand.vmem [shape: bf16[2,16,16,128], index: 6, kind: output, shape index: {0}]
  %s7 = inlined_call_operand.vmem [shape: f32[2,4,2,128], index: 7, kind: output, shape index: {1}]
  %8 = xla_tuple %s6, %s7
  %s9 = sld [smem:[#allocation0]]
  $region65: #{double_conv.3} parent=0
    _
  %s11 = ssub.s32 1, %s9
  %s12 = scalar_select 0, %s11, %s9
  loop: start=0, step=1, limit=10
  $region2: #{double_conv.3} parent=0 // loop_pre_header
    _
  $region3: #{double_conv.3} parent=0 // loop_header
    %s14 = sphi 0, %s18
    %p15 = scmp.ge.s32.totalorder %s14, 10
    %s21 = sphi 0, %s33
    %s22 = sphi 0, %s29
    %s23 = sphi 0, %s21
    %s24 = sphi 0, %s22
    %s25 = sphi 0, %s23
    %s26 = sphi 0, %s24
    %s38 = sphi 0, %s40
    %s41 = sphi 0, %s38
    %s42 = sphi 0, %s41
    %s58 = sphi 0, %s42
    %s74 = sphi 0, %s76
    %s77 = sphi 0, %s74
    %s78 = sphi 0, %s77
    %s94 = sphi 0, %s78
    %s110 = sphi 0, %s112
    %s113 = sphi 0, %s110
    %s114 = sphi 0, %s113
    %s130 = sphi 0, %s114
    %s134 = sphi 0, %s134
    %s136 = sphi 0, %s134
    %s137 = sphi 0, %s136
    %s151 = sphi 0, %s137
    %s155 = sphi 0, %s155
    %s157 = sphi 0, %s155
    %s158 = sphi 0, %s157
    %s172 = sphi 0, %s158
    %s176 = sphi 0, %s176
    %s178 = sphi 0, %s176
    %s179 = sphi 0, %s178
    %s193 = sphi 0, %s179
    %s201 = sphi 0, %s203
    %s204 = sphi 0, %s201
    %s205 = sphi 0, %s204
    %s221 = sphi 0, %s205
    %s229 = sphi 0, %s231
    %s232 = sphi 0, %s229
    %s233 = sphi 0, %s232
    %s249 = sphi 0, %s233
  $region4: #{double_conv.3} parent=0 // loop_header_branch
    %17 = sbr.rel (%p15) target = $region8
  $region5: #{double_conv.3} parent=0 // loop_body
    %s19 = ssub.s32 %s14, 1
    %s20 = ssub.s32 %s14, 2
    %s27 = sadd.s32 1, %s22
    %p28 = scmp.ge.s32.totalorder %s27, 4
    %s29 = scalar_select %p28, 0, %s27
    %s30 = sadd.s32 1, %s21
    %s31 = scalar_select %p28, %s30, %s21
    %p32 = scmp.ge.s32.totalorder %s31, 2
    %s33 = scalar_select %p32, 0, %s31
    %s34 = ssub.s32 %s21, %s33
    %s35 = ssub.s32 %s22, %s29
    %s36 = sor.u32 %s34, %s35
    %p37 = scmp.eq.s32.totalorder %s36, 0
    %s39 = sadd.s32 %s38, 1
    %s40 = scalar_select %p37, %s38, %s39
    %p43 = pneg %p37
    %p44 = scmp.eq.s32.totalorder %s14, 7
    %p45 = por %p43, %p44
    %p46 = scmp.ne.s32.totalorder %s38, %s41
    %p47 = scmp.eq.s32.totalorder %s14, 0
    %p48 = por %p46, %p47
    %p49 = scmp.ne.s32.totalorder %s38, %s41
    %p50 = scmp.eq.s32.totalorder %s19, 7
    %p51 = por %p49, %p50
    %p52 = scmp.ne.s32.totalorder %s41, %s42
    %p53 = scmp.eq.s32.totalorder %s19, 0
    %p54 = por %p52, %p53
    %p55 = scmp.ne.s32.totalorder %s41, %s42
    %p56 = scmp.eq.s32.totalorder %s20, 7
    %p57 = por %p55, %p56
    %p59 = scmp.ne.s32.totalorder %s42, %s58
    %p60 = scmp.eq.s32.totalorder %s20, 0
    %p61 = por %p59, %p60
    %s62 = smul.u32 %s22, 4
    %s63 = ssub.s32 %s62, 1
    %p64 = scmp.gt.s32.totalorder %s63, 0
    %s65 = scalar_select %p64, %s63, 0
    %s66 = smul.u32 %s29, 4
    %s67 = ssub.s32 %s66, 1
    %p68 = scmp.gt.s32.totalorder %s67, 0
    %s69 = scalar_select %p68, %s67, 0
    %s70 = ssub.s32 %s21, %s33
    %s71 = ssub.s32 %s65, %s69
    %s72 = sor.u32 %s70, %s71
    %p73 = scmp.eq.s32.totalorder %s72, 0
    %s75 = sadd.s32 %s74, 1
    %s76 = scalar_select %p73, %s74, %s75
    %p79 = pneg %p73
    %p80 = scmp.eq.s32.totalorder %s14, 7
    %p81 = por %p79, %p80
    %p82 = scmp.ne.s32.totalorder %s74, %s77
    %p83 = scmp.eq.s32.totalorder %s14, 0
    %p84 = por %p82, %p83
    %p85 = scmp.ne.s32.totalorder %s74, %s77
    %p86 = scmp.eq.s32.totalorder %s19, 7
    %p87 = por %p85, %p86
    %p88 = scmp.ne.s32.totalorder %s77, %s78
    %p89 = scmp.eq.s32.totalorder %s19, 0
    %p90 = por %p88, %p89
    %p91 = scmp.ne.s32.totalorder %s77, %s78
    %p92 = scmp.eq.s32.totalorder %s20, 7
    %p93 = por %p91, %p92
    %p95 = scmp.ne.s32.totalorder %s78, %s94
    %p96 = scmp.eq.s32.totalorder %s20, 0
    %p97 = por %p95, %p96
    %s98 = smul.u32 %s22, 4
    %s99 = sadd.s32 %s98, 4
    %p100 = scmp.lt.s32.totalorder %s99, 15
    %s101 = scalar_select %p100, %s99, 15
    %s102 = smul.u32 %s29, 4
    %s103 = sadd.s32 %s102, 4
    %p104 = scmp.lt.s32.totalorder %s103, 15
    %s105 = scalar_select %p104, %s103, 15
    %s106 = ssub.s32 %s21, %s33
    %s107 = ssub.s32 %s101, %s105
    %s108 = sor.u32 %s106, %s107
    %p109 = scmp.eq.s32.totalorder %s108, 0
    %s111 = sadd.s32 %s110, 1
    %s112 = scalar_select %p109, %s110, %s111
    %p115 = pneg %p109
    %p116 = scmp.eq.s32.totalorder %s14, 7
    %p117 = por %p115, %p116
    %p118 = scmp.ne.s32.totalorder %s110, %s113
    %p119 = scmp.eq.s32.totalorder %s14, 0
    %p120 = por %p118, %p119
    %p121 = scmp.ne.s32.totalorder %s110, %s113
    %p122 = scmp.eq.s32.totalorder %s19, 7
    %p123 = por %p121, %p122
    %p124 = scmp.ne.s32.totalorder %s113, %s114
    %p125 = scmp.eq.s32.totalorder %s19, 0
    %p126 = por %p124, %p125
    %p127 = scmp.ne.s32.totalorder %s113, %s114
    %p128 = scmp.eq.s32.totalorder %s20, 7
    %p129 = por %p127, %p128
    %p131 = scmp.ne.s32.totalorder %s114, %s130
    %p132 = scmp.eq.s32.totalorder %s20, 0
    %p133 = por %p131, %p132
    %s135 = sadd.s32 %s134, 1
    %p138 = scmp.eq.s32.totalorder %s14, 7
    %p139 = scmp.ne.s32.totalorder %s134, %s136
    %p140 = scmp.eq.s32.totalorder %s14, 0
    %p141 = por %p139, %p140
    %p142 = scmp.ne.s32.totalorder %s134, %s136
    %p143 = scmp.eq.s32.totalorder %s19, 7
    %p144 = por %p142, %p143
    %p145 = scmp.ne.s32.totalorder %s136, %s137
    %p146 = scmp.eq.s32.totalorder %s19, 0
    %p147 = por %p145, %p146
    %p148 = scmp.ne.s32.totalorder %s136, %s137
    %p149 = scmp.eq.s32.totalorder %s20, 7
    %p150 = por %p148, %p149
    %p152 = scmp.ne.s32.totalorder %s137, %s151
    %p153 = scmp.eq.s32.totalorder %s20, 0
    %p154 = por %p152, %p153
    %s156 = sadd.s32 %s155, 1
    %p159 = scmp.eq.s32.totalorder %s14, 7
    %p160 = scmp.ne.s32.totalorder %s155, %s157
    %p161 = scmp.eq.s32.totalorder %s14, 0
    %p162 = por %p160, %p161
    %p163 = scmp.ne.s32.totalorder %s155, %s157
    %p164 = scmp.eq.s32.totalorder %s19, 7
    %p165 = por %p163, %p164
    %p166 = scmp.ne.s32.totalorder %s157, %s158
    %p167 = scmp.eq.s32.totalorder %s19, 0
    %p168 = por %p166, %p167
    %p169 = scmp.ne.s32.totalorder %s157, %s158
    %p170 = scmp.eq.s32.totalorder %s20, 7
    %p171 = por %p169, %p170
    %p173 = scmp.ne.s32.totalorder %s158, %s172
    %p174 = scmp.eq.s32.totalorder %s20, 0
    %p175 = por %p173, %p174
    %s177 = sadd.s32 %s176, 1
    %p180 = scmp.eq.s32.totalorder %s14, 7
    %p181 = scmp.ne.s32.totalorder %s176, %s178
    %p182 = scmp.eq.s32.totalorder %s14, 0
    %p183 = por %p181, %p182
    %p184 = scmp.ne.s32.totalorder %s176, %s178
    %p185 = scmp.eq.s32.totalorder %s19, 7
    %p186 = por %p184, %p185
    %p187 = scmp.ne.s32.totalorder %s178, %s179
    %p188 = scmp.eq.s32.totalorder %s19, 0
    %p189 = por %p187, %p188
    %p190 = scmp.ne.s32.totalorder %s178, %s179
    %p191 = scmp.eq.s32.totalorder %s20, 7
    %p192 = por %p190, %p191
    %p194 = scmp.ne.s32.totalorder %s179, %s193
    %p195 = scmp.eq.s32.totalorder %s20, 0
    %p196 = por %p194, %p195
    %s197 = ssub.s32 %s21, %s33
    %s198 = ssub.s32 %s22, %s29
    %s199 = sor.u32 %s197, %s198
    %p200 = scmp.eq.s32.totalorder %s199, 0
    %s202 = sadd.s32 %s201, 1
    %s203 = scalar_select %p200, %s201, %s202
    %p206 = pneg %p200
    %p207 = scmp.eq.s32.totalorder %s14, 7
    %p208 = por %p206, %p207
    %p209 = scmp.ne.s32.totalorder %s201, %s204
    %p210 = scmp.eq.s32.totalorder %s14, 0
    %p211 = por %p209, %p210
    %p212 = scmp.ne.s32.totalorder %s201, %s204
    %p213 = scmp.eq.s32.totalorder %s19, 7
    %p214 = por %p212, %p213
    %p215 = scmp.ne.s32.totalorder %s204, %s205
    %p216 = scmp.eq.s32.totalorder %s19, 0
    %p217 = por %p215, %p216
    %p218 = scmp.ne.s32.totalorder %s204, %s205
    %p219 = scmp.eq.s32.totalorder %s20, 7
    %p220 = por %p218, %p219
    %p222 = scmp.ne.s32.totalorder %s205, %s221
    %p223 = scmp.eq.s32.totalorder %s20, 0
    %p224 = por %p222, %p223
    %s225 = ssub.s32 %s21, %s33
    %s226 = ssub.s32 %s22, %s29
    %s227 = sor.u32 %s225, %s226
    %p228 = scmp.eq.s32.totalorder %s227, 0
    %s230 = sadd.s32 %s229, 1
    %s231 = scalar_select %p228, %s229, %s230
    %p234 = pneg %p228
    %p235 = scmp.eq.s32.totalorder %s14, 7
    %p236 = por %p234, %p235
    %p237 = scmp.ne.s32.totalorder %s229, %s232
    %p238 = scmp.eq.s32.totalorder %s14, 0
    %p239 = por %p237, %p238
    %p240 = scmp.ne.s32.totalorder %s229, %s232
    %p241 = scmp.eq.s32.totalorder %s19, 7
    %p242 = por %p240, %p241
    %p243 = scmp.ne.s32.totalorder %s232, %s233
    %p244 = scmp.eq.s32.totalorder %s19, 0
    %p245 = por %p243, %p244
    %p246 = scmp.ne.s32.totalorder %s232, %s233
    %p247 = scmp.eq.s32.totalorder %s20, 7
    %p248 = por %p246, %p247
    %p250 = scmp.ne.s32.totalorder %s233, %s249
    %p251 = scmp.eq.s32.totalorder %s20, 0
    %p252 = por %p250, %p251
    %p253 = scmp.le.s32.totalorder 1, %s14
    %p254 = scmp.lt.s32.totalorder %s14, 9
    %p255 = pnand %p253, %p254
    %p256 = pneg %p255
    // Predicated region
    $region9: #{double_conv.3} parent=5 // pred_check
      _
    $region10: #{double_conv.3} parent=5 // pred_check_branch
      %258 = sbr.rel (%p255) target = $region12
    $region11: #{double_conv.3} parent=5 // pred_region
      %s259 = ssub.s32 %s14, 1
      // Predicated region
      $region13: #{double_conv.3} parent=11 // pred_check
        %p260 = pneg %p147
      $region14: #{double_conv.3} parent=11 // pred_check_branch
        %262 = sbr.rel (%p260) target = $region16
      $region15: #{double_conv.3} parent=11 // pred_region
        _
      $region16: #{double_conv.3} parent=11 // pred_fallthru
        _
      // Predicated region
      $region17: #{double_conv.3} parent=11 // pred_check
        %p263 = pneg %p168
      $region18: #{double_conv.3} parent=11 // pred_check_branch
        %265 = sbr.rel (%p263) target = $region20
      $region19: #{double_conv.3} parent=11 // pred_region
        _
      $region20: #{double_conv.3} parent=11 // pred_fallthru
        _
      // Predicated region
      $region21: #{double_conv.3} parent=11 // pred_check
        %p266 = pneg %p189
      $region22: #{double_conv.3} parent=11 // pred_check_branch
        %268 = sbr.rel (%p266) target = $region24
      $region23: #{double_conv.3} parent=11 // pred_region
        _
      $region24: #{double_conv.3} parent=11 // pred_fallthru
        _
    $region12: #{double_conv.3} parent=5 // pred_fallthru
      _
    %p269 = scmp.lt.s32.totalorder %s14, 8
    // Predicated region
    $region25: #{double_conv.3} parent=5 // pred_check
      %p270 = pneg %p269
    $region26: #{double_conv.3} parent=5 // pred_check_branch
      %272 = sbr.rel (%p270) target = $region28
    $region27: #{double_conv.3} parent=5 // pred_region
      // Predicated region
      $region29: #{double_conv.3} parent=27 // pred_check
        %p273 = pneg %p48
      $region30: #{double_conv.3} parent=27 // pred_check_branch
        %275 = sbr.rel (%p273) target = $region32
      $region31: #{double_conv.3} parent=27 // pred_region
        %s276 = smul.u32 4, %s22
        %p277 = scmp.lt.s32.totalorder %s21, 1
        %s278 = scalar_select %p277, %s21, 1
        %p279 = scmp.lt.s32.totalorder %s276, 15
        %s280 = scalar_select %p279, %s276, 15
        %s281 = smul.addr %s280, 2
        %s282 = smul.addr %s278, 32
        %s283 = sadd.s32 %s281, %s282
        %s284 = smul.addr %s283, 4
        %s285 = scalar_lea.vmem %s0, %s284
        %s286 = smul.u32 4, %s22
      $region32: #{double_conv.3} parent=27 // pred_fallthru
        _
      // Predicated region
      $region33: #{double_conv.3} parent=27 // pred_check
        %p287 = pneg %p84
      $region34: #{double_conv.3} parent=27 // pred_check_branch
        %289 = sbr.rel (%p287) target = $region36
      $region35: #{double_conv.3} parent=27 // pred_region
        %s290 = smul.u32 %s22, 4
        %s291 = ssub.s32 %s290, 1
        %p292 = scmp.gt.s32.totalorder %s291, 0
        %s293 = scalar_select %p292, %s291, 0
        %p294 = scmp.lt.s32.totalorder %s21, 1
        %s295 = scalar_select %p294, %s21, 1
        %p296 = scmp.lt.s32.totalorder %s293, 15
        %s297 = scalar_select %p296, %s293, 15
        %s298 = smul.addr %s297, 2
        %s299 = smul.addr %s295, 32
        %s300 = sadd.s32 %s298, %s299
        %s301 = smul.addr %s300, 4
        %s302 = scalar_lea.vmem %s1, %s301
        %s303 = smul.u32 %s22, 4
        %s304 = ssub.s32 %s303, 1
        %p305 = scmp.gt.s32.totalorder %s304, 0
        %s306 = scalar_select %p305, %s304, 0
      $region36: #{double_conv.3} parent=27 // pred_fallthru
        _
      // Predicated region
      $region37: #{double_conv.3} parent=27 // pred_check
        %p307 = pneg %p120
      $region38: #{double_conv.3} parent=27 // pred_check_branch
        %309 = sbr.rel (%p307) target = $region40
      $region39: #{double_conv.3} parent=27 // pred_region
        %s310 = smul.u32 %s22, 4
        %s311 = sadd.s32 %s310, 4
        %p312 = scmp.lt.s32.totalorder %s311, 15
        %s313 = scalar_select %p312, %s311, 15
        %p314 = scmp.lt.s32.totalorder %s21, 1
        %s315 = scalar_select %p314, %s21, 1
        %p316 = scmp.lt.s32.totalorder %s313, 15
        %s317 = scalar_select %p316, %s313, 15
        %s318 = smul.addr %s317, 2
        %s319 = smul.addr %s315, 32
        %s320 = sadd.s32 %s318, %s319
        %s321 = smul.addr %s320, 4
        %s322 = scalar_lea.vmem %s2, %s321
        %s323 = smul.u32 %s22, 4
        %s324 = sadd.s32 %s323, 4
        %p325 = scmp.lt.s32.totalorder %s324, 15
        %s326 = scalar_select %p325, %s324, 15
      $region40: #{double_conv.3} parent=27 // pred_fallthru
        _
    $region28: #{double_conv.3} parent=5 // pred_fallthru
      _
    %p327 = scmp.le.s32.totalorder 1, %s14
    %p328 = scmp.lt.s32.totalorder %s14, 9
    %p329 = pnand %p327, %p328
    %p330 = pneg %p329
    // Predicated region
    $region41: #{double_conv.3} parent=5 // pred_check
      _
    $region42: #{double_conv.3} parent=5 // pred_check_branch
      %332 = sbr.rel (%p329) target = $region44
    $region43: #{double_conv.3} parent=5 // pred_region
      %s333 = ssub.s32 %s14, 1
      %s334 = smul.u32 4, %s24
      %p335 = scmp.lt.s32.totalorder %s23, 1
      %s336 = scalar_select %p335, %s23, 1
      %p337 = scmp.lt.s32.totalorder %s334, 15
      %s338 = scalar_select %p337, %s334, 15
      %s339 = smul.addr %s338, 2
      %s340 = smul.addr %s336, 32
      %s341 = sadd.s32 %s339, %s340
      %s342 = smul.addr %s341, 4
      %s343 = scalar_lea.vmem %s0, %s342
      %p344 = pneg %p54
      %p345 = pneg %p51
      %s346 = smul.u32 %s24, 4
      %s347 = ssub.s32 %s346, 1
      %p348 = scmp.gt.s32.totalorder %s347, 0
      %s349 = scalar_select %p348, %s347, 0
      %p350 = scmp.lt.s32.totalorder %s23, 1
      %s351 = scalar_select %p350, %s23, 1
      %p352 = scmp.lt.s32.totalorder %s349, 15
      %s353 = scalar_select %p352, %s349, 15
      %s354 = smul.addr %s353, 2
      %s355 = smul.addr %s351, 32
      %s356 = sadd.s32 %s354, %s355
      %s357 = smul.addr %s356, 4
      %s358 = scalar_lea.vmem %s1, %s357
      %p359 = pneg %p90
      %p360 = pneg %p87
      %s361 = smul.u32 %s24, 4
      %s362 = sadd.s32 %s361, 4
      %p363 = scmp.lt.s32.totalorder %s362, 15
      %s364 = scalar_select %p363, %s362, 15
      %p365 = scmp.lt.s32.totalorder %s23, 1
      %s366 = scalar_select %p365, %s23, 1
      %p367 = scmp.lt.s32.totalorder %s364, 15
      %s368 = scalar_select %p367, %s364, 15
      %s369 = smul.addr %s368, 2
      %s370 = smul.addr %s366, 32
      %s371 = sadd.s32 %s369, %s370
      %s372 = smul.addr %s371, 4
      %s373 = scalar_lea.vmem %s2, %s372
      %p374 = pneg %p126
      %p375 = pneg %p123
      %p376 = pneg %p147
      %p377 = pneg %p144
      %p378 = pneg %p168
      %p379 = pneg %p165
      %p380 = pneg %p189
      %p381 = pneg %p186
      %p382 = pneg %p217
      %p383 = pneg %p214
      %s384 = smul.u32 4, %s24
      %p385 = scmp.lt.s32.totalorder %s23, 1
      %s386 = scalar_select %p385, %s23, 1
      %p387 = scmp.lt.s32.totalorder %s384, 15
      %s388 = scalar_select %p387, %s384, 15
      %s389 = smul.addr %s388, 2
      %s390 = smul.addr %s386, 32
      %s391 = sadd.s32 %s389, %s390
      %s392 = smul.addr %s391, 4
      %s393 = scalar_lea.vmem %s6, %s392
      %p394 = pneg %p245
      %p395 = pneg %p242
      %p396 = scmp.lt.s32.totalorder %s23, 1
      %s397 = scalar_select %p396, %s23, 1
      %p398 = scmp.lt.s32.totalorder %s24, 3
      %s399 = scalar_select %p398, %s24, 3
      %s400 = smul.addr %s397, 4
      %s401 = sadd.s32 %s399, %s400
      %s402 = smul.addr %s401, 2
      %s403 = scalar_lea.vmem %s7, %s402
      %s404 = smul.u32 4, %s24
      %p405 = scmp.lt.s32.totalorder %s23, 1
      %s406 = scalar_select %p405, %s23, 1
      %p407 = scmp.lt.s32.totalorder %s404, 15
      %s408 = scalar_select %p407, %s404, 15
      %s409 = smul.addr %s408, 2
      %s410 = smul.addr %s406, 32
      %s411 = sadd.s32 %s409, %s410
      %s412 = smul.addr %s411, 4
      %s413 = scalar_lea.vmem %s0, %s412
      %s414 = smul.u32 4, %s24
      %s415 = smul.u32 %s24, 4
      %s416 = ssub.s32 %s415, 1
      %p417 = scmp.gt.s32.totalorder %s416, 0
      %s418 = scalar_select %p417, %s416, 0
      %p419 = scmp.lt.s32.totalorder %s23, 1
      %s420 = scalar_select %p419, %s23, 1
      %p421 = scmp.lt.s32.totalorder %s418, 15
      %s422 = scalar_select %p421, %s418, 15
      %s423 = smul.addr %s422, 2
      %s424 = smul.addr %s420, 32
      %s425 = sadd.s32 %s423, %s424
      %s426 = smul.addr %s425, 4
      %s427 = scalar_lea.vmem %s1, %s426
      %s428 = smul.u32 %s24, 4
      %s429 = ssub.s32 %s428, 1
      %p430 = scmp.gt.s32.totalorder %s429, 0
      %s431 = scalar_select %p430, %s429, 0
      %s432 = smul.u32 %s24, 4
      %s433 = sadd.s32 %s432, 4
      %p434 = scmp.lt.s32.totalorder %s433, 15
      %s435 = scalar_select %p434, %s433, 15
      %p436 = scmp.lt.s32.totalorder %s23, 1
      %s437 = scalar_select %p436, %s23, 1
      %p438 = scmp.lt.s32.totalorder %s435, 15
      %s439 = scalar_select %p438, %s435, 15
      %s440 = smul.addr %s439, 2
      %s441 = smul.addr %s437, 32
      %s442 = sadd.s32 %s440, %s441
      %s443 = smul.addr %s442, 4
      %s444 = scalar_lea.vmem %s2, %s443
      %s445 = smul.u32 %s24, 4
      %s446 = sadd.s32 %s445, 4
      %p447 = scmp.lt.s32.totalorder %s446, 15
      %s448 = scalar_select %p447, %s446, 15
      %s449 = smul.u32 4, %s24
      %p450 = scmp.lt.s32.totalorder %s23, 1
      %s451 = scalar_select %p450, %s23, 1
      %p452 = scmp.lt.s32.totalorder %s449, 15
      %s453 = scalar_select %p452, %s449, 15
      %s454 = smul.addr %s453, 2
      %s455 = smul.addr %s451, 32
      %s456 = sadd.s32 %s454, %s455
      %s457 = smul.addr %s456, 4
      %s458 = scalar_lea.vmem %s6, %s457
      %s459 = smul.u32 4, %s24
      %p460 = scmp.lt.s32.totalorder %s23, 1
      %s461 = scalar_select %p460, %s23, 1
      %p462 = scmp.lt.s32.totalorder %s24, 3
      %s463 = scalar_select %p462, %s24, 3
      %s464 = smul.addr %s461, 4
      %s465 = sadd.s32 %s463, %s464
      %s466 = smul.addr %s465, 2
      %s467 = scalar_lea.vmem %s7, %s466
      %v469 = vld [vmem:[%s4] sm:$0x1]
      %v470 = vld [vmem:[%s5] sm:$0x1]
      %vm471 = vcmask 24576
      %vm472 = vsmask.f32 256
      %vm473 = vmand %vm471, %vm472
      %v474 = vld [vmem:[#allocation2] sm:$0x1]
      %v475 = vsel %vm473, 0, %v474
      %476 = vst [vmem:[#allocation2] sm:$0x1] %v475
      %v477 = vld [vmem:[#allocation2 + $0xc] sm:$0x1]
      %v478 = vsel %vm473, 0, %v477
      %479 = vst [vmem:[#allocation2 + $0xc] sm:$0x1] %v478
      %v480 = vld [vmem:[#allocation2 + $0x18] sm:$0x1]
      %v481 = vsel %vm473, 0, %v480
      %482 = vst [vmem:[#allocation2 + $0x18] sm:$0x1] %v481
      %v483 = vld [vmem:[#allocation2 + $0x24] sm:$0x1]
      %v484 = vsel %vm473, 0, %v483
      %485 = vst [vmem:[#allocation2 + $0x24] sm:$0x1] %v484
      %v486 = vld [vmem:[#allocation2 + $0x30] sm:$0x1]
      %v487 = vsel %vm473, 0, %v486
      %488 = vst [vmem:[#allocation2 + $0x30] sm:$0x1] %v487
      %v489 = vld [vmem:[#allocation2 + $0x3c] sm:$0x1]
      %v490 = vsel %vm473, 0, %v489
      %491 = vst [vmem:[#allocation2 + $0x3c] sm:$0x1] %v490
      %vm492 = vsmask.f32 7938
      %vm493 = vmand %vm471, %vm492
      %v494 = vld [vmem:[#allocation2 + $0x8] sm:$0x1]
      %v495 = vsel %vm493, 0, %v494
      %496 = vst [vmem:[#allocation2 + $0x8] sm:$0x1] %v495
      %v497 = vld [vmem:[#allocation2 + $0x14] sm:$0x1]
      %v498 = vsel %vm493, 0, %v497
      %499 = vst [vmem:[#allocation2 + $0x14] sm:$0x1] %v498
      %v500 = vld [vmem:[#allocation2 + $0x20] sm:$0x1]
      %v501 = vsel %vm493, 0, %v500
      %502 = vst [vmem:[#allocation2 + $0x20] sm:$0x1] %v501
      %v503 = vld [vmem:[#allocation2 + $0x2c] sm:$0x1]
      %v504 = vsel %vm493, 0, %v503
      %505 = vst [vmem:[#allocation2 + $0x2c] sm:$0x1] %v504
      %v506 = vld [vmem:[#allocation2 + $0x38] sm:$0x1]
      %v507 = vsel %vm493, 0, %v506
      %508 = vst [vmem:[#allocation2 + $0x38] sm:$0x1] %v507
      %v509 = vld [vmem:[#allocation2 + $0x44] sm:$0x1]
      %v510 = vsel %vm493, 0, %v509
      %511 = vst [vmem:[#allocation2 + $0x44] sm:$0x1] %v510
      %v512 = vld [vmem:[%s413] sm:$0xf]
      %v513 = vld [vmem:[%s413 + $0x4] sm:$0xf]
      %v514 = vld [vmem:[%s413 + $0x8] sm:$0xf]
      %v515 = vld [vmem:[%s413 + $0xc] sm:$0xf]
      %v516 = vld [vmem:[%s413 + $0x10] sm:$0xf]
      %v517 = vld [vmem:[%s413 + $0x14] sm:$0xf]
      %v518 = vld [vmem:[%s413 + $0x18] sm:$0xf]
      %v519 = vld [vmem:[%s413 + $0x1c] sm:$0xf]
      %v520 = vunpack.c.l.bf16 %v512
      %v521 = vunpack.c.l.bf16 %v513
      %v522 = vunpack.c.l.bf16 %v514
      %v523 = vunpack.c.l.bf16 %v515
      %v524 = vunpack.c.l.bf16 %v516
      %v525 = vunpack.c.l.bf16 %v517
      %v526 = vunpack.c.l.bf16 %v518
      %v527 = vunpack.c.l.bf16 %v519
      %v529 = vlaneseq
      %v530 = vshrl.u32 %v529, 7
      %v531 = vsub.s32 0, %v530
      %v532 = vrot.slane %v469, %v531
      %v534 = vmul.f32 %v520, %v532
      %v535 = vmul.f32 %v521, %v532
      %v536 = vmul.f32 %v522, %v532
      %v537 = vmul.f32 %v523, %v532
      %v538 = vmul.f32 %v524, %v532
      %v539 = vmul.f32 %v525, %v532
      %v540 = vmul.f32 %v526, %v532
      %v541 = vmul.f32 %v527, %v532
      %v543 = vlaneseq
      %v544 = vshrl.u32 %v543, 7
      %v545 = vsub.s32 0, %v544
      %v546 = vrot.slane %v470, %v545
      %v548 = vadd.f32 %v534, %v546
      %v549 = vadd.f32 %v535, %v546
      %v550 = vadd.f32 %v536, %v546
      %v551 = vadd.f32 %v537, %v546
      %v552 = vadd.f32 %v538, %v546
      %v553 = vadd.f32 %v539, %v546
      %v554 = vadd.f32 %v540, %v546
      %v555 = vadd.f32 %v541, %v546
      %v556 = vpack.c.bf16 %v549, %v548
      %v557 = vpack.c.bf16 %v551, %v550
      %v558 = vpack.c.bf16 %v553, %v552
      %v559 = vpack.c.bf16 %v555, %v554
      %v564 = vunpack.c.l.b16 %v556
      %v565 = vunpack.c.h.b16 %v556
      %v566 = vunpack.c.l.b16 %v557
      %v567 = vunpack.c.h.b16 %v557
      %v568 = vunpack.c.l.b16 %v558
      %v569 = vunpack.c.h.b16 %v558
      %v570 = vunpack.c.l.b16 %v559
      %v571 = vunpack.c.h.b16 %v559
      %v572 = vpack.c.b16 %v564, %v564
      %v573 = vpack.c.b16 %v565, %v565
      %v574 = vpack.c.b16 %v566, %v566
      %v575 = vpack.c.b16 %v567, %v567
      %v576 = vpack.c.b16 %v568, %v568
      %v577 = vpack.c.b16 %v569, %v569
      %v578 = vpack.c.b16 %v570, %v570
      %v579 = vpack.c.b16 %v571, %v571
      %vm580 = vsmask.f32 4368
      %vm581 = vmor %vm472, %vm580
      %v583 = vshrl.u32 %v572, 16
      %v585 = vrot.slane %v583, 7
      %v586 = vshll.u32 %v572, 16
      %v588 = vor.u32 %v585, %v586
      %v589 = vrot.slane %v585, 4
      %v591 = vshrl.u32 %v573, 16
      %v593 = vrot.slane %v591, 7
      %v594 = vshll.u32 %v573, 16
      %v596 = vor.u32 %v593, %v594
      %v597 = vsel %vm581, %v589, %v596
      %v598 = vrot.slane %v593, 4
      %v600 = vshrl.u32 %v574, 16
      %v602 = vrot.slane %v600, 7
      %v603 = vshll.u32 %v574, 16
      %v605 = vor.u32 %v602, %v603
      %v606 = vrot.slane %v602, 4
      %v608 = vshrl.u32 %v575, 16
      %v610 = vrot.slane %v608, 7
      %v611 = vshll.u32 %v575, 16
      %v613 = vor.u32 %v610, %v611
      %v614 = vsel %vm581, %v606, %v613
      %v615 = vrot.slane %v610, 4
      %v617 = vshrl.u32 %v576, 16
      %v619 = vrot.slane %v617, 7
      %v620 = vshll.u32 %v576, 16
      %v622 = vor.u32 %v619, %v620
      %v623 = vrot.slane %v619, 4
      %v625 = vshrl.u32 %v577, 16
      %v627 = vrot.slane %v625, 7
      %v628 = vshll.u32 %v577, 16
      %v630 = vor.u32 %v627, %v628
      %v631 = vsel %vm581, %v623, %v630
      %v632 = vrot.slane %v627, 4
      %v634 = vshrl.u32 %v578, 16
      %v636 = vrot.slane %v634, 7
      %v637 = vshll.u32 %v578, 16
      %v639 = vor.u32 %v636, %v637
      %v640 = vrot.slane %v636, 4
      %v642 = vshrl.u32 %v579, 16
      %v644 = vrot.slane %v642, 7
      %v645 = vshll.u32 %v579, 16
      %v647 = vor.u32 %v644, %v645
      %v648 = vsel %vm581, %v640, %v647
      %v649 = vrot.slane %v644, 4
      %s662 = scalar_lea.vmem [#allocation2], 12
      %vm663 = vcmask 27648
      %vm664 = vmand %vm663, %vm492
      %v665 = vld [vmem:[%s662] sm:$0xf]
      %v666 = vsel %vm664, %v588, %v665
      %667 = vst [vmem:[%s662] sm:$0xf] %v666
      %vm668 = vcmask 27648
      %669 = vst.msk [vmem:[%s662 + $0x4] sm:$0xf] %vm668, %v597
      %v670 = vld [vmem:[%s662 + $0x8] sm:$0x1]
      %v671 = vsel %vm473, %v598, %v670
      %672 = vst [vmem:[%s662 + $0x8] sm:$0x1] %v671
      %v673 = vld [vmem:[%s662 + $0xc] sm:$0xf]
      %v674 = vsel %vm664, %v605, %v673
      %675 = vst [vmem:[%s662 + $0xc] sm:$0xf] %v674
      %676 = vst.msk [vmem:[%s662 + $0x10] sm:$0xf] %vm668, %v614
      %v677 = vld [vmem:[%s662 + $0x14] sm:$0x1]
      %v678 = vsel %vm473, %v615, %v677
      %679 = vst [vmem:[%s662 + $0x14] sm:$0x1] %v678
      %v680 = vld [vmem:[%s662 + $0x18] sm:$0xf]
      %v681 = vsel %vm664, %v622, %v680
      %682 = vst [vmem:[%s662 + $0x18] sm:$0xf] %v681
      %683 = vst.msk [vmem:[%s662 + $0x1c] sm:$0xf] %vm668, %v631
      %v684 = vld [vmem:[%s662 + $0x20] sm:$0x1]
      %v685 = vsel %vm473, %v632, %v684
      %686 = vst [vmem:[%s662 + $0x20] sm:$0x1] %v685
      %v687 = vld [vmem:[%s662 + $0x24] sm:$0xf]
      %v688 = vsel %vm664, %v639, %v687
      %689 = vst [vmem:[%s662 + $0x24] sm:$0xf] %v688
      %690 = vst.msk [vmem:[%s662 + $0x28] sm:$0xf] %vm668, %v648
      %v691 = vld [vmem:[%s662 + $0x2c] sm:$0x1]
      %v692 = vsel %vm473, %v649, %v691
      %693 = vst [vmem:[%s662 + $0x2c] sm:$0x1] %v692
      %v694 = vld [vmem:[%s427] sm:$0xf]
      %v695 = vld [vmem:[%s427 + $0x4] sm:$0xf]
      %v696 = vunpack.c.l.bf16 %v694
      %v697 = vunpack.c.l.bf16 %v695
      %v698 = vmul.f32 %v696, %v532
      %v699 = vmul.f32 %v697, %v532
      %v700 = vadd.f32 %v698, %v546
      %v701 = vadd.f32 %v699, %v546
      %v702 = vpack.c.bf16 %v701, %v700
      %p703 = scmp.eq.s32.totalorder %s24, 0
      %s704 = scalar_select %p703, 1, 0
      %v705 = vstv %s704
      %vm706 = vcmp.eq.s32.totalorder %v705, 1
      %v707 = vsel %vm706, 0, %v702
      %v709 = vunpack.c.l.b16 %v707
      %v710 = vunpack.c.h.b16 %v707
      %v711 = vpack.c.b16 %v709, %v709
      %v712 = vpack.c.b16 %v710, %v710
      %v714 = vshrl.u32 %v711, 16
      %v716 = vrot.slane %v714, 7
      %v717 = vshll.u32 %v711, 16
      %v719 = vor.u32 %v716, %v717
      %v720 = vrot.slane %v716, 4
      %v722 = vshrl.u32 %v712, 16
      %v724 = vrot.slane %v722, 7
      %v725 = vshll.u32 %v712, 16
      %v727 = vor.u32 %v724, %v725
      %v728 = vsel %vm581, %v720, %v727
      %v729 = vrot.slane %v724, 4
      %v733 = vld [vmem:[#allocation2] sm:$0xf]
      %v734 = vsel %vm664, %v719, %v733
      %735 = vst [vmem:[#allocation2] sm:$0xf] %v734
      %736 = vst.msk [vmem:[#allocation2 + $0x4] sm:$0xf] %vm668, %v728
      %v737 = vld [vmem:[#allocation2 + $0x8] sm:$0x1]
      %v738 = vsel %vm473, %v729, %v737
      %739 = vst [vmem:[#allocation2 + $0x8] sm:$0x1] %v738
      %v740 = vld [vmem:[%s444] sm:$0xf]
      %v741 = vld [vmem:[%s444 + $0x4] sm:$0xf]
      %v742 = vunpack.c.l.bf16 %v740
      %v743 = vunpack.c.l.bf16 %v741
      %v744 = vmul.f32 %v742, %v532
      %v745 = vmul.f32 %v743, %v532
      %v746 = vadd.f32 %v744, %v546
      %v747 = vadd.f32 %v745, %v546
      %v748 = vpack.c.bf16 %v747, %v746
      %p749 = scmp.eq.s32.totalorder %s24, 3
      %s750 = scalar_select %p749, 1, 0
      %v751 = vstv %s750
      %vm752 = vcmp.eq.s32.totalorder %v751, 1
      %v753 = vsel %vm752, 0, %v748
      %v755 = vunpack.c.l.b16 %v753
      %v756 = vunpack.c.h.b16 %v753
      %v757 = vpack.c.b16 %v755, %v755
      %v758 = vpack.c.b16 %v756, %v756
      %v760 = vshrl.u32 %v757, 16
      %v762 = vrot.slane %v760, 7
      %v763 = vshll.u32 %v757, 16
      %v765 = vor.u32 %v762, %v763
      %v766 = vrot.slane %v762, 4
      %v768 = vshrl.u32 %v758, 16
      %v770 = vrot.slane %v768, 7
      %v771 = vshll.u32 %v758, 16
      %v773 = vor.u32 %v770, %v771
      %v774 = vsel %vm581, %v766, %v773
      %v775 = vrot.slane %v770, 4
      %s779 = scalar_lea.vmem [#allocation2], 60
      %v780 = vld [vmem:[%s779] sm:$0xf]
      %v781 = vsel %vm664, %v765, %v780
      %782 = vst [vmem:[%s779] sm:$0xf] %v781
      %783 = vst.msk [vmem:[%s779 + $0x4] sm:$0xf] %vm668, %v774
      %v784 = vld [vmem:[%s779 + $0x8] sm:$0x1]
      %v785 = vsel %vm473, %v775, %v784
      %786 = vst [vmem:[%s779 + $0x8] sm:$0x1] %v785
      %v787 = vld [vmem:[#allocation2] sm:$0xf]
      %v788 = vld [vmem:[#allocation2 + $0x4] sm:$0xf]
      %v789 = vld [vmem:[#allocation2 + $0xc] sm:$0xf]
      %v790 = vld [vmem:[#allocation2 + $0x10] sm:$0xf]
      %v791 = vld [vmem:[#allocation2 + $0x18] sm:$0xf]
      %v792 = vld [vmem:[#allocation2 + $0x1c] sm:$0xf]
      %v793 = vld [vmem:[#allocation2 + $0x24] sm:$0xf]
      %v794 = vld [vmem:[#allocation2 + $0x28] sm:$0xf]
      %v795 = vld [vmem:[%s3] sm:$0x3]
      %v796 = vld [vmem:[#allocation2 + $0x8] sm:$0x1]
      %v797 = vld [vmem:[#allocation2 + $0x14] sm:$0x1]
      %v798 = vld [vmem:[#allocation2 + $0x20] sm:$0x1]
      %v799 = vld [vmem:[#allocation2 + $0x2c] sm:$0x1]
      %vm800 = vsmask.f32 3328
      %vm801 = vsmask.f32 7440
      %vm802 = vmor %vm800, %vm801
      %v804 = vshrl.u32 %v787, 16
      %v806 = vrot.slane %v804, 4
      %v807 = vshll.u32 %v787, 16
      %v809 = vrot.slane %v807, 5
      %v810 = vor.u32 %v806, %v809
      %v811 = vrot.slane %v810, 4
      %v813 = vshll.u32 %v788, 16
      %v815 = vrot.slane %v813, 5
      %v816 = vsel %vm802, %v811, %v815
      %v817 = vshrl.u32 %v788, 16
      %v819 = vrot.slane %v817, 4
      %v820 = vor.u32 %v819, %v815
      %v821 = vrot.slane %v820, 4
      %v823 = vshll.u32 %v796, 16
      %v825 = vrot.slane %v823, 5
      %v826 = vsel %vm802, %v821, %v825
      %v828 = vshrl.u32 %v789, 16
      %v830 = vrot.slane %v828, 4
      %v831 = vshll.u32 %v789, 16
      %v833 = vrot.slane %v831, 5
      %v834 = vor.u32 %v830, %v833
      %v835 = vrot.slane %v834, 4
      %v837 = vshll.u32 %v790, 16
      %v839 = vrot.slane %v837, 5
      %v840 = vsel %vm802, %v835, %v839
      %v841 = vshrl.u32 %v790, 16
      %v843 = vrot.slane %v841, 4
      %v844 = vor.u32 %v843, %v839
      %v845 = vrot.slane %v844, 4
      %v847 = vshll.u32 %v797, 16
      %v849 = vrot.slane %v847, 5
      %v850 = vsel %vm802, %v845, %v849
      %v852 = vshrl.u32 %v791, 16
      %v854 = vrot.slane %v852, 4
      %v855 = vshll.u32 %v791, 16
      %v857 = vrot.slane %v855, 5
      %v858 = vor.u32 %v854, %v857
      %v859 = vrot.slane %v858, 4
      %v861 = vshll.u32 %v792, 16
      %v863 = vrot.slane %v861, 5
      %v864 = vsel %vm802, %v859, %v863
      %v865 = vshrl.u32 %v792, 16
      %v867 = vrot.slane %v865, 4
      %v868 = vor.u32 %v867, %v863
      %v869 = vrot.slane %v868, 4
      %v871 = vshll.u32 %v798, 16
      %v873 = vrot.slane %v871, 5
      %v874 = vsel %vm802, %v869, %v873
      %v876 = vshrl.u32 %v793, 16
      %v878 = vrot.slane %v876, 4
      %v879 = vshll.u32 %v793, 16
      %v881 = vrot.slane %v879, 5
      %v882 = vor.u32 %v878, %v881
      %v883 = vrot.slane %v882, 4
      %v885 = vshll.u32 %v794, 16
      %v887 = vrot.slane %v885, 5
      %v888 = vsel %vm802, %v883, %v887
      %v889 = vshrl.u32 %v794, 16
      %v891 = vrot.slane %v889, 4
      %v892 = vor.u32 %v891, %v887
      %v893 = vrot.slane %v892, 4
      %v895 = vshll.u32 %v799, 16
      %v897 = vrot.slane %v895, 5
      %v898 = vsel %vm802, %v893, %v897
      %s899 = scalar_lea.vmem %s3, 2
      %v900 = vld [vmem:[%s899] sm:$0x3]
      %v901 = vunpack.c.l.b16 %v816
      %v902 = vunpack.c.l.b16 %v826
      %v903 = vunpack.c.l.b16 %v840
      %v904 = vunpack.c.l.b16 %v850
      %v905 = vunpack.c.l.b16 %v864
      %v906 = vunpack.c.l.b16 %v874
      %v907 = vunpack.c.l.b16 %v888
      %v908 = vunpack.c.l.b16 %v898
      %v909 = vpack.c.b16 %v902, %v901
      %v910 = vpack.c.b16 %v904, %v903
      %v911 = vpack.c.b16 %v906, %v905
      %v912 = vpack.c.b16 %v908, %v907
      %vm913 = vcmask 31744
      %v915 = vsel %vm913, %v909, 0
      %v918 = vsel %vm913, %v910, 0
      %v921 = vsel %vm913, %v911, 0
      %v924 = vsel %vm913, %v912, 0
      %vm926 = vcmask 1041408
      %v928 = vsel %vm926, %v900, 0
      %930 = vmatprep.subr.bf16.mxu0 0
      %931 = vmatpush1.bf16.msra.mxu0 %v928
      %932 = vmatprep.subr.bf16.mxu0 0
      %933 = vmatpush1.bf16.msra.mxu0 0
      %934 = vmatprep.subr.bf16.mxu0 0
      %935 = vmatpush1.bf16.msra.mxu0 0
      %936 = vmatprep.subr.bf16.mxu0 0
      %937 = vmatpush1.bf16.msra.mxu0 0
      %938 = vmatprep.subr.bf16.mxu0 0
      %939 = vmatpush1.bf16.msra.mxu0 0
      %940 = vmatprep.subr.bf16.mxu0 0
      %941 = vmatpush1.bf16.msra.mxu0 0
      %942 = vmatprep.subr.bf16.mxu0 0
      %943 = vmatpush1.bf16.msra.mxu0 0
      %944 = vmatprep.subr.bf16.mxu0 0
      %945 = vmatpush1.bf16.msra.mxu0 0
      %946 = vmatprep.subr.bf16.mxu0 0
      %947 = vmatpush1.bf16.msra.mxu0 0
      %948 = vmatprep.subr.bf16.mxu0 0
      %949 = vmatpush1.bf16.msra.mxu0 0
      %950 = vmatprep.subr.bf16.mxu0 0
      %951 = vmatpush1.bf16.msra.mxu0 0
      %952 = vmatprep.subr.bf16.mxu0 0
      %953 = vmatpush1.bf16.msra.mxu0 0
      %954 = vmatprep.subr.bf16.mxu0 0
      %955 = vmatpush1.bf16.msra.mxu0 0
      %956 = vmatprep.subr.bf16.mxu0 0
      %957 = vmatpush1.bf16.msra.mxu0 0
      %958 = vmatprep.subr.bf16.mxu0 0
      %959 = vmatpush1.bf16.msra.mxu0 0
      %960 = vmatprep.subr.bf16.mxu0 0
      %961 = vmatpush1.bf16.msra.mxu0 0
      %962 = vmatprep.mubr.bf16.mxu0 0
      %963 = vmatmul.mubr.bf16.gmra.mrb[0].mxu0 %v915
      %v964 = vpop.f32.mrb[0].mxu0
      %v965 = vadd.f32 0.0, %v964
      %v966 = vpop.f32.mrb[0].mxu0
      %v967 = vpop.f32.mrb[0].mxu0
      %v968 = vadd.f32 0.0, %v967
      %v969 = vpop.f32.mrb[0].mxu0
      %970 = vmatprep.mubr.bf16.mxu0 0
      %971 = vmatmul.mubr.bf16.gmra.mrb[0].mxu0 %v918
      %v972 = vpop.f32.mrb[0].mxu0
      %v973 = vadd.f32 0.0, %v972
      %v974 = vpop.f32.mrb[0].mxu0
      %v975 = vpop.f32.mrb[0].mxu0
      %v976 = vadd.f32 0.0, %v975
      %v977 = vpop.f32.mrb[0].mxu0
      %978 = vmatprep.mubr.bf16.mxu0 0
      %979 = vmatmul.mubr.bf16.gmra.mrb[0].mxu0 %v921
      %v980 = vpop.f32.mrb[0].mxu0
      %v981 = vadd.f32 0.0, %v980
      %v982 = vpop.f32.mrb[0].mxu0
      %v983 = vpop.f32.mrb[0].mxu0
      %v984 = vadd.f32 0.0, %v983
      %v985 = vpop.f32.mrb[0].mxu0
      %986 = vmatprep.mubr.bf16.mxu0 0
      %987 = vmatmul.mubr.bf16.gmra.mrb[0].mxu0 %v924
      %v988 = vpop.f32.mrb[0].mxu0
      %v989 = vadd.f32 0.0, %v988
      %v990 = vpop.f32.mrb[0].mxu0
      %v991 = vpop.f32.mrb[0].mxu0
      %v992 = vadd.f32 0.0, %v991
      %v993 = vpop.f32.mrb[0].mxu0
      %994 = vdwg.mxu0
      %v1003 = vunpack.c.l.b16 %v787
      %v1004 = vunpack.c.l.b16 %v788
      %v1005 = vunpack.c.l.b16 %v789
      %v1006 = vunpack.c.l.b16 %v790
      %v1007 = vunpack.c.l.b16 %v791
      %v1008 = vunpack.c.l.b16 %v792
      %v1009 = vunpack.c.l.b16 %v793
      %v1010 = vunpack.c.l.b16 %v794
      %v1011 = vpack.c.b16 %v1004, %v1003
      %v1012 = vpack.c.b16 %v1006, %v1005
      %v1013 = vpack.c.b16 %v1008, %v1007
      %v1014 = vpack.c.b16 %v1010, %v1009
      %v1016 = vsel %vm913, %v1011, 0
      %v1019 = vsel %vm913, %v1012, 0
      %v1022 = vsel %vm913, %v1013, 0
      %v1025 = vsel %vm913, %v1014, 0
      %v1028 = vsel %vm926, %v795, 0
      %1030 = vmatprep.subr.bf16.mxu0 0
      %1031 = vmatpush1.bf16.msra.mxu0 %v1028
      %1032 = vmatprep.subr.bf16.mxu0 0
      %1033 = vmatpush1.bf16.msra.mxu0 0
      %1034 = vmatprep.subr.bf16.mxu0 0
      %1035 = vmatpush1.bf16.msra.mxu0 0
      %1036 = vmatprep.subr.bf16.mxu0 0
      %1037 = vmatpush1.bf16.msra.mxu0 0
      %1038 = vmatprep.subr.bf16.mxu0 0
      %1039 = vmatpush1.bf16.msra.mxu0 0
      %1040 = vmatprep.subr.bf16.mxu0 0
      %1041 = vmatpush1.bf16.msra.mxu0 0
      %1042 = vmatprep.subr.bf16.mxu0 0
      %1043 = vmatpush1.bf16.msra.mxu0 0
      %1044 = vmatprep.subr.bf16.mxu0 0
      %1045 = vmatpush1.bf16.msra.mxu0 0
      %1046 = vmatprep.subr.bf16.mxu0 0
      %1047 = vmatpush1.bf16.msra.mxu0 0
      %1048 = vmatprep.subr.bf16.mxu0 0
      %1049 = vmatpush1.bf16.msra.mxu0 0
      %1050 = vmatprep.subr.bf16.mxu0 0
      %1051 = vmatpush1.bf16.msra.mxu0 0
      %1052 = vmatprep.subr.bf16.mxu0 0
      %1053 = vmatpush1.bf16.msra.mxu0 0
      %1054 = vmatprep.subr.bf16.mxu0 0
      %1055 = vmatpush1.bf16.msra.mxu0 0
      %1056 = vmatprep.subr.bf16.mxu0 0
      %1057 = vmatpush1.bf16.msra.mxu0 0
      %1058 = vmatprep.subr.bf16.mxu0 0
      %1059 = vmatpush1.bf16.msra.mxu0 0
      %1060 = vmatprep.subr.bf16.mxu0 0
      %1061 = vmatpush1.bf16.msra.mxu0 0
      %1062 = vmatprep.mubr.bf16.mxu0 0
      %1063 = vmatmul.mubr.bf16.gmra.mrb[0].mxu0 %v1016
      %v1064 = vpop.f32.mrb[0].mxu0
      %v1065 = vadd.f32 %v965, %v1064
      %v1066 = vpop.f32.mrb[0].mxu0
      %v1067 = vpop.f32.mrb[0].mxu0
      %v1068 = vadd.f32 %v968, %v1067
      %v1069 = vpop.f32.mrb[0].mxu0
      %1070 = vmatprep.mubr.bf16.mxu0 0
      %1071 = vmatmul.mubr.bf16.gmra.mrb[0].mxu0 %v1019
      %v1072 = vpop.f32.mrb[0].mxu0
      %v1073 = vadd.f32 %v973, %v1072
      %v1074 = vpop.f32.mrb[0].mxu0
      %v1075 = vpop.f32.mrb[0].mxu0
      %v1076 = vadd.f32 %v976, %v1075
      %v1077 = vpop.f32.mrb[0].mxu0
      %1078 = vmatprep.mubr.bf16.mxu0 0
      %1079 = vmatmul.mubr.bf16.gmra.mrb[0].mxu0 %v1022
      %v1080 = vpop.f32.mrb[0].mxu0
      %v1081 = vadd.f32 %v981, %v1080
      %v1082 = vpop.f32.mrb[0].mxu0
      %v1083 = vpop.f32.mrb[0].mxu0
      %v1084 = vadd.f32 %v984, %v1083
      %v1085 = vpop.f32.mrb[0].mxu0
      %1086 = vmatprep.mubr.bf16.mxu0 0
      %1087 = vmatmul.mubr.bf16.gmra.mrb[0].mxu0 %v1025
      %v1088 = vpop.f32.mrb[0].mxu0
      %v1089 = vadd.f32 %v989, %v1088
      %v1090 = vpop.f32.mrb[0].mxu0
      %v1091 = vpop.f32.mrb[0].mxu0
      %v1092 = vadd.f32 %v992, %v1091
      %v1093 = vpop.f32.mrb[0].mxu0
      %1094 = vdwg.mxu0
      %v1095 = vld [vmem:[#allocation2] sm:$0xe]
      %v1096 = vld [vmem:[#allocation2 + $0xc] sm:$0xe]
      %v1097 = vld [vmem:[#allocation2 + $0x18] sm:$0xe]
      %v1098 = vld [vmem:[#allocation2 + $0x24] sm:$0xe]
      %vm1107 = vcmask 1042432
      %vm1108 = vcmask 1046532
      %vm1109 = vmor %vm1107, %vm1108
      %v1110 = vrot.slane %v1095, 5
      %v1111 = vrot.slane %v1110, 4
      %v1112 = vrot.slane %v788, 5
      %v1113 = vsel %vm1109, %v1111, %v1112
      %v1114 = vrot.slane %v1112, 4
      %v1115 = vrot.slane %v796, 5
      %v1116 = vsel %vm1109, %v1114, %v1115
      %v1117 = vrot.slane %v1096, 5
      %v1118 = vrot.slane %v1117, 4
      %v1119 = vrot.slane %v790, 5
      %v1120 = vsel %vm1109, %v1118, %v1119
      %v1121 = vrot.slane %v1119, 4
      %v1122 = vrot.slane %v797, 5
      %v1123 = vsel %vm1109, %v1121, %v1122
      %v1124 = vrot.slane %v1097, 5
      %v1125 = vrot.slane %v1124, 4
      %v1126 = vrot.slane %v792, 5
      %v1127 = vsel %vm1109, %v1125, %v1126
      %v1128 = vrot.slane %v1126, 4
      %v1129 = vrot.slane %v798, 5
      %v1130 = vsel %vm1109, %v1128, %v1129
      %v1131 = vrot.slane %v1098, 5
      %v1132 = vrot.slane %v1131, 4
      %v1133 = vrot.slane %v794, 5
      %v1134 = vsel %vm1109, %v1132, %v1133
      %v1135 = vrot.slane %v1133, 4
      %v1136 = vrot.slane %v799, 5
      %v1137 = vsel %vm1109, %v1135, %v1136
      %s1138 = scalar_lea.vmem %s3, 4
      %v1139 = vld [vmem:[%s1138] sm:$0x3]
      %v1140 = vunpack.c.l.b16 %v1113
      %v1141 = vunpack.c.l.b16 %v1116
      %v1142 = vunpack.c.l.b16 %v1120
      %v1143 = vunpack.c.l.b16 %v1123
      %v1144 = vunpack.c.l.b16 %v1127
      %v1145 = vunpack.c.l.b16 %v1130
      %v1146 = vunpack.c.l.b16 %v1134
      %v1147 = vunpack.c.l.b16 %v1137
      %v1148 = vpack.c.b16 %v1141, %v1140
      %v1149 = vpack.c.b16 %v1143, %v1142
      %v1150 = vpack.c.b16 %v1145, %v1144
      %v1151 = vpack.c.b16 %v1147, %v1146
      %v1153 = vsel %vm913, %v1148, 0
      %v1156 = vsel %vm913, %v1149, 0
      %v1159 = vsel %vm913, %v1150, 0
      %v1162 = vsel %vm913, %v1151, 0
      %v1165 = vsel %vm926, %v1139, 0
      %1167 = vmatprep.subr.bf16.mxu0 0
      %1168 = vmatpush1.bf16.msra.mxu0 %v1165
      %1169 = vmatprep.subr.bf16.mxu0 0
      %1170 = vmatpush1.bf16.msra.mxu0 0
      %1171 = vmatprep.subr.bf16.mxu0 0
      %1172 = vmatpush1.bf16.msra.mxu0 0
      %1173 = vmatprep.subr.bf16.mxu0 0
      %1174 = vmatpush1.bf16.msra.mxu0 0
      %1175 = vmatprep.subr.bf16.mxu0 0
      %1176 = vmatpush1.bf16.msra.mxu0 0
      %1177 = vmatprep.subr.bf16.mxu0 0
      %1178 = vmatpush1.bf16.msra.mxu0 0
      %1179 = vmatprep.subr.bf16.mxu0 0
      %1180 = vmatpush1.bf16.msra.mxu0 0
      %1181 = vmatprep.subr.bf16.mxu0 0
      %1182 = vmatpush1.bf16.msra.mxu0 0
      %1183 = vmatprep.subr.bf16.mxu0 0
      %1184 = vmatpush1.bf16.msra.mxu0 0
      %1185 = vmatprep.subr.bf16.mxu0 0
      %1186 = vmatpush1.bf16.msra.mxu0 0
      %1187 = vmatprep.subr.bf16.mxu0 0
      %1188 = vmatpush1.bf16.msra.mxu0 0
      %1189 = vmatprep.subr.bf16.mxu0 0
      %1190 = vmatpush1.bf16.msra.mxu0 0
      %1191 = vmatprep.subr.bf16.mxu0 0
      %1192 = vmatpush1.bf16.msra.mxu0 0
      %1193 = vmatprep.subr.bf16.mxu0 0
      %1194 = vmatpush1.bf16.msra.mxu0 0
      %1195 = vmatprep.subr.bf16.mxu0 0
      %1196 = vmatpush1.bf16.msra.mxu0 0
      %1197 = vmatprep.subr.bf16.mxu0 0
      %1198 = vmatpush1.bf16.msra.mxu0 0
      %1199 = vmatprep.mubr.bf16.mxu0 0
      %1200 = vmatmul.mubr.bf16.gmra.mrb[0].mxu0 %v1153
      %v1201 = vpop.f32.mrb[0].mxu0
      %v1202 = vadd.f32 0.0, %v1201
      %v1203 = vpop.f32.mrb[0].mxu0
      %v1204 = vpop.f32.mrb[0].mxu0
      %v1205 = vadd.f32 0.0, %v1204
      %v1206 = vpop.f32.mrb[0].mxu0
      %1207 = vmatprep.mubr.bf16.mxu0 0
      %1208 = vmatmul.mubr.bf16.gmra.mrb[0].mxu0 %v1156
      %v1209 = vpop.f32.mrb[0].mxu0
      %v1210 = vadd.f32 0.0, %v1209
      %v1211 = vpop.f32.mrb[0].mxu0
      %v1212 = vpop.f32.mrb[0].mxu0
      %v1213 = vadd.f32 0.0, %v1212
      %v1214 = vpop.f32.mrb[0].mxu0
      %1215 = vmatprep.mubr.bf16.mxu0 0
      %1216 = vmatmul.mubr.bf16.gmra.mrb[0].mxu0 %v1159
      %v1217 = vpop.f32.mrb[0].mxu0
      %v1218 = vadd.f32 0.0, %v1217
      %v1219 = vpop.f32.mrb[0].mxu0
      %v1220 = vpop.f32.mrb[0].mxu0
      %v1221 = vadd.f32 0.0, %v1220
      %v1222 = vpop.f32.mrb[0].mxu0
      %1223 = vmatprep.mubr.bf16.mxu0 0
      %1224 = vmatmul.mubr.bf16.gmra.mrb[0].mxu0 %v1162
      %v1225 = vpop.f32.mrb[0].mxu0
      %v1226 = vadd.f32 0.0, %v1225
      %v1227 = vpop.f32.mrb[0].mxu0
      %v1228 = vpop.f32.mrb[0].mxu0
      %v1229 = vadd.f32 0.0, %v1228
      %v1230 = vpop.f32.mrb[0].mxu0
      %1231 = vdwg.mxu0
      %v1232 = vadd.f32 %v1065, %v1202
      %v1233 = vadd.f32 %v1068, %v1205
      %v1234 = vadd.f32 %v1073, %v1210
      %v1235 = vadd.f32 %v1076, %v1213
      %v1236 = vadd.f32 %v1081, %v1218
      %v1237 = vadd.f32 %v1084, %v1221
      %v1238 = vadd.f32 %v1089, %v1226
      %v1239 = vadd.f32 %v1092, %v1229
      %v1240 = vld [vmem:[%s662] sm:$0xf]
      %v1241 = vld [vmem:[%s662 + $0x4] sm:$0xf]
      %v1242 = vld [vmem:[%s662 + $0xc] sm:$0xf]
      %v1243 = vld [vmem:[%s662 + $0x10] sm:$0xf]
      %v1244 = vld [vmem:[%s662 + $0x18] sm:$0xf]
      %v1245 = vld [vmem:[%s662 + $0x1c] sm:$0xf]
      %v1246 = vld [vmem:[%s662 + $0x24] sm:$0xf]
      %v1247 = vld [vmem:[%s662 + $0x28] sm:$0xf]
      %s1248 = scalar_lea.vmem %s3, 6
      %v1249 = vld [vmem:[%s1248] sm:$0x3]
      %v1258 = vunpack.c.l.b16 %v1240
      %v1259 = vunpack.c.l.b16 %v1241
      %v1260 = vunpack.c.l.b16 %v1242
      %v1261 = vunpack.c.l.b16 %v1243
      %v1262 = vunpack.c.l.b16 %v1244
      %v1263 = vunpack.c.l.b16 %v1245
      %v1264 = vunpack.c.l.b16 %v1246
      %v1265 = vunpack.c.l.b16 %v1247
      %v1266 = vpack.c.b16 %v1259, %v1258
      %v1267 = vpack.c.b16 %v1261, %v1260
      %v1268 = vpack.c.b16 %v1263, %v1262
      %v1269 = vpack.c.b16 %v1265, %v1264
      %v1271 = vsel %vm913, %v1266, 0
      %v1274 = vsel %vm913, %v1267, 0
      %v1277 = vsel %vm913, %v1268, 0
      %v1280 = vsel %vm913, %v1269, 0
      %v1283 = vsel %vm926, %v1249, 0
      %1285 = vmatprep.subr.bf16.mxu0 0
      %1286 = vmatpush1.bf16.msra.mxu0 %v1283
      %1287 = vmatprep.subr.bf16.mxu0 0
      %1288 = vmatpush1.bf16.msra.mxu0 0
      %1289 = vmatprep.subr.bf16.mxu0 0
      %1290 = vmatpush1.bf16.msra.mxu0 0
      %1291 = vmatprep.subr.bf16.mxu0 0
      %1292 = vmatpush1.bf16.msra.mxu0 0
      %1293 = vmatprep.subr.bf16.mxu0 0
      %1294 = vmatpush1.bf16.msra.mxu0 0
      %1295 = vmatprep.subr.bf16.mxu0 0
      %1296 = vmatpush1.bf16.msra.mxu0 0
      %1297 = vmatprep.subr.bf16.mxu0 0
      %1298 = vmatpush1.bf16.msra.mxu0 0
      %1299 = vmatprep.subr.bf16.mxu0 0
      %1300 = vmatpush1.bf16.msra.mxu0 0
      %1301 = vmatprep.subr.bf16.mxu0 0
      %1302 = vmatpush1.bf16.msra.mxu0 0
      %1303 = vmatprep.subr.bf16.mxu0 0
      %1304 = vmatpush1.bf16.msra.mxu0 0
      %1305 = vmatprep.subr.bf16.mxu0 0
      %1306 = vmatpush1.bf16.msra.mxu0 0
      %1307 = vmatprep.subr.bf16.mxu0 0
      %1308 = vmatpush1.bf16.msra.mxu0 0
      %1309 = vmatprep.subr.bf16.mxu0 0
      %1310 = vmatpush1.bf16.msra.mxu0 0
      %1311 = vmatprep.subr.bf16.mxu0 0
      %1312 = vmatpush1.bf16.msra.mxu0 0
      %1313 = vmatprep.subr.bf16.mxu0 0
      %1314 = vmatpush1.bf16.msra.mxu0 0
      %1315 = vmatprep.subr.bf16.mxu0 0
      %1316 = vmatpush1.bf16.msra.mxu0 0
      %1317 = vmatprep.mubr.bf16.mxu0 0
      %1318 = vmatmul.mubr.bf16.gmra.mrb[0].mxu0 %v1271
      %v1319 = vpop.f32.mrb[0].mxu0
      %v1320 = vadd.f32 0.0, %v1319
      %v1321 = vpop.f32.mrb[0].mxu0
      %v1322 = vpop.f32.mrb[0].mxu0
      %v1323 = vadd.f32 0.0, %v1322
      %v1324 = vpop.f32.mrb[0].mxu0
      %1325 = vmatprep.mubr.bf16.mxu0 0
      %1326 = vmatmul.mubr.bf16.gmra.mrb[0].mxu0 %v1274
      %v1327 = vpop.f32.mrb[0].mxu0
      %v1328 = vadd.f32 0.0, %v1327
      %v1329 = vpop.f32.mrb[0].mxu0
      %v1330 = vpop.f32.mrb[0].mxu0
      %v1331 = vadd.f32 0.0, %v1330
      %v1332 = vpop.f32.mrb[0].mxu0
      %1333 = vmatprep.mubr.bf16.mxu0 0
      %1334 = vmatmul.mubr.bf16.gmra.mrb[0].mxu0 %v1277
      %v1335 = vpop.f32.mrb[0].mxu0
      %v1336 = vadd.f32 0.0, %v1335
      %v1337 = vpop.f32.mrb[0].mxu0
      %v1338 = vpop.f32.mrb[0].mxu0
      %v1339 = vadd.f32 0.0, %v1338
      %v1340 = vpop.f32.mrb[0].mxu0
      %1341 = vmatprep.mubr.bf16.mxu0 0
      %1342 = vmatmul.mubr.bf16.gmra.mrb[0].mxu0 %v1280
      %v1343 = vpop.f32.mrb[0].mxu0
      %v1344 = vadd.f32 0.0, %v1343
      %v1345 = vpop.f32.mrb[0].mxu0
      %v1346 = vpop.f32.mrb[0].mxu0
      %v1347 = vadd.f32 0.0, %v1346
      %v1348 = vpop.f32.mrb[0].mxu0
      %1349 = vdwg.mxu0
      %v1350 = vadd.f32 %v1232, %v1320
      %v1351 = vadd.f32 %v1233, %v1323
      %v1352 = vadd.f32 %v1234, %v1328
      %v1353 = vadd.f32 %v1235, %v1331
      %v1354 = vadd.f32 %v1236, %v1336
      %v1355 = vadd.f32 %v1237, %v1339
      %v1356 = vadd.f32 %v1238, %v1344
      %v1357 = vadd.f32 %v1239, %v1347
      %v1358 = vld [vmem:[%s662] sm:$0xf]
      %v1359 = vld [vmem:[%s662 + $0x4] sm:$0xf]
      %v1360 = vld [vmem:[%s662 + $0x8] sm:$0x1]
      %v1361 = vld [vmem:[%s662 + $0xc] sm:$0xf]
      %v1362 = vld [vmem:[%s662 + $0x10] sm:$0xf]
      %v1363 = vld [vmem:[%s662 + $0x14] sm:$0x1]
      %v1364 = vld [vmem:[%s662 + $0x18] sm:$0xf]
      %v1365 = vld [vmem:[%s662 + $0x1c] sm:$0xf]
      %v1366 = vld [vmem:[%s662 + $0x20] sm:$0x1]
      %v1367 = vld [vmem:[%s662 + $0x24] sm:$0xf]
      %v1368 = vld [vmem:[%s662 + $0x28] sm:$0xf]
      %v1369 = vld [vmem:[%s662 + $0x2c] sm:$0x1]
      %v1371 = vshrl.u32 %v1358, 16
      %v1373 = vrot.slane %v1371, 4
      %v1374 = vshll.u32 %v1358, 16
      %v1376 = vrot.slane %v1374, 5
      %v1377 = vor.u32 %v1373, %v1376
      %v1378 = vrot.slane %v1377, 4
      %v1380 = vshll.u32 %v1359, 16
      %v1382 = vrot.slane %v1380, 5
      %v1383 = vsel %vm802, %v1378, %v1382
      %v1384 = vshrl.u32 %v1359, 16
      %v1386 = vrot.slane %v1384, 4
      %v1387 = vor.u32 %v1386, %v1382
      %v1388 = vrot.slane %v1387, 4
      %v1390 = vshll.u32 %v1360, 16
      %v1392 = vrot.slane %v1390, 5
      %v1393 = vsel %vm802, %v1388, %v1392
      %v1395 = vshrl.u32 %v1361, 16
      %v1397 = vrot.slane %v1395, 4
      %v1398 = vshll.u32 %v1361, 16
      %v1400 = vrot.slane %v1398, 5
      %v1401 = vor.u32 %v1397, %v1400
      %v1402 = vrot.slane %v1401, 4
      %v1404 = vshll.u32 %v1362, 16
      %v1406 = vrot.slane %v1404, 5
      %v1407 = vsel %vm802, %v1402, %v1406
      %v1408 = vshrl.u32 %v1362, 16
      %v1410 = vrot.slane %v1408, 4
      %v1411 = vor.u32 %v1410, %v1406
      %v1412 = vrot.slane %v1411, 4
      %v1414 = vshll.u32 %v1363, 16
      %v1416 = vrot.slane %v1414, 5
      %v1417 = vsel %vm802, %v1412, %v1416
      %v1419 = vshrl.u32 %v1364, 16
      %v1421 = vrot.slane %v1419, 4
      %v1422 = vshll.u32 %v1364, 16
      %v1424 = vrot.slane %v1422, 5
      %v1425 = vor.u32 %v1421, %v1424
      %v1426 = vrot.slane %v1425, 4
      %v1428 = vshll.u32 %v1365, 16
      %v1430 = vrot.slane %v1428, 5
      %v1431 = vsel %vm802, %v1426, %v1430
      %v1432 = vshrl.u32 %v1365, 16
      %v1434 = vrot.slane %v1432, 4
      %v1435 = vor.u32 %v1434, %v1430
      %v1436 = vrot.slane %v1435, 4
      %v1438 = vshll.u32 %v1366, 16
      %v1440 = vrot.slane %v1438, 5
      %v1441 = vsel %vm802, %v1436, %v1440
      %v1443 = vshrl.u32 %v1367, 16
      %v1445 = vrot.slane %v1443, 4
      %v1446 = vshll.u32 %v1367, 16
      %v1448 = vrot.slane %v1446, 5
      %v1449 = vor.u32 %v1445, %v1448
      %v1450 = vrot.slane %v1449, 4
      %v1452 = vshll.u32 %v1368, 16
      %v1454 = vrot.slane %v1452, 5
      %v1455 = vsel %vm802, %v1450, %v1454
      %v1456 = vshrl.u32 %v1368, 16
      %v1458 = vrot.slane %v1456, 4
      %v1459 = vor.u32 %v1458, %v1454
      %v1460 = vrot.slane %v1459, 4
      %v1462 = vshll.u32 %v1369, 16
      %v1464 = vrot.slane %v1462, 5
      %v1465 = vsel %vm802, %v1460, %v1464
      %s1466 = scalar_lea.vmem %s3, 8
      %v1467 = vld [vmem:[%s1466] sm:$0x3]
      %v1468 = vunpack.c.l.b16 %v1383
      %v1469 = vunpack.c.l.b16 %v1393
      %v1470 = vunpack.c.l.b16 %v1407
      %v1471 = vunpack.c.l.b16 %v1417
      %v1472 = vunpack.c.l.b16 %v1431
      %v1473 = vunpack.c.l.b16 %v1441
      %v1474 = vunpack.c.l.b16 %v1455
      %v1475 = vunpack.c.l.b16 %v1465
      %v1476 = vpack.c.b16 %v1469, %v1468
      %v1477 = vpack.c.b16 %v1471, %v1470
      %v1478 = vpack.c.b16 %v1473, %v1472
      %v1479 = vpack.c.b16 %v1475, %v1474
      %v1481 = vsel %vm913, %v1476, 0
      %v1484 = vsel %vm913, %v1477, 0
      %v1487 = vsel %vm913, %v1478, 0
      %v1490 = vsel %vm913, %v1479, 0
      %v1493 = vsel %vm926, %v1467, 0
      %1495 = vmatprep.subr.bf16.mxu0 0
      %1496 = vmatpush1.bf16.msra.mxu0 %v1493
      %1497 = vmatprep.subr.bf16.mxu0 0
      %1498 = vmatpush1.bf16.msra.mxu0 0
      %1499 = vmatprep.subr.bf16.mxu0 0
      %1500 = vmatpush1.bf16.msra.mxu0 0
      %1501 = vmatprep.subr.bf16.mxu0 0
      %1502 = vmatpush1.bf16.msra.mxu0 0
      %1503 = vmatprep.subr.bf16.mxu0 0
      %1504 = vmatpush1.bf16.msra.mxu0 0
      %1505 = vmatprep.subr.bf16.mxu0 0
      %1506 = vmatpush1.bf16.msra.mxu0 0
      %1507 = vmatprep.subr.bf16.mxu0 0
      %1508 = vmatpush1.bf16.msra.mxu0 0
      %1509 = vmatprep.subr.bf16.mxu0 0
      %1510 = vmatpush1.bf16.msra.mxu0 0
      %1511 = vmatprep.subr.bf16.mxu0 0
      %1512 = vmatpush1.bf16.msra.mxu0 0
      %1513 = vmatprep.subr.bf16.mxu0 0
      %1514 = vmatpush1.bf16.msra.mxu0 0
      %1515 = vmatprep.subr.bf16.mxu0 0
      %1516 = vmatpush1.bf16.msra.mxu0 0
      %1517 = vmatprep.subr.bf16.mxu0 0
      %1518 = vmatpush1.bf16.msra.mxu0 0
      %1519 = vmatprep.subr.bf16.mxu0 0
      %1520 = vmatpush1.bf16.msra.mxu0 0
      %1521 = vmatprep.subr.bf16.mxu0 0
      %1522 = vmatpush1.bf16.msra.mxu0 0
      %1523 = vmatprep.subr.bf16.mxu0 0
      %1524 = vmatpush1.bf16.msra.mxu0 0
      %1525 = vmatprep.subr.bf16.mxu0 0
      %1526 = vmatpush1.bf16.msra.mxu0 0
      %1527 = vmatprep.mubr.bf16.mxu0 0
      %1528 = vmatmul.mubr.bf16.gmra.mrb[0].mxu0 %v1481
      %v1529 = vpop.f32.mrb[0].mxu0
      %v1530 = vadd.f32 0.0, %v1529
      %v1531 = vpop.f32.mrb[0].mxu0
      %v1532 = vpop.f32.mrb[0].mxu0
      %v1533 = vadd.f32 0.0, %v1532
      %v1534 = vpop.f32.mrb[0].mxu0
      %1535 = vmatprep.mubr.bf16.mxu0 0
      %1536 = vmatmul.mubr.bf16.gmra.mrb[0].mxu0 %v1484
      %v1537 = vpop.f32.mrb[0].mxu0
      %v1538 = vadd.f32 0.0, %v1537
      %v1539 = vpop.f32.mrb[0].mxu0
      %v1540 = vpop.f32.mrb[0].mxu0
      %v1541 = vadd.f32 0.0, %v1540
      %v1542 = vpop.f32.mrb[0].mxu0
      %1543 = vmatprep.mubr.bf16.mxu0 0
      %1544 = vmatmul.mubr.bf16.gmra.mrb[0].mxu0 %v1487
      %v1545 = vpop.f32.mrb[0].mxu0
      %v1546 = vadd.f32 0.0, %v1545
      %v1547 = vpop.f32.mrb[0].mxu0
      %v1548 = vpop.f32.mrb[0].mxu0
      %v1549 = vadd.f32 0.0, %v1548
      %v1550 = vpop.f32.mrb[0].mxu0
      %1551 = vmatprep.mubr.bf16.mxu0 0
      %1552 = vmatmul.mubr.bf16.gmra.mrb[0].mxu0 %v1490
      %v1553 = vpop.f32.mrb[0].mxu0
      %v1554 = vadd.f32 0.0, %v1553
      %v1555 = vpop.f32.mrb[0].mxu0
      %v1556 = vpop.f32.mrb[0].mxu0
      %v1557 = vadd.f32 0.0, %v1556
      %v1558 = vpop.f32.mrb[0].mxu0
      %1559 = vdwg.mxu0
      %v1560 = vadd.f32 %v1350, %v1530
      %v1561 = vadd.f32 %v1351, %v1533
      %v1562 = vadd.f32 %v1352, %v1538
      %v1563 = vadd.f32 %v1353, %v1541
      %v1564 = vadd.f32 %v1354, %v1546
      %v1565 = vadd.f32 %v1355, %v1549
      %v1566 = vadd.f32 %v1356, %v1554
      %v1567 = vadd.f32 %v1357, %v1557
      %v1568 = vld [vmem:[%s662] sm:$0xe]
      %v1569 = vld [vmem:[%s662 + $0xc] sm:$0xe]
      %v1570 = vld [vmem:[%s662 + $0x18] sm:$0xe]
      %v1571 = vld [vmem:[%s662 + $0x24] sm:$0xe]
      %v1584 = vrot.slane %v1568, 5
      %v1585 = vrot.slane %v1584, 4
      %v1586 = vrot.slane %v1359, 5
      %v1587 = vsel %vm1109, %v1585, %v1586
      %v1588 = vrot.slane %v1586, 4
      %v1589 = vrot.slane %v1360, 5
      %v1590 = vsel %vm1109, %v1588, %v1589
      %v1591 = vrot.slane %v1569, 5
      %v1592 = vrot.slane %v1591, 4
      %v1593 = vrot.slane %v1362, 5
      %v1594 = vsel %vm1109, %v1592, %v1593
      %v1595 = vrot.slane %v1593, 4
      %v1596 = vrot.slane %v1363, 5
      %v1597 = vsel %vm1109, %v1595, %v1596
      %v1598 = vrot.slane %v1570, 5
      %v1599 = vrot.slane %v1598, 4
      %v1600 = vrot.slane %v1365, 5
      %v1601 = vsel %vm1109, %v1599, %v1600
      %v1602 = vrot.slane %v1600, 4
      %v1603 = vrot.slane %v1366, 5
      %v1604 = vsel %vm1109, %v1602, %v1603
      %v1605 = vrot.slane %v1571, 5
      %v1606 = vrot.slane %v1605, 4
      %v1607 = vrot.slane %v1368, 5
      %v1608 = vsel %vm1109, %v1606, %v1607
      %v1609 = vrot.slane %v1607, 4
      %v1610 = vrot.slane %v1369, 5
      %v1611 = vsel %vm1109, %v1609, %v1610
      %s1612 = scalar_lea.vmem %s3, 10
      %v1613 = vld [vmem:[%s1612] sm:$0x3]
      %v1614 = vunpack.c.l.b16 %v1587
      %v1615 = vunpack.c.l.b16 %v1590
      %v1616 = vunpack.c.l.b16 %v1594
      %v1617 = vunpack.c.l.b16 %v1597
      %v1618 = vunpack.c.l.b16 %v1601
      %v1619 = vunpack.c.l.b16 %v1604
      %v1620 = vunpack.c.l.b16 %v1608
      %v1621 = vunpack.c.l.b16 %v1611
      %v1622 = vpack.c.b16 %v1615, %v1614
      %v1623 = vpack.c.b16 %v1617, %v1616
      %v1624 = vpack.c.b16 %v1619, %v1618
      %v1625 = vpack.c.b16 %v1621, %v1620
      %v1627 = vsel %vm913, %v1622, 0
      %v1630 = vsel %vm913, %v1623, 0
      %v1633 = vsel %vm913, %v1624, 0
      %v1636 = vsel %vm913, %v1625, 0
      %v1639 = vsel %vm926, %v1613, 0
      %1641 = vmatprep.subr.bf16.mxu0 0
      %1642 = vmatpush1.bf16.msra.mxu0 %v1639
      %1643 = vmatprep.subr.bf16.mxu0 0
      %1644 = vmatpush1.bf16.msra.mxu0 0
      %1645 = vmatprep.subr.bf16.mxu0 0
      %1646 = vmatpush1.bf16.msra.mxu0 0
      %1647 = vmatprep.subr.bf16.mxu0 0
      %1648 = vmatpush1.bf16.msra.mxu0 0
      %1649 = vmatprep.subr.bf16.mxu0 0
      %1650 = vmatpush1.bf16.msra.mxu0 0
      %1651 = vmatprep.subr.bf16.mxu0 0
      %1652 = vmatpush1.bf16.msra.mxu0 0
      %1653 = vmatprep.subr.bf16.mxu0 0
      %1654 = vmatpush1.bf16.msra.mxu0 0
      %1655 = vmatprep.subr.bf16.mxu0 0
      %1656 = vmatpush1.bf16.msra.mxu0 0
      %1657 = vmatprep.subr.bf16.mxu0 0
      %1658 = vmatpush1.bf16.msra.mxu0 0
      %1659 = vmatprep.subr.bf16.mxu0 0
      %1660 = vmatpush1.bf16.msra.mxu0 0
      %1661 = vmatprep.subr.bf16.mxu0 0
      %1662 = vmatpush1.bf16.msra.mxu0 0
      %1663 = vmatprep.subr.bf16.mxu0 0
      %1664 = vmatpush1.bf16.msra.mxu0 0
      %1665 = vmatprep.subr.bf16.mxu0 0
      %1666 = vmatpush1.bf16.msra.mxu0 0
      %1667 = vmatprep.subr.bf16.mxu0 0
      %1668 = vmatpush1.bf16.msra.mxu0 0
      %1669 = vmatprep.subr.bf16.mxu0 0
      %1670 = vmatpush1.bf16.msra.mxu0 0
      %1671 = vmatprep.subr.bf16.mxu0 0
      %1672 = vmatpush1.bf16.msra.mxu0 0
      %1673 = vmatprep.mubr.bf16.mxu0 0
      %1674 = vmatmul.mubr.bf16.gmra.mrb[0].mxu0 %v1627
      %v1675 = vpop.f32.mrb[0].mxu0
      %v1676 = vadd.f32 0.0, %v1675
      %v1677 = vpop.f32.mrb[0].mxu0
      %v1678 = vpop.f32.mrb[0].mxu0
      %v1679 = vadd.f32 0.0, %v1678
      %v1680 = vpop.f32.mrb[0].mxu0
      %1681 = vmatprep.mubr.bf16.mxu0 0
      %1682 = vmatmul.mubr.bf16.gmra.mrb[0].mxu0 %v1630
      %v1683 = vpop.f32.mrb[0].mxu0
      %v1684 = vadd.f32 0.0, %v1683
      %v1685 = vpop.f32.mrb[0].mxu0
      %v1686 = vpop.f32.mrb[0].mxu0
      %v1687 = vadd.f32 0.0, %v1686
      %v1688 = vpop.f32.mrb[0].mxu0
      %1689 = vmatprep.mubr.bf16.mxu0 0
      %1690 = vmatmul.mubr.bf16.gmra.mrb[0].mxu0 %v1633
      %v1691 = vpop.f32.mrb[0].mxu0
      %v1692 = vadd.f32 0.0, %v1691
      %v1693 = vpop.f32.mrb[0].mxu0
      %v1694 = vpop.f32.mrb[0].mxu0
      %v1695 = vadd.f32 0.0, %v1694
      %v1696 = vpop.f32.mrb[0].mxu0
      %1697 = vmatprep.mubr.bf16.mxu0 0
      %1698 = vmatmul.mubr.bf16.gmra.mrb[0].mxu0 %v1636
      %v1699 = vpop.f32.mrb[0].mxu0
      %v1700 = vadd.f32 0.0, %v1699
      %v1701 = vpop.f32.mrb[0].mxu0
      %v1702 = vpop.f32.mrb[0].mxu0
      %v1703 = vadd.f32 0.0, %v1702
      %v1704 = vpop.f32.mrb[0].mxu0
      %1705 = vdwg.mxu0
      %v1706 = vadd.f32 %v1560, %v1676
      %v1707 = vadd.f32 %v1561, %v1679
      %v1708 = vadd.f32 %v1562, %v1684
      %v1709 = vadd.f32 %v1563, %v1687
      %v1710 = vadd.f32 %v1564, %v1692
      %v1711 = vadd.f32 %v1565, %v1695
      %v1712 = vadd.f32 %v1566, %v1700
      %v1713 = vadd.f32 %v1567, %v1703
      %s1714 = scalar_lea.vmem [#allocation2], 24
      %v1715 = vld [vmem:[%s1714] sm:$0xf]
      %v1716 = vld [vmem:[%s1714 + $0x4] sm:$0xf]
      %v1717 = vld [vmem:[%s1714 + $0xc] sm:$0xf]
      %v1718 = vld [vmem:[%s1714 + $0x10] sm:$0xf]
      %v1719 = vld [vmem:[%s1714 + $0x18] sm:$0xf]
      %v1720 = vld [vmem:[%s1714 + $0x1c] sm:$0xf]
      %v1721 = vld [vmem:[%s1714 + $0x24] sm:$0xf]
      %v1722 = vld [vmem:[%s1714 + $0x28] sm:$0xf]
      %s1723 = scalar_lea.vmem %s3, 12
      %v1724 = vld [vmem:[%s1723] sm:$0x3]
      %v1733 = vunpack.c.l.b16 %v1715
      %v1734 = vunpack.c.l.b16 %v1716
      %v1735 = vunpack.c.l.b16 %v1717
      %v1736 = vunpack.c.l.b16 %v1718
      %v1737 = vunpack.c.l.b16 %v1719
      %v1738 = vunpack.c.l.b16 %v1720
      %v1739 = vunpack.c.l.b16 %v1721
      %v1740 = vunpack.c.l.b16 %v1722
      %v1741 = vpack.c.b16 %v1734, %v1733
      %v1742 = vpack.c.b16 %v1736, %v1735
      %v1743 = vpack.c.b16 %v1738, %v1737
      %v1744 = vpack.c.b16 %v1740, %v1739
      %v1746 = vsel %vm913, %v1741, 0
      %v1749 = vsel %vm913, %v1742, 0
      %v1752 = vsel %vm913, %v1743, 0
      %v1755 = vsel %vm913, %v1744, 0
      %v1758 = vsel %vm926, %v1724, 0
      %1760 = vmatprep.subr.bf16.mxu0 0
      %1761 = vmatpush1.bf16.msra.mxu0 %v1758
      %1762 = vmatprep.subr.bf16.mxu0 0
      %1763 = vmatpush1.bf16.msra.mxu0 0
      %1764 = vmatprep.subr.bf16.mxu0 0
      %1765 = vmatpush1.bf16.msra.mxu0 0
      %1766 = vmatprep.subr.bf16.mxu0 0
      %1767 = vmatpush1.bf16.msra.mxu0 0
      %1768 = vmatprep.subr.bf16.mxu0 0
      %1769 = vmatpush1.bf16.msra.mxu0 0
      %1770 = vmatprep.subr.bf16.mxu0 0
      %1771 = vmatpush1.bf16.msra.mxu0 0
      %1772 = vmatprep.subr.bf16.mxu0 0
      %1773 = vmatpush1.bf16.msra.mxu0 0
      %1774 = vmatprep.subr.bf16.mxu0 0
      %1775 = vmatpush1.bf16.msra.mxu0 0
      %1776 = vmatprep.subr.bf16.mxu0 0
      %1777 = vmatpush1.bf16.msra.mxu0 0
      %1778 = vmatprep.subr.bf16.mxu0 0
      %1779 = vmatpush1.bf16.msra.mxu0 0
      %1780 = vmatprep.subr.bf16.mxu0 0
      %1781 = vmatpush1.bf16.msra.mxu0 0
      %1782 = vmatprep.subr.bf16.mxu0 0
      %1783 = vmatpush1.bf16.msra.mxu0 0
      %1784 = vmatprep.subr.bf16.mxu0 0
      %1785 = vmatpush1.bf16.msra.mxu0 0
      %1786 = vmatprep.subr.bf16.mxu0 0
      %1787 = vmatpush1.bf16.msra.mxu0 0
      %1788 = vmatprep.subr.bf16.mxu0 0
      %1789 = vmatpush1.bf16.msra.mxu0 0
      %1790 = vmatprep.subr.bf16.mxu0 0
      %1791 = vmatpush1.bf16.msra.mxu0 0
      %1792 = vmatprep.mubr.bf16.mxu0 0
      %1793 = vmatmul.mubr.bf16.gmra.mrb[0].mxu0 %v1746
      %v1794 = vpop.f32.mrb[0].mxu0
      %v1795 = vadd.f32 0.0, %v1794
      %v1796 = vpop.f32.mrb[0].mxu0
      %v1797 = vpop.f32.mrb[0].mxu0
      %v1798 = vadd.f32 0.0, %v1797
      %v1799 = vpop.f32.mrb[0].mxu0
      %1800 = vmatprep.mubr.bf16.mxu0 0
      %1801 = vmatmul.mubr.bf16.gmra.mrb[0].mxu0 %v1749
      %v1802 = vpop.f32.mrb[0].mxu0
      %v1803 = vadd.f32 0.0, %v1802
      %v1804 = vpop.f32.mrb[0].mxu0
      %v1805 = vpop.f32.mrb[0].mxu0
      %v1806 = vadd.f32 0.0, %v1805
      %v1807 = vpop.f32.mrb[0].mxu0
      %1808 = vmatprep.mubr.bf16.mxu0 0
      %1809 = vmatmul.mubr.bf16.gmra.mrb[0].mxu0 %v1752
      %v1810 = vpop.f32.mrb[0].mxu0
      %v1811 = vadd.f32 0.0, %v1810
      %v1812 = vpop.f32.mrb[0].mxu0
      %v1813 = vpop.f32.mrb[0].mxu0
      %v1814 = vadd.f32 0.0, %v1813
      %v1815 = vpop.f32.mrb[0].mxu0
      %1816 = vmatprep.mubr.bf16.mxu0 0
      %1817 = vmatmul.mubr.bf16.gmra.mrb[0].mxu0 %v1755
      %v1818 = vpop.f32.mrb[0].mxu0
      %v1819 = vadd.f32 0.0, %v1818
      %v1820 = vpop.f32.mrb[0].mxu0
      %v1821 = vpop.f32.mrb[0].mxu0
      %v1822 = vadd.f32 0.0, %v1821
      %v1823 = vpop.f32.mrb[0].mxu0
      %1824 = vdwg.mxu0
      %v1825 = vadd.f32 %v1706, %v1795
      %v1826 = vadd.f32 %v1707, %v1798
      %v1827 = vadd.f32 %v1708, %v1803
      %v1828 = vadd.f32 %v1709, %v1806
      %v1829 = vadd.f32 %v1710, %v1811
      %v1830 = vadd.f32 %v1711, %v1814
      %v1831 = vadd.f32 %v1712, %v1819
      %v1832 = vadd.f32 %v1713, %v1822
      %v1833 = vld [vmem:[%s1714] sm:$0xf]
      %v1834 = vld [vmem:[%s1714 + $0x4] sm:$0xf]
      %v1835 = vld [vmem:[%s1714 + $0x8] sm:$0x1]
      %v1836 = vld [vmem:[%s1714 + $0xc] sm:$0xf]
      %v1837 = vld [vmem:[%s1714 + $0x10] sm:$0xf]
      %v1838 = vld [vmem:[%s1714 + $0x14] sm:$0x1]
      %v1839 = vld [vmem:[%s1714 + $0x18] sm:$0xf]
      %v1840 = vld [vmem:[%s1714 + $0x1c] sm:$0xf]
      %v1841 = vld [vmem:[%s1714 + $0x20] sm:$0x1]
      %v1842 = vld [vmem:[%s1714 + $0x24] sm:$0xf]
      %v1843 = vld [vmem:[%s1714 + $0x28] sm:$0xf]
      %v1844 = vld [vmem:[%s1714 + $0x2c] sm:$0x1]
      %v1846 = vshrl.u32 %v1833, 16
      %v1848 = vrot.slane %v1846, 4
      %v1849 = vshll.u32 %v1833, 16
      %v1851 = vrot.slane %v1849, 5
      %v1852 = vor.u32 %v1848, %v1851
      %v1853 = vrot.slane %v1852, 4
      %v1855 = vshll.u32 %v1834, 16
      %v1857 = vrot.slane %v1855, 5
      %v1858 = vsel %vm802, %v1853, %v1857
      %v1859 = vshrl.u32 %v1834, 16
      %v1861 = vrot.slane %v1859, 4
      %v1862 = vor.u32 %v1861, %v1857
      %v1863 = vrot.slane %v1862, 4
      %v1865 = vshll.u32 %v1835, 16
      %v1867 = vrot.slane %v1865, 5
      %v1868 = vsel %vm802, %v1863, %v1867
      %v1870 = vshrl.u32 %v1836, 16
      %v1872 = vrot.slane %v1870, 4
      %v1873 = vshll.u32 %v1836, 16
      %v1875 = vrot.slane %v1873, 5
      %v1876 = vor.u32 %v1872, %v1875
      %v1877 = vrot.slane %v1876, 4
      %v1879 = vshll.u32 %v1837, 16
      %v1881 = vrot.slane %v1879, 5
      %v1882 = vsel %vm802, %v1877, %v1881
      %v1883 = vshrl.u32 %v1837, 16
      %v1885 = vrot.slane %v1883, 4
      %v1886 = vor.u32 %v1885, %v1881
      %v1887 = vrot.slane %v1886, 4
      %v1889 = vshll.u32 %v1838, 16
      %v1891 = vrot.slane %v1889, 5
      %v1892 = vsel %vm802, %v1887, %v1891
      %v1894 = vshrl.u32 %v1839, 16
      %v1896 = vrot.slane %v1894, 4
      %v1897 = vshll.u32 %v1839, 16
      %v1899 = vrot.slane %v1897, 5
      %v1900 = vor.u32 %v1896, %v1899
      %v1901 = vrot.slane %v1900, 4
      %v1903 = vshll.u32 %v1840, 16
      %v1905 = vrot.slane %v1903, 5
      %v1906 = vsel %vm802, %v1901, %v1905
      %v1907 = vshrl.u32 %v1840, 16
      %v1909 = vrot.slane %v1907, 4
      %v1910 = vor.u32 %v1909, %v1905
      %v1911 = vrot.slane %v1910, 4
      %v1913 = vshll.u32 %v1841, 16
      %v1915 = vrot.slane %v1913, 5
      %v1916 = vsel %vm802, %v1911, %v1915
      %v1918 = vshrl.u32 %v1842, 16
      %v1920 = vrot.slane %v1918, 4
      %v1921 = vshll.u32 %v1842, 16
      %v1923 = vrot.slane %v1921, 5
      %v1924 = vor.u32 %v1920, %v1923
      %v1925 = vrot.slane %v1924, 4
      %v1927 = vshll.u32 %v1843, 16
      %v1929 = vrot.slane %v1927, 5
      %v1930 = vsel %vm802, %v1925, %v1929
      %v1931 = vshrl.u32 %v1843, 16
      %v1933 = vrot.slane %v1931, 4
      %v1934 = vor.u32 %v1933, %v1929
      %v1935 = vrot.slane %v1934, 4
      %v1937 = vshll.u32 %v1844, 16
      %v1939 = vrot.slane %v1937, 5
      %v1940 = vsel %vm802, %v1935, %v1939
      %s1941 = scalar_lea.vmem %s3, 14
      %v1942 = vld [vmem:[%s1941] sm:$0x3]
      %v1943 = vunpack.c.l.b16 %v1858
      %v1944 = vunpack.c.l.b16 %v1868
      %v1945 = vunpack.c.l.b16 %v1882
      %v1946 = vunpack.c.l.b16 %v1892
      %v1947 = vunpack.c.l.b16 %v1906
      %v1948 = vunpack.c.l.b16 %v1916
      %v1949 = vunpack.c.l.b16 %v1930
      %v1950 = vunpack.c.l.b16 %v1940
      %v1951 = vpack.c.b16 %v1944, %v1943
      %v1952 = vpack.c.b16 %v1946, %v1945
      %v1953 = vpack.c.b16 %v1948, %v1947
      %v1954 = vpack.c.b16 %v1950, %v1949
      %v1956 = vsel %vm913, %v1951, 0
      %v1959 = vsel %vm913, %v1952, 0
      %v1962 = vsel %vm913, %v1953, 0
      %v1965 = vsel %vm913, %v1954, 0
      %v1968 = vsel %vm926, %v1942, 0
      %1970 = vmatprep.subr.bf16.mxu0 0
      %1971 = vmatpush1.bf16.msra.mxu0 %v1968
      %1972 = vmatprep.subr.bf16.mxu0 0
      %1973 = vmatpush1.bf16.msra.mxu0 0
      %1974 = vmatprep.subr.bf16.mxu0 0
      %1975 = vmatpush1.bf16.msra.mxu0 0
      %1976 = vmatprep.subr.bf16.mxu0 0
      %1977 = vmatpush1.bf16.msra.mxu0 0
      %1978 = vmatprep.subr.bf16.mxu0 0
      %1979 = vmatpush1.bf16.msra.mxu0 0
      %1980 = vmatprep.subr.bf16.mxu0 0
      %1981 = vmatpush1.bf16.msra.mxu0 0
      %1982 = vmatprep.subr.bf16.mxu0 0
      %1983 = vmatpush1.bf16.msra.mxu0 0
      %1984 = vmatprep.subr.bf16.mxu0 0
      %1985 = vmatpush1.bf16.msra.mxu0 0
      %1986 = vmatprep.subr.bf16.mxu0 0
      %1987 = vmatpush1.bf16.msra.mxu0 0
      %1988 = vmatprep.subr.bf16.mxu0 0
      %1989 = vmatpush1.bf16.msra.mxu0 0
      %1990 = vmatprep.subr.bf16.mxu0 0
      %1991 = vmatpush1.bf16.msra.mxu0 0
      %1992 = vmatprep.subr.bf16.mxu0 0
      %1993 = vmatpush1.bf16.msra.mxu0 0
      %1994 = vmatprep.subr.bf16.mxu0 0
      %1995 = vmatpush1.bf16.msra.mxu0 0
      %1996 = vmatprep.subr.bf16.mxu0 0
      %1997 = vmatpush1.bf16.msra.mxu0 0
      %1998 = vmatprep.subr.bf16.mxu0 0
      %1999 = vmatpush1.bf16.msra.mxu0 0
      %2000 = vmatprep.subr.bf16.mxu0 0
      %2001 = vmatpush1.bf16.msra.mxu0 0
      %2002 = vmatprep.mubr.bf16.mxu0 0
      %2003 = vmatmul.mubr.bf16.gmra.mrb[0].mxu0 %v1956
      %v2004 = vpop.f32.mrb[0].mxu0
      %v2005 = vadd.f32 0.0, %v2004
      %v2006 = vpop.f32.mrb[0].mxu0
      %v2007 = vpop.f32.mrb[0].mxu0
      %v2008 = vadd.f32 0.0, %v2007
      %v2009 = vpop.f32.mrb[0].mxu0
      %2010 = vmatprep.mubr.bf16.mxu0 0
      %2011 = vmatmul.mubr.bf16.gmra.mrb[0].mxu0 %v1959
      %v2012 = vpop.f32.mrb[0].mxu0
      %v2013 = vadd.f32 0.0, %v2012
      %v2014 = vpop.f32.mrb[0].mxu0
      %v2015 = vpop.f32.mrb[0].mxu0
      %v2016 = vadd.f32 0.0, %v2015
      %v2017 = vpop.f32.mrb[0].mxu0
      %2018 = vmatprep.mubr.bf16.mxu0 0
      %2019 = vmatmul.mubr.bf16.gmra.mrb[0].mxu0 %v1962
      %v2020 = vpop.f32.mrb[0].mxu0
      %v2021 = vadd.f32 0.0, %v2020
      %v2022 = vpop.f32.mrb[0].mxu0
      %v2023 = vpop.f32.mrb[0].mxu0
      %v2024 = vadd.f32 0.0, %v2023
      %v2025 = vpop.f32.mrb[0].mxu0
      %2026 = vmatprep.mubr.bf16.mxu0 0
      %2027 = vmatmul.mubr.bf16.gmra.mrb[0].mxu0 %v1965
      %v2028 = vpop.f32.mrb[0].mxu0
      %v2029 = vadd.f32 0.0, %v2028
      %v2030 = vpop.f32.mrb[0].mxu0
      %v2031 = vpop.f32.mrb[0].mxu0
      %v2032 = vadd.f32 0.0, %v2031
      %v2033 = vpop.f32.mrb[0].mxu0
      %2034 = vdwg.mxu0
      %v2035 = vadd.f32 %v1825, %v2005
      %v2036 = vadd.f32 %v1826, %v2008
      %v2037 = vadd.f32 %v1827, %v2013
      %v2038 = vadd.f32 %v1828, %v2016
      %v2039 = vadd.f32 %v1829, %v2021
      %v2040 = vadd.f32 %v1830, %v2024
      %v2041 = vadd.f32 %v1831, %v2029
      %v2042 = vadd.f32 %v1832, %v2032
      %v2043 = vld [vmem:[%s1714] sm:$0xe]
      %v2044 = vld [vmem:[%s1714 + $0xc] sm:$0xe]
      %v2045 = vld [vmem:[%s1714 + $0x18] sm:$0xe]
      %v2046 = vld [vmem:[%s1714 + $0x24] sm:$0xe]
      %v2059 = vrot.slane %v2043, 5
      %v2060 = vrot.slane %v2059, 4
      %v2061 = vrot.slane %v1834, 5
      %v2062 = vsel %vm1109, %v2060, %v2061
      %v2063 = vrot.slane %v2061, 4
      %v2064 = vrot.slane %v1835, 5
      %v2065 = vsel %vm1109, %v2063, %v2064
      %v2066 = vrot.slane %v2044, 5
      %v2067 = vrot.slane %v2066, 4
      %v2068 = vrot.slane %v1837, 5
      %v2069 = vsel %vm1109, %v2067, %v2068
      %v2070 = vrot.slane %v2068, 4
      %v2071 = vrot.slane %v1838, 5
      %v2072 = vsel %vm1109, %v2070, %v2071
      %v2073 = vrot.slane %v2045, 5
      %v2074 = vrot.slane %v2073, 4
      %v2075 = vrot.slane %v1840, 5
      %v2076 = vsel %vm1109, %v2074, %v2075
      %v2077 = vrot.slane %v2075, 4
      %v2078 = vrot.slane %v1841, 5
      %v2079 = vsel %vm1109, %v2077, %v2078
      %v2080 = vrot.slane %v2046, 5
      %v2081 = vrot.slane %v2080, 4
      %v2082 = vrot.slane %v1843, 5
      %v2083 = vsel %vm1109, %v2081, %v2082
      %v2084 = vrot.slane %v2082, 4
      %v2085 = vrot.slane %v1844, 5
      %v2086 = vsel %vm1109, %v2084, %v2085
      %s2087 = scalar_lea.vmem %s3, 16
      %v2088 = vld [vmem:[%s2087] sm:$0x3]
      %v2089 = vunpack.c.l.b16 %v2062
      %v2090 = vunpack.c.l.b16 %v2065
      %v2091 = vunpack.c.l.b16 %v2069
      %v2092 = vunpack.c.l.b16 %v2072
      %v2093 = vunpack.c.l.b16 %v2076
      %v2094 = vunpack.c.l.b16 %v2079
      %v2095 = vunpack.c.l.b16 %v2083
      %v2096 = vunpack.c.l.b16 %v2086
      %v2097 = vpack.c.b16 %v2090, %v2089
      %v2098 = vpack.c.b16 %v2092, %v2091
      %v2099 = vpack.c.b16 %v2094, %v2093
      %v2100 = vpack.c.b16 %v2096, %v2095
      %v2102 = vsel %vm913, %v2097, 0
      %v2105 = vsel %vm913, %v2098, 0
      %v2108 = vsel %vm913, %v2099, 0
      %v2111 = vsel %vm913, %v2100, 0
      %v2114 = vsel %vm926, %v2088, 0
      %2116 = vmatprep.subr.bf16.mxu0 0
      %2117 = vmatpush1.bf16.msra.mxu0 %v2114
      %2118 = vmatprep.subr.bf16.mxu0 0
      %2119 = vmatpush1.bf16.msra.mxu0 0
      %2120 = vmatprep.subr.bf16.mxu0 0
      %2121 = vmatpush1.bf16.msra.mxu0 0
      %2122 = vmatprep.subr.bf16.mxu0 0
      %2123 = vmatpush1.bf16.msra.mxu0 0
      %2124 = vmatprep.subr.bf16.mxu0 0
      %2125 = vmatpush1.bf16.msra.mxu0 0
      %2126 = vmatprep.subr.bf16.mxu0 0
      %2127 = vmatpush1.bf16.msra.mxu0 0
      %2128 = vmatprep.subr.bf16.mxu0 0
      %2129 = vmatpush1.bf16.msra.mxu0 0
      %2130 = vmatprep.subr.bf16.mxu0 0
      %2131 = vmatpush1.bf16.msra.mxu0 0
      %2132 = vmatprep.subr.bf16.mxu0 0
      %2133 = vmatpush1.bf16.msra.mxu0 0
      %2134 = vmatprep.subr.bf16.mxu0 0
      %2135 = vmatpush1.bf16.msra.mxu0 0
      %2136 = vmatprep.subr.bf16.mxu0 0
      %2137 = vmatpush1.bf16.msra.mxu0 0
      %2138 = vmatprep.subr.bf16.mxu0 0
      %2139 = vmatpush1.bf16.msra.mxu0 0
      %2140 = vmatprep.subr.bf16.mxu0 0
      %2141 = vmatpush1.bf16.msra.mxu0 0
      %2142 = vmatprep.subr.bf16.mxu0 0
      %2143 = vmatpush1.bf16.msra.mxu0 0
      %2144 = vmatprep.subr.bf16.mxu0 0
      %2145 = vmatpush1.bf16.msra.mxu0 0
      %2146 = vmatprep.subr.bf16.mxu0 0
      %2147 = vmatpush1.bf16.msra.mxu0 0
      %2148 = vmatprep.mubr.bf16.mxu0 0
      %2149 = vmatmul.mubr.bf16.gmra.mrb[0].mxu0 %v2102
      %v2150 = vpop.f32.mrb[0].mxu0
      %v2151 = vadd.f32 0.0, %v2150
      %v2152 = vpop.f32.mrb[0].mxu0
      %v2153 = vpop.f32.mrb[0].mxu0
      %v2154 = vadd.f32 0.0, %v2153
      %v2155 = vpop.f32.mrb[0].mxu0
      %2156 = vmatprep.mubr.bf16.mxu0 0
      %2157 = vmatmul.mubr.bf16.gmra.mrb[0].mxu0 %v2105
      %v2158 = vpop.f32.mrb[0].mxu0
      %v2159 = vadd.f32 0.0, %v2158
      %v2160 = vpop.f32.mrb[0].mxu0
      %v2161 = vpop.f32.mrb[0].mxu0
      %v2162 = vadd.f32 0.0, %v2161
      %v2163 = vpop.f32.mrb[0].mxu0
      %2164 = vmatprep.mubr.bf16.mxu0 0
      %2165 = vmatmul.mubr.bf16.gmra.mrb[0].mxu0 %v2108
      %v2166 = vpop.f32.mrb[0].mxu0
      %v2167 = vadd.f32 0.0, %v2166
      %v2168 = vpop.f32.mrb[0].mxu0
      %v2169 = vpop.f32.mrb[0].mxu0
      %v2170 = vadd.f32 0.0, %v2169
      %v2171 = vpop.f32.mrb[0].mxu0
      %2172 = vmatprep.mubr.bf16.mxu0 0
      %2173 = vmatmul.mubr.bf16.gmra.mrb[0].mxu0 %v2111
      %v2174 = vpop.f32.mrb[0].mxu0
      %v2175 = vadd.f32 0.0, %v2174
      %v2176 = vpop.f32.mrb[0].mxu0
      %v2177 = vpop.f32.mrb[0].mxu0
      %v2178 = vadd.f32 0.0, %v2177
      %v2179 = vpop.f32.mrb[0].mxu0
      %2180 = vdwg.mxu0
      %v2181 = vadd.f32 %v2035, %v2151
      %v2182 = vadd.f32 %v2036, %v2154
      %v2183 = vadd.f32 %v2037, %v2159
      %v2184 = vadd.f32 %v2038, %v2162
      %v2185 = vadd.f32 %v2039, %v2167
      %v2186 = vadd.f32 %v2040, %v2170
      %v2187 = vadd.f32 %v2041, %v2175
      %v2188 = vadd.f32 %v2042, %v2178
      %v2189 = vadd.f32 %v2181, %v2182
      %v2190 = vadd.f32 %v2189, %v2183
      %v2191 = vadd.f32 %v2190, %v2184
      %v2192 = vadd.f32 %v2191, %v2185
      %v2193 = vadd.f32 %v2192, %v2186
      %v2194 = vadd.f32 %v2193, %v2187
      %v2195 = vadd.f32 %v2194, %v2188
      %v2196 = vrot.slane %v2195, 4
      %v2197 = vadd.f32 %v2195, %v2196
      %v2198 = vrot.slane %v2197, 2
      %v2199 = vadd.f32 %v2197, %v2198
      %v2200 = vrot.slane %v2199, 1
      %v2201 = vadd.f32 %v2199, %v2200
      %2202 = vst [vmem:[%s467] sm:$0x1] %v2201
      %v2203 = vmul.f32 %v2181, %v2181
      %v2204 = vmul.f32 %v2182, %v2182
      %v2205 = vmul.f32 %v2183, %v2183
      %v2206 = vmul.f32 %v2184, %v2184
      %v2207 = vmul.f32 %v2185, %v2185
      %v2208 = vmul.f32 %v2186, %v2186
      %v2209 = vmul.f32 %v2187, %v2187
      %v2210 = vmul.f32 %v2188, %v2188
      %v2211 = vadd.f32 %v2203, %v2204
      %v2212 = vadd.f32 %v2211, %v2205
      %v2213 = vadd.f32 %v2212, %v2206
      %v2214 = vadd.f32 %v2213, %v2207
      %v2215 = vadd.f32 %v2214, %v2208
      %v2216 = vadd.f32 %v2215, %v2209
      %v2217 = vadd.f32 %v2216, %v2210
      %v2218 = vrot.slane %v2217, 4
      %v2219 = vadd.f32 %v2217, %v2218
      %v2220 = vrot.slane %v2219, 2
      %v2221 = vadd.f32 %v2219, %v2220
      %v2222 = vrot.slane %v2221, 1
      %v2223 = vadd.f32 %v2221, %v2222
      %2224 = vst [vmem:[%s467 + $0x1] sm:$0x1] %v2223
      %v2225 = vpack.c.bf16 %v2182, %v2181
      %v2226 = vpack.c.bf16 %v2184, %v2183
      %v2227 = vpack.c.bf16 %v2186, %v2185
      %v2228 = vpack.c.bf16 %v2188, %v2187
      %v2233 = vunpack.c.l.b16 %v2225
      %v2234 = vunpack.c.h.b16 %v2225
      %v2235 = vunpack.c.l.b16 %v2226
      %v2236 = vunpack.c.h.b16 %v2226
      %v2237 = vunpack.c.l.b16 %v2227
      %v2238 = vunpack.c.h.b16 %v2227
      %v2239 = vunpack.c.l.b16 %v2228
      %v2240 = vunpack.c.h.b16 %v2228
      %v2241 = vpack.c.b16 %v2233, %v2233
      %v2242 = vpack.c.b16 %v2234, %v2234
      %v2243 = vpack.c.b16 %v2235, %v2235
      %v2244 = vpack.c.b16 %v2236, %v2236
      %v2245 = vpack.c.b16 %v2237, %v2237
      %v2246 = vpack.c.b16 %v2238, %v2238
      %v2247 = vpack.c.b16 %v2239, %v2239
      %v2248 = vpack.c.b16 %v2240, %v2240
      %2257 = vst [vmem:[%s458] sm:$0xf] %v2241
      %2258 = vst [vmem:[%s458 + $0x4] sm:$0xf] %v2242
      %2259 = vst [vmem:[%s458 + $0x8] sm:$0xf] %v2243
      %2260 = vst [vmem:[%s458 + $0xc] sm:$0xf] %v2244
      %2261 = vst [vmem:[%s458 + $0x10] sm:$0xf] %v2245
      %2262 = vst [vmem:[%s458 + $0x14] sm:$0xf] %v2246
      %2263 = vst [vmem:[%s458 + $0x18] sm:$0xf] %v2247
      %2264 = vst [vmem:[%s458 + $0x1c] sm:$0xf] %v2248
      %s2265 = smul.u32 4, %s24
      %p2266 = scmp.lt.s32.totalorder %s23, 1
      %s2267 = scalar_select %p2266, %s23, 1
      %p2268 = scmp.lt.s32.totalorder %s2265, 15
      %s2269 = scalar_select %p2268, %s2265, 15
      %s2270 = smul.addr %s2269, 2
      %s2271 = smul.addr %s2267, 32
      %s2272 = sadd.s32 %s2270, %s2271
      %s2273 = smul.addr %s2272, 4
      %s2274 = scalar_lea.vmem %s6, %s2273
      %p2275 = scmp.lt.s32.totalorder %s23, 1
      %s2276 = scalar_select %p2275, %s23, 1
      %p2277 = scmp.lt.s32.totalorder %s24, 3
      %s2278 = scalar_select %p2277, %s24, 3
      %s2279 = smul.addr %s2276, 4
      %s2280 = sadd.s32 %s2278, %s2279
      %s2281 = smul.addr %s2280, 2
      %s2282 = scalar_lea.vmem %s7, %s2281
      // Predicated region
      $region45: #{double_conv.3} parent=43 // pred_check
        %p2283 = pneg %p214
      $region46: #{double_conv.3} parent=43 // pred_check_branch
        %2285 = sbr.rel (%p2283) target = $region48
      $region47: #{double_conv.3} parent=43 // pred_region
        %s2286 = smul.u32 4, %s24
      $region48: #{double_conv.3} parent=43 // pred_fallthru
        _
      // Predicated region
      $region49: #{double_conv.3} parent=43 // pred_check
        %p2287 = pneg %p242
      $region50: #{double_conv.3} parent=43 // pred_check_branch
        %2289 = sbr.rel (%p2287) target = $region52
      $region51: #{double_conv.3} parent=43 // pred_region
        _
      $region52: #{double_conv.3} parent=43 // pred_fallthru
        _
    $region44: #{double_conv.3} parent=5 // pred_fallthru
      _
    %p2290 = scmp.le.s32.totalorder 2, %s14
    // Predicated region
    $region53: #{double_conv.3} parent=5 // pred_check
      %p2291 = pneg %p2290
    $region54: #{double_conv.3} parent=5 // pred_check_branch
      %2293 = sbr.rel (%p2291) target = $region56
    $region55: #{double_conv.3} parent=5 // pred_region
      %s2294 = ssub.s32 %s14, 2
      // Predicated region
      $region57: #{double_conv.3} parent=55 // pred_check
        %p2295 = pneg %p220
      $region58: #{double_conv.3} parent=55 // pred_check_branch
        %2297 = sbr.rel (%p2295) target = $region60
      $region59: #{double_conv.3} parent=55 // pred_region
        %s2298 = smul.u32 4, %s26
        %p2299 = scmp.lt.s32.totalorder %s25, 1
        %s2300 = scalar_select %p2299, %s25, 1
        %p2301 = scmp.lt.s32.totalorder %s2298, 15
        %s2302 = scalar_select %p2301, %s2298, 15
        %s2303 = smul.addr %s2302, 2
        %s2304 = smul.addr %s2300, 32
        %s2305 = sadd.s32 %s2303, %s2304
        %s2306 = smul.addr %s2305, 4
        %s2307 = scalar_lea.vmem %s6, %s2306
      $region60: #{double_conv.3} parent=55 // pred_fallthru
        _
      // Predicated region
      $region61: #{double_conv.3} parent=55 // pred_check
        %p2308 = pneg %p248
      $region62: #{double_conv.3} parent=55 // pred_check_branch
        %2310 = sbr.rel (%p2308) target = $region64
      $region63: #{double_conv.3} parent=55 // pred_region
        %p2311 = scmp.lt.s32.totalorder %s25, 1
        %s2312 = scalar_select %p2311, %s25, 1
        %p2313 = scmp.lt.s32.totalorder %s26, 3
        %s2314 = scalar_select %p2313, %s26, 3
        %s2315 = smul.addr %s2312, 4
        %s2316 = sadd.s32 %s2314, %s2315
        %s2317 = smul.addr %s2316, 2
        %s2318 = scalar_lea.vmem %s7, %s2317
      $region64: #{double_conv.3} parent=55 // pred_fallthru
        _
    $region56: #{double_conv.3} parent=5 // pred_fallthru
      _
  $region6: #{double_conv.3} parent=0 // loop_footer
    %s18 = sadd.s32 1, %s14
  $region7: #{double_conv.3} parent=0 // loop_footer_branch
    %13 = sbr.rel target = $region3
  $region8: #{double_conv.3} parent=0 // loop_exit
    _

// kernel: double_conv.4
$region0: #{double_conv.4}
  #allocation0 [shape = 'u32[]', space=smem, size = 0x4, offset = 0x4, fixed_abs, tag = 'smem constant byte address 0x4 - core index']
  #allocation1 [shape = 'u32[144,128]{1,0:T(1,128)}', space=vmem, size = 0x12000, scoped, tag = 'internal scratch']
  #allocation2 [shape = 'bf16[6,18,128]{2,1,0:T(8,128)(2,1)}', space=vmem, size = 0x9000, scoped, tag = 'scratch operand']
  %s0 = inlined_call_operand.vmem [shape: bf16[2,16,16,128], index: 0, kind: input, shape index: {}, may-alias: {0,1,2}]
  %s1 = inlined_call_operand.vmem [shape: bf16[2,16,16,128], index: 1, kind: input, shape index: {}, may-alias: {0,1,2}]
  %s2 = inlined_call_operand.vmem [shape: bf16[2,16,16,128], index: 2, kind: input, shape index: {}, may-alias: {0,1,2}]
  %s3 = inlined_call_operand.vmem [shape: bf16[9,128,128], index: 3, kind: input, shape index: {}]
  %s4 = inlined_call_operand.vmem [shape: f32[1,128], index: 4, kind: input, shape index: {}]
  %s5 = inlined_call_operand.vmem [shape: f32[1,128], index: 5, kind: input, shape index: {}]
  %s6 = inlined_call_operand.vmem [shape: f32[2,16,16,128], index: 6, kind: output, shape index: {0}]
  %s7 = inlined_call_operand.vmem [shape: f32[2,4,2,128], index: 7, kind: output, shape index: {1}]
  %8 = xla_tuple %s6, %s7
  %s9 = sld [smem:[#allocation0]]
  $region65: #{double_conv.4} parent=0
    _
  %s11 = ssub.s32 1, %s9
  %s12 = scalar_select 0, %s11, %s9
  loop: start=0, step=1, limit=10
  $region2: #{double_conv.4} parent=0 // loop_pre_header
    _
  $region3: #{double_conv.4} parent=0 // loop_header
    %s14 = sphi 0, %s18
    %p15 = scmp.ge.s32.totalorder %s14, 10
    %s21 = sphi 0, %s33
    %s22 = sphi 0, %s29
    %s23 = sphi 0, %s21
    %s24 = sphi 0, %s22
    %s25 = sphi 0, %s23
    %s26 = sphi 0, %s24
    %s38 = sphi 0, %s40
    %s41 = sphi 0, %s38
    %s42 = sphi 0, %s41
    %s58 = sphi 0, %s42
    %s74 = sphi 0, %s76
    %s77 = sphi 0, %s74
    %s78 = sphi 0, %s77
    %s94 = sphi 0, %s78
    %s110 = sphi 0, %s112
    %s113 = sphi 0, %s110
    %s114 = sphi 0, %s113
    %s130 = sphi 0, %s114
    %s134 = sphi 0, %s134
    %s136 = sphi 0, %s134
    %s137 = sphi 0, %s136
    %s151 = sphi 0, %s137
    %s155 = sphi 0, %s155
    %s157 = sphi 0, %s155
    %s158 = sphi 0, %s157
    %s172 = sphi 0, %s158
    %s176 = sphi 0, %s176
    %s178 = sphi 0, %s176
    %s179 = sphi 0, %s178
    %s193 = sphi 0, %s179
    %s201 = sphi 0, %s203
    %s204 = sphi 0, %s201
    %s205 = sphi 0, %s204
    %s221 = sphi 0, %s205
    %s229 = sphi 0, %s231
    %s232 = sphi 0, %s229
    %s233 = sphi 0, %s232
    %s249 = sphi 0, %s233
  $region4: #{double_conv.4} parent=0 // loop_header_branch
    %17 = sbr.rel (%p15) target = $region8
  $region5: #{double_conv.4} parent=0 // loop_body
    %s19 = ssub.s32 %s14, 1
    %s20 = ssub.s32 %s14, 2
    %s27 = sadd.s32 1, %s22
    %p28 = scmp.ge.s32.totalorder %s27, 4
    %s29 = scalar_select %p28, 0, %s27
    %s30 = sadd.s32 1, %s21
    %s31 = scalar_select %p28, %s30, %s21
    %p32 = scmp.ge.s32.totalorder %s31, 2
    %s33 = scalar_select %p32, 0, %s31
    %s34 = ssub.s32 %s21, %s33
    %s35 = ssub.s32 %s22, %s29
    %s36 = sor.u32 %s34, %s35
    %p37 = scmp.eq.s32.totalorder %s36, 0
    %s39 = sadd.s32 %s38, 1
    %s40 = scalar_select %p37, %s38, %s39
    %p43 = pneg %p37
    %p44 = scmp.eq.s32.totalorder %s14, 7
    %p45 = por %p43, %p44
    %p46 = scmp.ne.s32.totalorder %s38, %s41
    %p47 = scmp.eq.s32.totalorder %s14, 0
    %p48 = por %p46, %p47
    %p49 = scmp.ne.s32.totalorder %s38, %s41
    %p50 = scmp.eq.s32.totalorder %s19, 7
    %p51 = por %p49, %p50
    %p52 = scmp.ne.s32.totalorder %s41, %s42
    %p53 = scmp.eq.s32.totalorder %s19, 0
    %p54 = por %p52, %p53
    %p55 = scmp.ne.s32.totalorder %s41, %s42
    %p56 = scmp.eq.s32.totalorder %s20, 7
    %p57 = por %p55, %p56
    %p59 = scmp.ne.s32.totalorder %s42, %s58
    %p60 = scmp.eq.s32.totalorder %s20, 0
    %p61 = por %p59, %p60
    %s62 = smul.u32 %s22, 4
    %s63 = ssub.s32 %s62, 1
    %p64 = scmp.gt.s32.totalorder %s63, 0
    %s65 = scalar_select %p64, %s63, 0
    %s66 = smul.u32 %s29, 4
    %s67 = ssub.s32 %s66, 1
    %p68 = scmp.gt.s32.totalorder %s67, 0
    %s69 = scalar_select %p68, %s67, 0
    %s70 = ssub.s32 %s21, %s33
    %s71 = ssub.s32 %s65, %s69
    %s72 = sor.u32 %s70, %s71
    %p73 = scmp.eq.s32.totalorder %s72, 0
    %s75 = sadd.s32 %s74, 1
    %s76 = scalar_select %p73, %s74, %s75
    %p79 = pneg %p73
    %p80 = scmp.eq.s32.totalorder %s14, 7
    %p81 = por %p79, %p80
    %p82 = scmp.ne.s32.totalorder %s74, %s77
    %p83 = scmp.eq.s32.totalorder %s14, 0
    %p84 = por %p82, %p83
    %p85 = scmp.ne.s32.totalorder %s74, %s77
    %p86 = scmp.eq.s32.totalorder %s19, 7
    %p87 = por %p85, %p86
    %p88 = scmp.ne.s32.totalorder %s77, %s78
    %p89 = scmp.eq.s32.totalorder %s19, 0
    %p90 = por %p88, %p89
    %p91 = scmp.ne.s32.totalorder %s77, %s78
    %p92 = scmp.eq.s32.totalorder %s20, 7
    %p93 = por %p91, %p92
    %p95 = scmp.ne.s32.totalorder %s78, %s94
    %p96 = scmp.eq.s32.totalorder %s20, 0
    %p97 = por %p95, %p96
    %s98 = smul.u32 %s22, 4
    %s99 = sadd.s32 %s98, 4
    %p100 = scmp.lt.s32.totalorder %s99, 15
    %s101 = scalar_select %p100, %s99, 15
    %s102 = smul.u32 %s29, 4
    %s103 = sadd.s32 %s102, 4
    %p104 = scmp.lt.s32.totalorder %s103, 15
    %s105 = scalar_select %p104, %s103, 15
    %s106 = ssub.s32 %s21, %s33
    %s107 = ssub.s32 %s101, %s105
    %s108 = sor.u32 %s106, %s107
    %p109 = scmp.eq.s32.totalorder %s108, 0
    %s111 = sadd.s32 %s110, 1
    %s112 = scalar_select %p109, %s110, %s111
    %p115 = pneg %p109
    %p116 = scmp.eq.s32.totalorder %s14, 7
    %p117 = por %p115, %p116
    %p118 = scmp.ne.s32.totalorder %s110, %s113
    %p119 = scmp.eq.s32.totalorder %s14, 0
    %p120 = por %p118, %p119
    %p121 = scmp.ne.s32.totalorder %s110, %s113
    %p122 = scmp.eq.s32.totalorder %s19, 7
    %p123 = por %p121, %p122
    %p124 = scmp.ne.s32.totalorder %s113, %s114
    %p125 = scmp.eq.s32.totalorder %s19, 0
    %p126 = por %p124, %p125
    %p127 = scmp.ne.s32.totalorder %s113, %s114
    %p128 = scmp.eq.s32.totalorder %s20, 7
    %p129 = por %p127, %p128
    %p131 = scmp.ne.s32.totalorder %s114, %s130
    %p132 = scmp.eq.s32.totalorder %s20, 0
    %p133 = por %p131, %p132
    %s135 = sadd.s32 %s134, 1
    %p138 = scmp.eq.s32.totalorder %s14, 7
    %p139 = scmp.ne.s32.totalorder %s134, %s136
    %p140 = scmp.eq.s32.totalorder %s14, 0
    %p141 = por %p139, %p140
    %p142 = scmp.ne.s32.totalorder %s134, %s136
    %p143 = scmp.eq.s32.totalorder %s19, 7
    %p144 = por %p142, %p143
    %p145 = scmp.ne.s32.totalorder %s136, %s137
    %p146 = scmp.eq.s32.totalorder %s19, 0
    %p147 = por %p145, %p146
    %p148 = scmp.ne.s32.totalorder %s136, %s137
    %p149 = scmp.eq.s32.totalorder %s20, 7
    %p150 = por %p148, %p149
    %p152 = scmp.ne.s32.totalorder %s137, %s151
    %p153 = scmp.eq.s32.totalorder %s20, 0
    %p154 = por %p152, %p153
    %s156 = sadd.s32 %s155, 1
    %p159 = scmp.eq.s32.totalorder %s14, 7
    %p160 = scmp.ne.s32.totalorder %s155, %s157
    %p161 = scmp.eq.s32.totalorder %s14, 0
    %p162 = por %p160, %p161
    %p163 = scmp.ne.s32.totalorder %s155, %s157
    %p164 = scmp.eq.s32.totalorder %s19, 7
    %p165 = por %p163, %p164
    %p166 = scmp.ne.s32.totalorder %s157, %s158
    %p167 = scmp.eq.s32.totalorder %s19, 0
    %p168 = por %p166, %p167
    %p169 = scmp.ne.s32.totalorder %s157, %s158
    %p170 = scmp.eq.s32.totalorder %s20, 7
    %p171 = por %p169, %p170
    %p173 = scmp.ne.s32.totalorder %s158, %s172
    %p174 = scmp.eq.s32.totalorder %s20, 0
    %p175 = por %p173, %p174
    %s177 = sadd.s32 %s176, 1
    %p180 = scmp.eq.s32.totalorder %s14, 7
    %p181 = scmp.ne.s32.totalorder %s176, %s178
    %p182 = scmp.eq.s32.totalorder %s14, 0
    %p183 = por %p181, %p182
    %p184 = scmp.ne.s32.totalorder %s176, %s178
    %p185 = scmp.eq.s32.totalorder %s19, 7
    %p186 = por %p184, %p185
    %p187 = scmp.ne.s32.totalorder %s178, %s179
    %p188 = scmp.eq.s32.totalorder %s19, 0
    %p189 = por %p187, %p188
    %p190 = scmp.ne.s32.totalorder %s178, %s179
    %p191 = scmp.eq.s32.totalorder %s20, 7
    %p192 = por %p190, %p191
    %p194 = scmp.ne.s32.totalorder %s179, %s193
    %p195 = scmp.eq.s32.totalorder %s20, 0
    %p196 = por %p194, %p195
    %s197 = ssub.s32 %s21, %s33
    %s198 = ssub.s32 %s22, %s29
    %s199 = sor.u32 %s197, %s198
    %p200 = scmp.eq.s32.totalorder %s199, 0
    %s202 = sadd.s32 %s201, 1
    %s203 = scalar_select %p200, %s201, %s202
    %p206 = pneg %p200
    %p207 = scmp.eq.s32.totalorder %s14, 7
    %p208 = por %p206, %p207
    %p209 = scmp.ne.s32.totalorder %s201, %s204
    %p210 = scmp.eq.s32.totalorder %s14, 0
    %p211 = por %p209, %p210
    %p212 = scmp.ne.s32.totalorder %s201, %s204
    %p213 = scmp.eq.s32.totalorder %s19, 7
    %p214 = por %p212, %p213
    %p215 = scmp.ne.s32.totalorder %s204, %s205
    %p216 = scmp.eq.s32.totalorder %s19, 0
    %p217 = por %p215, %p216
    %p218 = scmp.ne.s32.totalorder %s204, %s205
    %p219 = scmp.eq.s32.totalorder %s20, 7
    %p220 = por %p218, %p219
    %p222 = scmp.ne.s32.totalorder %s205, %s221
    %p223 = scmp.eq.s32.totalorder %s20, 0
    %p224 = por %p222, %p223
    %s225 = ssub.s32 %s21, %s33
    %s226 = ssub.s32 %s22, %s29
    %s227 = sor.u32 %s225, %s226
    %p228 = scmp.eq.s32.totalorder %s227, 0
    %s230 = sadd.s32 %s229, 1
    %s231 = scalar_select %p228, %s229, %s230
    %p234 = pneg %p228
    %p235 = scmp.eq.s32.totalorder %s14, 7
    %p236 = por %p234, %p235
    %p237 = scmp.ne.s32.totalorder %s229, %s232
    %p238 = scmp.eq.s32.totalorder %s14, 0
    %p239 = por %p237, %p238
    %p240 = scmp.ne.s32.totalorder %s229, %s232
    %p241 = scmp.eq.s32.totalorder %s19, 7
    %p242 = por %p240, %p241
    %p243 = scmp.ne.s32.totalorder %s232, %s233
    %p244 = scmp.eq.s32.totalorder %s19, 0
    %p245 = por %p243, %p244
    %p246 = scmp.ne.s32.totalorder %s232, %s233
    %p247 = scmp.eq.s32.totalorder %s20, 7
    %p248 = por %p246, %p247
    %p250 = scmp.ne.s32.totalorder %s233, %s249
    %p251 = scmp.eq.s32.totalorder %s20, 0
    %p252 = por %p250, %p251
    %p253 = scmp.le.s32.totalorder 1, %s14
    %p254 = scmp.lt.s32.totalorder %s14, 9
    %p255 = pnand %p253, %p254
    %p256 = pneg %p255
    // Predicated region
    $region9: #{double_conv.4} parent=5 // pred_check
      _
    $region10: #{double_conv.4} parent=5 // pred_check_branch
      %258 = sbr.rel (%p255) target = $region12
    $region11: #{double_conv.4} parent=5 // pred_region
      %s259 = ssub.s32 %s14, 1
      // Predicated region
      $region13: #{double_conv.4} parent=11 // pred_check
        %p260 = pneg %p147
      $region14: #{double_conv.4} parent=11 // pred_check_branch
        %262 = sbr.rel (%p260) target = $region16
      $region15: #{double_conv.4} parent=11 // pred_region
        _
      $region16: #{double_conv.4} parent=11 // pred_fallthru
        _
      // Predicated region
      $region17: #{double_conv.4} parent=11 // pred_check
        %p263 = pneg %p168
      $region18: #{double_conv.4} parent=11 // pred_check_branch
        %265 = sbr.rel (%p263) target = $region20
      $region19: #{double_conv.4} parent=11 // pred_region
        _
      $region20: #{double_conv.4} parent=11 // pred_fallthru
        _
      // Predicated region
      $region21: #{double_conv.4} parent=11 // pred_check
        %p266 = pneg %p189
      $region22: #{double_conv.4} parent=11 // pred_check_branch
        %268 = sbr.rel (%p266) target = $region24
      $region23: #{double_conv.4} parent=11 // pred_region
        _
      $region24: #{double_conv.4} parent=11 // pred_fallthru
        _
    $region12: #{double_conv.4} parent=5 // pred_fallthru
      _
    %p269 = scmp.lt.s32.totalorder %s14, 8
    // Predicated region
    $region25: #{double_conv.4} parent=5 // pred_check
      %p270 = pneg %p269
    $region26: #{double_conv.4} parent=5 // pred_check_branch
      %272 = sbr.rel (%p270) target = $region28
    $region27: #{double_conv.4} parent=5 // pred_region
      // Predicated region
      $region29: #{double_conv.4} parent=27 // pred_check
        %p273 = pneg %p48
      $region30: #{double_conv.4} parent=27 // pred_check_branch
        %275 = sbr.rel (%p273) target = $region32
      $region31: #{double_conv.4} parent=27 // pred_region
        %s276 = smul.u32 4, %s22
        %p277 = scmp.lt.s32.totalorder %s21, 1
        %s278 = scalar_select %p277, %s21, 1
        %p279 = scmp.lt.s32.totalorder %s276, 15
        %s280 = scalar_select %p279, %s276, 15
        %s281 = smul.addr %s280, 2
        %s282 = smul.addr %s278, 32
        %s283 = sadd.s32 %s281, %s282
        %s284 = smul.addr %s283, 4
        %s285 = scalar_lea.vmem %s0, %s284
        %s286 = smul.u32 4, %s22
      $region32: #{double_conv.4} parent=27 // pred_fallthru
        _
      // Predicated region
      $region33: #{double_conv.4} parent=27 // pred_check
        %p287 = pneg %p84
      $region34: #{double_conv.4} parent=27 // pred_check_branch
        %289 = sbr.rel (%p287) target = $region36
      $region35: #{double_conv.4} parent=27 // pred_region
        %s290 = smul.u32 %s22, 4
        %s291 = ssub.s32 %s290, 1
        %p292 = scmp.gt.s32.totalorder %s291, 0
        %s293 = scalar_select %p292, %s291, 0
        %p294 = scmp.lt.s32.totalorder %s21, 1
        %s295 = scalar_select %p294, %s21, 1
        %p296 = scmp.lt.s32.totalorder %s293, 15
        %s297 = scalar_select %p296, %s293, 15
        %s298 = smul.addr %s297, 2
        %s299 = smul.addr %s295, 32
        %s300 = sadd.s32 %s298, %s299
        %s301 = smul.addr %s300, 4
        %s302 = scalar_lea.vmem %s1, %s301
        %s303 = smul.u32 %s22, 4
        %s304 = ssub.s32 %s303, 1
        %p305 = scmp.gt.s32.totalorder %s304, 0
        %s306 = scalar_select %p305, %s304, 0
      $region36: #{double_conv.4} parent=27 // pred_fallthru
        _
      // Predicated region
      $region37: #{double_conv.4} parent=27 // pred_check
        %p307 = pneg %p120
      $region38: #{double_conv.4} parent=27 // pred_check_branch
        %309 = sbr.rel (%p307) target = $region40
      $region39: #{double_conv.4} parent=27 // pred_region
        %s310 = smul.u32 %s22, 4
        %s311 = sadd.s32 %s310, 4
        %p312 = scmp.lt.s32.totalorder %s311, 15
        %s313 = scalar_select %p312, %s311, 15
        %p314 = scmp.lt.s32.totalorder %s21, 1
        %s315 = scalar_select %p314, %s21, 1
        %p316 = scmp.lt.s32.totalorder %s313, 15
        %s317 = scalar_select %p316, %s313, 15
        %s318 = smul.addr %s317, 2
        %s319 = smul.addr %s315, 32
        %s320 = sadd.s32 %s318, %s319
        %s321 = smul.addr %s320, 4
        %s322 = scalar_lea.vmem %s2, %s321
        %s323 = smul.u32 %s22, 4
        %s324 = sadd.s32 %s323, 4
        %p325 = scmp.lt.s32.totalorder %s324, 15
        %s326 = scalar_select %p325, %s324, 15
      $region40: #{double_conv.4} parent=27 // pred_fallthru
        _
    $region28: #{double_conv.4} parent=5 // pred_fallthru
      _
    %p327 = scmp.le.s32.totalorder 1, %s14
    %p328 = scmp.lt.s32.totalorder %s14, 9
    %p329 = pnand %p327, %p328
    %p330 = pneg %p329
    // Predicated region
    $region41: #{double_conv.4} parent=5 // pred_check
      _
    $region42: #{double_conv.4} parent=5 // pred_check_branch
      %332 = sbr.rel (%p329) target = $region44
    $region43: #{double_conv.4} parent=5 // pred_region
      %s333 = ssub.s32 %s14, 1
      %s334 = smul.u32 4, %s24
      %p335 = scmp.lt.s32.totalorder %s23, 1
      %s336 = scalar_select %p335, %s23, 1
      %p337 = scmp.lt.s32.totalorder %s334, 15
      %s338 = scalar_select %p337, %s334, 15
      %s339 = smul.addr %s338, 2
      %s340 = smul.addr %s336, 32
      %s341 = sadd.s32 %s339, %s340
      %s342 = smul.addr %s341, 4
      %s343 = scalar_lea.vmem %s0, %s342
      %p344 = pneg %p54
      %p345 = pneg %p51
      %s346 = smul.u32 %s24, 4
      %s347 = ssub.s32 %s346, 1
      %p348 = scmp.gt.s32.totalorder %s347, 0
      %s349 = scalar_select %p348, %s347, 0
      %p350 = scmp.lt.s32.totalorder %s23, 1
      %s351 = scalar_select %p350, %s23, 1
      %p352 = scmp.lt.s32.totalorder %s349, 15
      %s353 = scalar_select %p352, %s349, 15
      %s354 = smul.addr %s353, 2
      %s355 = smul.addr %s351, 32
      %s356 = sadd.s32 %s354, %s355
      %s357 = smul.addr %s356, 4
      %s358 = scalar_lea.vmem %s1, %s357
      %p359 = pneg %p90
      %p360 = pneg %p87
      %s361 = smul.u32 %s24, 4
      %s362 = sadd.s32 %s361, 4
      %p363 = scmp.lt.s32.totalorder %s362, 15
      %s364 = scalar_select %p363, %s362, 15
      %p365 = scmp.lt.s32.totalorder %s23, 1
      %s366 = scalar_select %p365, %s23, 1
      %p367 = scmp.lt.s32.totalorder %s364, 15
      %s368 = scalar_select %p367, %s364, 15
      %s369 = smul.addr %s368, 2
      %s370 = smul.addr %s366, 32
      %s371 = sadd.s32 %s369, %s370
      %s372 = smul.addr %s371, 4
      %s373 = scalar_lea.vmem %s2, %s372
      %p374 = pneg %p126
      %p375 = pneg %p123
      %p376 = pneg %p147
      %p377 = pneg %p144
      %p378 = pneg %p168
      %p379 = pneg %p165
      %p380 = pneg %p189
      %p381 = pneg %p186
      %p382 = pneg %p217
      %p383 = pneg %p214
      %s384 = smul.u32 4, %s24
      %p385 = scmp.lt.s32.totalorder %s23, 1
      %s386 = scalar_select %p385, %s23, 1
      %p387 = scmp.lt.s32.totalorder %s384, 15
      %s388 = scalar_select %p387, %s384, 15
      %s389 = smul.addr %s388, 2
      %s390 = smul.addr %s386, 32
      %s391 = sadd.s32 %s389, %s390
      %s392 = smul.addr %s391, 8
      %s393 = scalar_lea.vmem %s6, %s392
      %p394 = pneg %p245
      %p395 = pneg %p242
      %p396 = scmp.lt.s32.totalorder %s23, 1
      %s397 = scalar_select %p396, %s23, 1
      %p398 = scmp.lt.s32.totalorder %s24, 3
      %s399 = scalar_select %p398, %s24, 3
      %s400 = smul.addr %s397, 4
      %s401 = sadd.s32 %s399, %s400
      %s402 = smul.addr %s401, 2
      %s403 = scalar_lea.vmem %s7, %s402
      %s404 = smul.u32 4, %s24
      %p405 = scmp.lt.s32.totalorder %s23, 1
      %s406 = scalar_select %p405, %s23, 1
      %p407 = scmp.lt.s32.totalorder %s404, 15
      %s408 = scalar_select %p407, %s404, 15
      %s409 = smul.addr %s408, 2
      %s410 = smul.addr %s406, 32
      %s411 = sadd.s32 %s409, %s410
      %s412 = smul.addr %s411, 4
      %s413 = scalar_lea.vmem %s0, %s412
      %s414 = smul.u32 4, %s24
      %s415 = smul.u32 %s24, 4
      %s416 = ssub.s32 %s415, 1
      %p417 = scmp.gt.s32.totalorder %s416, 0
      %s418 = scalar_select %p417, %s416, 0
      %p419 = scmp.lt.s32.totalorder %s23, 1
      %s420 = scalar_select %p419, %s23, 1
      %p421 = scmp.lt.s32.totalorder %s418, 15
      %s422 = scalar_select %p421, %s418, 15
      %s423 = smul.addr %s422, 2
      %s424 = smul.addr %s420, 32
      %s425 = sadd.s32 %s423, %s424
      %s426 = smul.addr %s425, 4
      %s427 = scalar_lea.vmem %s1, %s426
      %s428 = smul.u32 %s24, 4
      %s429 = ssub.s32 %s428, 1
      %p430 = scmp.gt.s32.totalorder %s429, 0
      %s431 = scalar_select %p430, %s429, 0
      %s432 = smul.u32 %s24, 4
      %s433 = sadd.s32 %s432, 4
      %p434 = scmp.lt.s32.totalorder %s433, 15
      %s435 = scalar_select %p434, %s433, 15
      %p436 = scmp.lt.s32.totalorder %s23, 1
      %s437 = scalar_select %p436, %s23, 1
      %p438 = scmp.lt.s32.totalorder %s435, 15
      %s439 = scalar_select %p438, %s435, 15
      %s440 = smul.addr %s439, 2
      %s441 = smul.addr %s437, 32
      %s442 = sadd.s32 %s440, %s441
      %s443 = smul.addr %s442, 4
      %s444 = scalar_lea.vmem %s2, %s443
      %s445 = smul.u32 %s24, 4
      %s446 = sadd.s32 %s445, 4
      %p447 = scmp.lt.s32.totalorder %s446, 15
      %s448 = scalar_select %p447, %s446, 15
      %s449 = smul.u32 4, %s24
      %p450 = scmp.lt.s32.totalorder %s23, 1
      %s451 = scalar_select %p450, %s23, 1
      %p452 = scmp.lt.s32.totalorder %s449, 15
      %s453 = scalar_select %p452, %s449, 15
      %s454 = smul.addr %s453, 2
      %s455 = smul.addr %s451, 32
      %s456 = sadd.s32 %s454, %s455
      %s457 = smul.addr %s456, 8
      %s458 = scalar_lea.vmem %s6, %s457
      %s459 = smul.u32 4, %s24
      %p460 = scmp.lt.s32.totalorder %s23, 1
      %s461 = scalar_select %p460, %s23, 1
      %p462 = scmp.lt.s32.totalorder %s24, 3
      %s463 = scalar_select %p462, %s24, 3
      %s464 = smul.addr %s461, 4
      %s465 = sadd.s32 %s463, %s464
      %s466 = smul.addr %s465, 2
      %s467 = scalar_lea.vmem %s7, %s466
      %v469 = vld [vmem:[%s4] sm:$0x1]
      %v470 = vld [vmem:[%s5] sm:$0x1]
      %vm471 = vcmask 1040384
      %vm472 = vsmask.f32 256
      %vm473 = vmand %vm471, %vm472
      %v474 = vld [vmem:[#allocation2] sm:$0x1]
      %v475 = vsel %vm473, 0, %v474
      %476 = vst [vmem:[#allocation2] sm:$0x1] %v475
      %v477 = vld [vmem:[#allocation2 + $0xc] sm:$0x1]
      %v478 = vsel %vm473, 0, %v477
      %479 = vst [vmem:[#allocation2 + $0xc] sm:$0x1] %v478
      %v480 = vld [vmem:[#allocation2 + $0x18] sm:$0x1]
      %v481 = vsel %vm473, 0, %v480
      %482 = vst [vmem:[#allocation2 + $0x18] sm:$0x1] %v481
      %v483 = vld [vmem:[#allocation2 + $0x24] sm:$0x1]
      %v484 = vsel %vm473, 0, %v483
      %485 = vst [vmem:[#allocation2 + $0x24] sm:$0x1] %v484
      %v486 = vld [vmem:[#allocation2 + $0x30] sm:$0x1]
      %v487 = vsel %vm473, 0, %v486
      %488 = vst [vmem:[#allocation2 + $0x30] sm:$0x1] %v487
      %v489 = vld [vmem:[#allocation2 + $0x3c] sm:$0x1]
      %v490 = vsel %vm473, 0, %v489
      %491 = vst [vmem:[#allocation2 + $0x3c] sm:$0x1] %v490
      %vm492 = vsmask.f32 7938
      %vm493 = vmand %vm471, %vm492
      %v494 = vld [vmem:[#allocation2 + $0x8] sm:$0x1]
      %v495 = vsel %vm493, 0, %v494
      %496 = vst [vmem:[#allocation2 + $0x8] sm:$0x1] %v495
      %v497 = vld [vmem:[#allocation2 + $0x14] sm:$0x1]
      %v498 = vsel %vm493, 0, %v497
      %499 = vst [vmem:[#allocation2 + $0x14] sm:$0x1] %v498
      %v500 = vld [vmem:[#allocation2 + $0x20] sm:$0x1]
      %v501 = vsel %vm493, 0, %v500
      %502 = vst [vmem:[#allocation2 + $0x20] sm:$0x1] %v501
      %v503 = vld [vmem:[#allocation2 + $0x2c] sm:$0x1]
      %v504 = vsel %vm493, 0, %v503
      %505 = vst [vmem:[#allocation2 + $0x2c] sm:$0x1] %v504
      %v506 = vld [vmem:[#allocation2 + $0x38] sm:$0x1]
      %v507 = vsel %vm493, 0, %v506
      %508 = vst [vmem:[#allocation2 + $0x38] sm:$0x1] %v507
      %v509 = vld [vmem:[#allocation2 + $0x44] sm:$0x1]
      %v510 = vsel %vm493, 0, %v509
      %511 = vst [vmem:[#allocation2 + $0x44] sm:$0x1] %v510
      %v512 = vld [vmem:[%s413] sm:$0xf]
      %v513 = vld [vmem:[%s413 + $0x4] sm:$0xf]
      %v514 = vld [vmem:[%s413 + $0x8] sm:$0xf]
      %v515 = vld [vmem:[%s413 + $0xc] sm:$0xf]
      %v516 = vld [vmem:[%s413 + $0x10] sm:$0xf]
      %v517 = vld [vmem:[%s413 + $0x14] sm:$0xf]
      %v518 = vld [vmem:[%s413 + $0x18] sm:$0xf]
      %v519 = vld [vmem:[%s413 + $0x1c] sm:$0xf]
      %v520 = vunpack.c.l.bf16 %v512
      %v521 = vunpack.c.l.bf16 %v513
      %v522 = vunpack.c.l.bf16 %v514
      %v523 = vunpack.c.l.bf16 %v515
      %v524 = vunpack.c.l.bf16 %v516
      %v525 = vunpack.c.l.bf16 %v517
      %v526 = vunpack.c.l.bf16 %v518
      %v527 = vunpack.c.l.bf16 %v519
      %v529 = vlaneseq
      %v530 = vshrl.u32 %v529, 7
      %v531 = vsub.s32 0, %v530
      %v532 = vrot.slane %v469, %v531
      %v534 = vmul.f32 %v520, %v532
      %v535 = vmul.f32 %v521, %v532
      %v536 = vmul.f32 %v522, %v532
      %v537 = vmul.f32 %v523, %v532
      %v538 = vmul.f32 %v524, %v532
      %v539 = vmul.f32 %v525, %v532
      %v540 = vmul.f32 %v526, %v532
      %v541 = vmul.f32 %v527, %v532
      %v543 = vlaneseq
      %v544 = vshrl.u32 %v543, 7
      %v545 = vsub.s32 0, %v544
      %v546 = vrot.slane %v470, %v545
      %v548 = vadd.f32 %v534, %v546
      %v549 = vadd.f32 %v535, %v546
      %v550 = vadd.f32 %v536, %v546
      %v551 = vadd.f32 %v537, %v546
      %v552 = vadd.f32 %v538, %v546
      %v553 = vadd.f32 %v539, %v546
      %v554 = vadd.f32 %v540, %v546
      %v555 = vadd.f32 %v541, %v546
      %v556 = vmax.f32 %v548, 0.0
      %v557 = vmax.f32 %v549, 0.0
      %v558 = vmax.f32 %v550, 0.0
      %v559 = vmax.f32 %v551, 0.0
      %v560 = vmax.f32 %v552, 0.0
      %v561 = vmax.f32 %v553, 0.0
      %v562 = vmax.f32 %v554, 0.0
      %v563 = vmax.f32 %v555, 0.0
      %v564 = vpack.c.bf16 %v557, %v556
      %v565 = vpack.c.bf16 %v559, %v558
      %v566 = vpack.c.bf16 %v561, %v560
      %v567 = vpack.c.bf16 %v563, %v562
      %v572 = vunpack.c.l.b16 %v564
      %v573 = vunpack.c.h.b16 %v564
      %v574 = vunpack.c.l.b16 %v565
      %v575 = vunpack.c.h.b16 %v565
      %v576 = vunpack.c.l.b16 %v566
      %v577 = vunpack.c.h.b16 %v566
      %v578 = vunpack.c.l.b16 %v567
      %v579 = vunpack.c.h.b16 %v567
      %v580 = vpack.c.b16 %v572, %v572
      %v581 = vpack.c.b16 %v573, %v573
      %v582 = vpack.c.b16 %v574, %v574
      %v583 = vpack.c.b16 %v575, %v575
      %v584 = vpack.c.b16 %v576, %v576
      %v585 = vpack.c.b16 %v577, %v577
      %v586 = vpack.c.b16 %v578, %v578
      %v587 = vpack.c.b16 %v579, %v579
      %vm588 = vsmask.f32 4368
      %vm589 = vmor %vm472, %vm588
      %v591 = vshrl.u32 %v580, 16
      %v593 = vrot.slane %v591, 7
      %v594 = vshll.u32 %v580, 16
      %v596 = vor.u32 %v593, %v594
      %v597 = vrot.slane %v593, 4
      %v599 = vshrl.u32 %v581, 16
      %v601 = vrot.slane %v599, 7
      %v602 = vshll.u32 %v581, 16
      %v604 = vor.u32 %v601, %v602
      %v605 = vsel %vm589, %v597, %v604
      %v606 = vrot.slane %v601, 4
      %v608 = vshrl.u32 %v582, 16
      %v610 = vrot.slane %v608, 7
      %v611 = vshll.u32 %v582, 16
      %v613 = vor.u32 %v610, %v611
      %v614 = vrot.slane %v610, 4
      %v616 = vshrl.u32 %v583, 16
      %v618 = vrot.slane %v616, 7
      %v619 = vshll.u32 %v583, 16
      %v621 = vor.u32 %v618, %v619
      %v622 = vsel %vm589, %v614, %v621
      %v623 = vrot.slane %v618, 4
      %v625 = vshrl.u32 %v584, 16
      %v627 = vrot.slane %v625, 7
      %v628 = vshll.u32 %v584, 16
      %v630 = vor.u32 %v627, %v628
      %v631 = vrot.slane %v627, 4
      %v633 = vshrl.u32 %v585, 16
      %v635 = vrot.slane %v633, 7
      %v636 = vshll.u32 %v585, 16
      %v638 = vor.u32 %v635, %v636
      %v639 = vsel %vm589, %v631, %v638
      %v640 = vrot.slane %v635, 4
      %v642 = vshrl.u32 %v586, 16
      %v644 = vrot.slane %v642, 7
      %v645 = vshll.u32 %v586, 16
      %v647 = vor.u32 %v644, %v645
      %v648 = vrot.slane %v644, 4
      %v650 = vshrl.u32 %v587, 16
      %v652 = vrot.slane %v650, 7
      %v653 = vshll.u32 %v587, 16
      %v655 = vor.u32 %v652, %v653
      %v656 = vsel %vm589, %v648, %v655
      %v657 = vrot.slane %v652, 4
      %s670 = scalar_lea.vmem [#allocation2], 12
      %vm671 = vcmask 1043456
      %vm672 = vmand %vm671, %vm492
      %v673 = vld [vmem:[%s670] sm:$0xf]
      %v674 = vsel %vm672, %v596, %v673
      %675 = vst [vmem:[%s670] sm:$0xf] %v674
      %676 = vst [vmem:[%s670 + $0x4] sm:$0xf] %v605
      %v677 = vld [vmem:[%s670 + $0x8] sm:$0x1]
      %v678 = vsel %vm473, %v606, %v677
      %679 = vst [vmem:[%s670 + $0x8] sm:$0x1] %v678
      %v680 = vld [vmem:[%s670 + $0xc] sm:$0xf]
      %v681 = vsel %vm672, %v613, %v680
      %682 = vst [vmem:[%s670 + $0xc] sm:$0xf] %v681
      %683 = vst [vmem:[%s670 + $0x10] sm:$0xf] %v622
      %v684 = vld [vmem:[%s670 + $0x14] sm:$0x1]
      %v685 = vsel %vm473, %v623, %v684
      %686 = vst [vmem:[%s670 + $0x14] sm:$0x1] %v685
      %v687 = vld [vmem:[%s670 + $0x18] sm:$0xf]
      %v688 = vsel %vm672, %v630, %v687
      %689 = vst [vmem:[%s670 + $0x18] sm:$0xf] %v688
      %690 = vst [vmem:[%s670 + $0x1c] sm:$0xf] %v639
      %v691 = vld [vmem:[%s670 + $0x20] sm:$0x1]
      %v692 = vsel %vm473, %v640, %v691
      %693 = vst [vmem:[%s670 + $0x20] sm:$0x1] %v692
      %v694 = vld [vmem:[%s670 + $0x24] sm:$0xf]
      %v695 = vsel %vm672, %v647, %v694
      %696 = vst [vmem:[%s670 + $0x24] sm:$0xf] %v695
      %697 = vst [vmem:[%s670 + $0x28] sm:$0xf] %v656
      %v698 = vld [vmem:[%s670 + $0x2c] sm:$0x1]
      %v699 = vsel %vm473, %v657, %v698
      %700 = vst [vmem:[%s670 + $0x2c] sm:$0x1] %v699
      %v701 = vld [vmem:[%s427] sm:$0xf]
      %v702 = vld [vmem:[%s427 + $0x4] sm:$0xf]
      %v703 = vunpack.c.l.bf16 %v701
      %v704 = vunpack.c.l.bf16 %v702
      %v705 = vmul.f32 %v703, %v532
      %v706 = vmul.f32 %v704, %v532
      %v707 = vadd.f32 %v705, %v546
      %v708 = vadd.f32 %v706, %v546
      %v709 = vmax.f32 %v707, 0.0
      %v710 = vmax.f32 %v708, 0.0
      %v711 = vpack.c.bf16 %v710, %v709
      %p712 = scmp.eq.s32.totalorder %s24, 0
      %s713 = scalar_select %p712, 1, 0
      %v714 = vstv %s713
      %vm715 = vcmp.eq.s32.totalorder %v714, 1
      %v716 = vsel %vm715, 0, %v711
      %v718 = vunpack.c.l.b16 %v716
      %v719 = vunpack.c.h.b16 %v716
      %v720 = vpack.c.b16 %v718, %v718
      %v721 = vpack.c.b16 %v719, %v719
      %v723 = vshrl.u32 %v720, 16
      %v725 = vrot.slane %v723, 7
      %v726 = vshll.u32 %v720, 16
      %v728 = vor.u32 %v725, %v726
      %v729 = vrot.slane %v725, 4
      %v731 = vshrl.u32 %v721, 16
      %v733 = vrot.slane %v731, 7
      %v734 = vshll.u32 %v721, 16
      %v736 = vor.u32 %v733, %v734
      %v737 = vsel %vm589, %v729, %v736
      %v738 = vrot.slane %v733, 4
      %v742 = vld [vmem:[#allocation2] sm:$0xf]
      %v743 = vsel %vm672, %v728, %v742
      %744 = vst [vmem:[#allocation2] sm:$0xf] %v743
      %745 = vst [vmem:[#allocation2 + $0x4] sm:$0xf] %v737
      %v746 = vld [vmem:[#allocation2 + $0x8] sm:$0x1]
      %v747 = vsel %vm473, %v738, %v746
      %748 = vst [vmem:[#allocation2 + $0x8] sm:$0x1] %v747
      %v749 = vld [vmem:[%s444] sm:$0xf]
      %v750 = vld [vmem:[%s444 + $0x4] sm:$0xf]
      %v751 = vunpack.c.l.bf16 %v749
      %v752 = vunpack.c.l.bf16 %v750
      %v753 = vmul.f32 %v751, %v532
      %v754 = vmul.f32 %v752, %v532
      %v755 = vadd.f32 %v753, %v546
      %v756 = vadd.f32 %v754, %v546
      %v757 = vmax.f32 %v755, 0.0
      %v758 = vmax.f32 %v756, 0.0
      %v759 = vpack.c.bf16 %v758, %v757
      %p760 = scmp.eq.s32.totalorder %s24, 3
      %s761 = scalar_select %p760, 1, 0
      %v762 = vstv %s761
      %vm763 = vcmp.eq.s32.totalorder %v762, 1
      %v764 = vsel %vm763, 0, %v759
      %v766 = vunpack.c.l.b16 %v764
      %v767 = vunpack.c.h.b16 %v764
      %v768 = vpack.c.b16 %v766, %v766
      %v769 = vpack.c.b16 %v767, %v767
      %v771 = vshrl.u32 %v768, 16
      %v773 = vrot.slane %v771, 7
      %v774 = vshll.u32 %v768, 16
      %v776 = vor.u32 %v773, %v774
      %v777 = vrot.slane %v773, 4
      %v779 = vshrl.u32 %v769, 16
      %v781 = vrot.slane %v779, 7
      %v782 = vshll.u32 %v769, 16
      %v784 = vor.u32 %v781, %v782
      %v785 = vsel %vm589, %v777, %v784
      %v786 = vrot.slane %v781, 4
      %s790 = scalar_lea.vmem [#allocation2], 60
      %v791 = vld [vmem:[%s790] sm:$0xf]
      %v792 = vsel %vm672, %v776, %v791
      %793 = vst [vmem:[%s790] sm:$0xf] %v792
      %794 = vst [vmem:[%s790 + $0x4] sm:$0xf] %v785
      %v795 = vld [vmem:[%s790 + $0x8] sm:$0x1]
      %v796 = vsel %vm473, %v786, %v795
      %797 = vst [vmem:[%s790 + $0x8] sm:$0x1] %v796
      %v798 = vld [vmem:[#allocation2] sm:$0xf]
      %v799 = vld [vmem:[#allocation2 + $0x4] sm:$0xf]
      %v800 = vld [vmem:[#allocation2 + $0xc] sm:$0xf]
      %v801 = vld [vmem:[#allocation2 + $0x10] sm:$0xf]
      %v802 = vld [vmem:[#allocation2 + $0x18] sm:$0xf]
      %v803 = vld [vmem:[#allocation2 + $0x1c] sm:$0xf]
      %v804 = vld [vmem:[#allocation2 + $0x24] sm:$0xf]
      %v805 = vld [vmem:[#allocation2 + $0x28] sm:$0xf]
      %v806 = vld [vmem:[#allocation2 + $0x8] sm:$0x1]
      %v807 = vld [vmem:[#allocation2 + $0x14] sm:$0x1]
      %v808 = vld [vmem:[#allocation2 + $0x20] sm:$0x1]
      %v809 = vld [vmem:[#allocation2 + $0x2c] sm:$0x1]
      %vm810 = vsmask.f32 3328
      %vm811 = vsmask.f32 7440
      %vm812 = vmor %vm810, %vm811
      %v814 = vshrl.u32 %v798, 16
      %v816 = vrot.slane %v814, 4
      %v817 = vshll.u32 %v798, 16
      %v819 = vrot.slane %v817, 5
      %v820 = vor.u32 %v816, %v819
      %v821 = vrot.slane %v820, 4
      %v823 = vshll.u32 %v799, 16
      %v825 = vrot.slane %v823, 5
      %v826 = vsel %vm812, %v821, %v825
      %v827 = vshrl.u32 %v799, 16
      %v829 = vrot.slane %v827, 4
      %v830 = vor.u32 %v829, %v825
      %v831 = vrot.slane %v830, 4
      %v833 = vshll.u32 %v806, 16
      %v835 = vrot.slane %v833, 5
      %v836 = vsel %vm812, %v831, %v835
      %v838 = vshrl.u32 %v800, 16
      %v840 = vrot.slane %v838, 4
      %v841 = vshll.u32 %v800, 16
      %v843 = vrot.slane %v841, 5
      %v844 = vor.u32 %v840, %v843
      %v845 = vrot.slane %v844, 4
      %v847 = vshll.u32 %v801, 16
      %v849 = vrot.slane %v847, 5
      %v850 = vsel %vm812, %v845, %v849
      %v851 = vshrl.u32 %v801, 16
      %v853 = vrot.slane %v851, 4
      %v854 = vor.u32 %v853, %v849
      %v855 = vrot.slane %v854, 4
      %v857 = vshll.u32 %v807, 16
      %v859 = vrot.slane %v857, 5
      %v860 = vsel %vm812, %v855, %v859
      %v862 = vshrl.u32 %v802, 16
      %v864 = vrot.slane %v862, 4
      %v865 = vshll.u32 %v802, 16
      %v867 = vrot.slane %v865, 5
      %v868 = vor.u32 %v864, %v867
      %v869 = vrot.slane %v868, 4
      %v871 = vshll.u32 %v803, 16
      %v873 = vrot.slane %v871, 5
      %v874 = vsel %vm812, %v869, %v873
      %v875 = vshrl.u32 %v803, 16
      %v877 = vrot.slane %v875, 4
      %v878 = vor.u32 %v877, %v873
      %v879 = vrot.slane %v878, 4
      %v881 = vshll.u32 %v808, 16
      %v883 = vrot.slane %v881, 5
      %v884 = vsel %vm812, %v879, %v883
      %v886 = vshrl.u32 %v804, 16
      %v888 = vrot.slane %v886, 4
      %v889 = vshll.u32 %v804, 16
      %v891 = vrot.slane %v889, 5
      %v892 = vor.u32 %v888, %v891
      %v893 = vrot.slane %v892, 4
      %v895 = vshll.u32 %v805, 16
      %v897 = vrot.slane %v895, 5
      %v898 = vsel %vm812, %v893, %v897
      %v899 = vshrl.u32 %v805, 16
      %v901 = vrot.slane %v899, 4
      %v902 = vor.u32 %v901, %v897
      %v903 = vrot.slane %v902, 4
      %v905 = vshll.u32 %v809, 16
      %v907 = vrot.slane %v905, 5
      %v908 = vsel %vm812, %v903, %v907
      %v909 = vld [vmem:[#allocation2] sm:$0xe]
      %v910 = vld [vmem:[#allocation2 + $0xc] sm:$0xe]
      %v911 = vld [vmem:[#allocation2 + $0x18] sm:$0xe]
      %v912 = vld [vmem:[#allocation2 + $0x24] sm:$0xe]
      %vm925 = vcmask 1042432
      %vm926 = vcmask 1046532
      %vm927 = vmor %vm925, %vm926
      %v928 = vrot.slane %v909, 5
      %v929 = vrot.slane %v928, 4
      %v930 = vrot.slane %v799, 5
      %v931 = vsel %vm927, %v929, %v930
      %v932 = vrot.slane %v930, 4
      %v933 = vrot.slane %v806, 5
      %v934 = vsel %vm927, %v932, %v933
      %v935 = vrot.slane %v910, 5
      %v936 = vrot.slane %v935, 4
      %v937 = vrot.slane %v801, 5
      %v938 = vsel %vm927, %v936, %v937
      %v939 = vrot.slane %v937, 4
      %v940 = vrot.slane %v807, 5
      %v941 = vsel %vm927, %v939, %v940
      %v942 = vrot.slane %v911, 5
      %v943 = vrot.slane %v942, 4
      %v944 = vrot.slane %v803, 5
      %v945 = vsel %vm927, %v943, %v944
      %v946 = vrot.slane %v944, 4
      %v947 = vrot.slane %v808, 5
      %v948 = vsel %vm927, %v946, %v947
      %v949 = vrot.slane %v912, 5
      %v950 = vrot.slane %v949, 4
      %v951 = vrot.slane %v805, 5
      %v952 = vsel %vm927, %v950, %v951
      %v953 = vrot.slane %v951, 4
      %v954 = vrot.slane %v809, 5
      %v955 = vsel %vm927, %v953, %v954
      %v960 = vunpack.c.l.b16 %v798
      %v961 = vunpack.c.l.b16 %v799
      %v962 = vunpack.c.l.b16 %v800
      %v963 = vunpack.c.l.b16 %v801
      %v964 = vunpack.c.l.b16 %v802
      %v965 = vunpack.c.l.b16 %v803
      %v966 = vunpack.c.l.b16 %v804
      %v967 = vunpack.c.l.b16 %v805
      %v968 = vpack.c.b16 %v961, %v960
      %v969 = vpack.c.b16 %v963, %v962
      %v970 = vpack.c.b16 %v965, %v964
      %v971 = vpack.c.b16 %v967, %v966
      %v976 = vunpack.c.l.b16 %v826
      %v977 = vunpack.c.l.b16 %v836
      %v978 = vunpack.c.l.b16 %v850
      %v979 = vunpack.c.l.b16 %v860
      %v980 = vunpack.c.l.b16 %v874
      %v981 = vunpack.c.l.b16 %v884
      %v982 = vunpack.c.l.b16 %v898
      %v983 = vunpack.c.l.b16 %v908
      %v984 = vpack.c.b16 %v977, %v976
      %v985 = vpack.c.b16 %v979, %v978
      %v986 = vpack.c.b16 %v981, %v980
      %v987 = vpack.c.b16 %v983, %v982
      %v992 = vunpack.c.l.b16 %v931
      %v993 = vunpack.c.l.b16 %v934
      %v994 = vunpack.c.l.b16 %v938
      %v995 = vunpack.c.l.b16 %v941
      %v996 = vunpack.c.l.b16 %v945
      %v997 = vunpack.c.l.b16 %v948
      %v998 = vunpack.c.l.b16 %v952
      %v999 = vunpack.c.l.b16 %v955
      %v1000 = vpack.c.b16 %v993, %v992
      %v1001 = vpack.c.b16 %v995, %v994
      %v1002 = vpack.c.b16 %v997, %v996
      %v1003 = vpack.c.b16 %v999, %v998
      %v1008 = vld [vmem:[%s3] sm:$0xf]
      %v1009 = vld [vmem:[%s3 + $0x4] sm:$0xf]
      %v1010 = vld [vmem:[%s3 + $0x8] sm:$0xf]
      %v1011 = vld [vmem:[%s3 + $0xc] sm:$0xf]
      %v1012 = vld [vmem:[%s3 + $0x10] sm:$0xf]
      %v1013 = vld [vmem:[%s3 + $0x14] sm:$0xf]
      %v1014 = vld [vmem:[%s3 + $0x18] sm:$0xf]
      %v1015 = vld [vmem:[%s3 + $0x1c] sm:$0xf]
      %v1016 = vld [vmem:[%s3 + $0x20] sm:$0xf]
      %v1017 = vld [vmem:[%s3 + $0x24] sm:$0xf]
      %v1018 = vld [vmem:[%s3 + $0x28] sm:$0xf]
      %v1019 = vld [vmem:[%s3 + $0x2c] sm:$0xf]
      %v1020 = vld [vmem:[%s3 + $0x30] sm:$0xf]
      %v1021 = vld [vmem:[%s3 + $0x34] sm:$0xf]
      %v1022 = vld [vmem:[%s3 + $0x38] sm:$0xf]
      %v1023 = vld [vmem:[%s3 + $0x3c] sm:$0xf]
      %v1024 = vld [vmem:[%s3 + $0x40] sm:$0xf]
      %v1025 = vld [vmem:[%s3 + $0x44] sm:$0xf]
      %v1026 = vld [vmem:[%s3 + $0x48] sm:$0xf]
      %v1027 = vld [vmem:[%s3 + $0x4c] sm:$0xf]
      %v1028 = vld [vmem:[%s3 + $0x50] sm:$0xf]
      %v1029 = vld [vmem:[%s3 + $0x54] sm:$0xf]
      %v1030 = vld [vmem:[%s3 + $0x58] sm:$0xf]
      %v1031 = vld [vmem:[%s3 + $0x5c] sm:$0xf]
      %v1032 = vld [vmem:[%s3 + $0x60] sm:$0xf]
      %v1033 = vld [vmem:[%s3 + $0x64] sm:$0xf]
      %v1034 = vld [vmem:[%s3 + $0x68] sm:$0xf]
      %v1035 = vld [vmem:[%s3 + $0x6c] sm:$0xf]
      %v1036 = vld [vmem:[%s3 + $0x70] sm:$0xf]
      %v1037 = vld [vmem:[%s3 + $0x74] sm:$0xf]
      %v1038 = vld [vmem:[%s3 + $0x78] sm:$0xf]
      %v1039 = vld [vmem:[%s3 + $0x7c] sm:$0xf]
      %v1040 = vld [vmem:[%s3 + $0x80] sm:$0xf]
      %v1041 = vld [vmem:[%s3 + $0x84] sm:$0xf]
      %v1042 = vld [vmem:[%s3 + $0x88] sm:$0xf]
      %v1043 = vld [vmem:[%s3 + $0x8c] sm:$0xf]
      %v1044 = vld [vmem:[%s3 + $0x90] sm:$0xf]
      %v1045 = vld [vmem:[%s3 + $0x94] sm:$0xf]
      %v1046 = vld [vmem:[%s3 + $0x98] sm:$0xf]
      %v1047 = vld [vmem:[%s3 + $0x9c] sm:$0xf]
      %v1048 = vld [vmem:[%s3 + $0xa0] sm:$0xf]
      %v1049 = vld [vmem:[%s3 + $0xa4] sm:$0xf]
      %v1050 = vld [vmem:[%s3 + $0xa8] sm:$0xf]
      %v1051 = vld [vmem:[%s3 + $0xac] sm:$0xf]
      %v1052 = vld [vmem:[%s3 + $0xb0] sm:$0xf]
      %v1053 = vld [vmem:[%s3 + $0xb4] sm:$0xf]
      %v1054 = vld [vmem:[%s3 + $0xb8] sm:$0xf]
      %v1055 = vld [vmem:[%s3 + $0xbc] sm:$0xf]
      %v1056 = vld [vmem:[%s670] sm:$0xf]
      %v1057 = vld [vmem:[%s670 + $0x4] sm:$0xf]
      %v1058 = vld [vmem:[%s670 + $0xc] sm:$0xf]
      %v1059 = vld [vmem:[%s670 + $0x10] sm:$0xf]
      %v1060 = vld [vmem:[%s670 + $0x18] sm:$0xf]
      %v1061 = vld [vmem:[%s670 + $0x1c] sm:$0xf]
      %v1062 = vld [vmem:[%s670 + $0x24] sm:$0xf]
      %v1063 = vld [vmem:[%s670 + $0x28] sm:$0xf]
      %v1064 = vld [vmem:[%s670 + $0x8] sm:$0x1]
      %v1065 = vld [vmem:[%s670 + $0x14] sm:$0x1]
      %v1066 = vld [vmem:[%s670 + $0x20] sm:$0x1]
      %v1067 = vld [vmem:[%s670 + $0x2c] sm:$0x1]
      %v1069 = vshrl.u32 %v1056, 16
      %v1071 = vrot.slane %v1069, 4
      %v1072 = vshll.u32 %v1056, 16
      %v1074 = vrot.slane %v1072, 5
      %v1075 = vor.u32 %v1071, %v1074
      %v1076 = vrot.slane %v1075, 4
      %v1078 = vshll.u32 %v1057, 16
      %v1080 = vrot.slane %v1078, 5
      %v1081 = vsel %vm812, %v1076, %v1080
      %v1082 = vshrl.u32 %v1057, 16
      %v1084 = vrot.slane %v1082, 4
      %v1085 = vor.u32 %v1084, %v1080
      %v1086 = vrot.slane %v1085, 4
      %v1088 = vshll.u32 %v1064, 16
      %v1090 = vrot.slane %v1088, 5
      %v1091 = vsel %vm812, %v1086, %v1090
      %v1093 = vshrl.u32 %v1058, 16
      %v1095 = vrot.slane %v1093, 4
      %v1096 = vshll.u32 %v1058, 16
      %v1098 = vrot.slane %v1096, 5
      %v1099 = vor.u32 %v1095, %v1098
      %v1100 = vrot.slane %v1099, 4
      %v1102 = vshll.u32 %v1059, 16
      %v1104 = vrot.slane %v1102, 5
      %v1105 = vsel %vm812, %v1100, %v1104
      %v1106 = vshrl.u32 %v1059, 16
      %v1108 = vrot.slane %v1106, 4
      %v1109 = vor.u32 %v1108, %v1104
      %v1110 = vrot.slane %v1109, 4
      %v1112 = vshll.u32 %v1065, 16
      %v1114 = vrot.slane %v1112, 5
      %v1115 = vsel %vm812, %v1110, %v1114
      %v1117 = vshrl.u32 %v1060, 16
      %v1119 = vrot.slane %v1117, 4
      %v1120 = vshll.u32 %v1060, 16
      %v1122 = vrot.slane %v1120, 5
      %v1123 = vor.u32 %v1119, %v1122
      %v1124 = vrot.slane %v1123, 4
      %v1126 = vshll.u32 %v1061, 16
      %v1128 = vrot.slane %v1126, 5
      %v1129 = vsel %vm812, %v1124, %v1128
      %v1130 = vshrl.u32 %v1061, 16
      %v1132 = vrot.slane %v1130, 4
      %v1133 = vor.u32 %v1132, %v1128
      %v1134 = vrot.slane %v1133, 4
      %v1136 = vshll.u32 %v1066, 16
      %v1138 = vrot.slane %v1136, 5
      %v1139 = vsel %vm812, %v1134, %v1138
      %v1141 = vshrl.u32 %v1062, 16
      %v1143 = vrot.slane %v1141, 4
      %v1144 = vshll.u32 %v1062, 16
      %v1146 = vrot.slane %v1144, 5
      %v1147 = vor.u32 %v1143, %v1146
      %v1148 = vrot.slane %v1147, 4
      %v1150 = vshll.u32 %v1063, 16
      %v1152 = vrot.slane %v1150, 5
      %v1153 = vsel %vm812, %v1148, %v1152
      %v1154 = vshrl.u32 %v1063, 16
      %v1156 = vrot.slane %v1154, 4
      %v1157 = vor.u32 %v1156, %v1152
      %v1158 = vrot.slane %v1157, 4
      %v1160 = vshll.u32 %v1067, 16
      %v1162 = vrot.slane %v1160, 5
      %v1163 = vsel %vm812, %v1158, %v1162
      %v1164 = vld [vmem:[%s670] sm:$0xe]
      %v1165 = vld [vmem:[%s670 + $0xc] sm:$0xe]
      %v1166 = vld [vmem:[%s670 + $0x18] sm:$0xe]
      %v1167 = vld [vmem:[%s670 + $0x24] sm:$0xe]
      %v1180 = vrot.slane %v1164, 5
      %v1181 = vrot.slane %v1180, 4
      %v1182 = vrot.slane %v1057, 5
      %v1183 = vsel %vm927, %v1181, %v1182
      %v1184 = vrot.slane %v1182, 4
      %v1185 = vrot.slane %v1064, 5
      %v1186 = vsel %vm927, %v1184, %v1185
      %v1187 = vrot.slane %v1165, 5
      %v1188 = vrot.slane %v1187, 4
      %v1189 = vrot.slane %v1059, 5
      %v1190 = vsel %vm927, %v1188, %v1189
      %v1191 = vrot.slane %v1189, 4
      %v1192 = vrot.slane %v1065, 5
      %v1193 = vsel %vm927, %v1191, %v1192
      %v1194 = vrot.slane %v1166, 5
      %v1195 = vrot.slane %v1194, 4
      %v1196 = vrot.slane %v1061, 5
      %v1197 = vsel %vm927, %v1195, %v1196
      %v1198 = vrot.slane %v1196, 4
      %v1199 = vrot.slane %v1066, 5
      %v1200 = vsel %vm927, %v1198, %v1199
      %v1201 = vrot.slane %v1167, 5
      %v1202 = vrot.slane %v1201, 4
      %v1203 = vrot.slane %v1063, 5
      %v1204 = vsel %vm927, %v1202, %v1203
      %v1205 = vrot.slane %v1203, 4
      %v1206 = vrot.slane %v1067, 5
      %v1207 = vsel %vm927, %v1205, %v1206
      %v1212 = vunpack.c.l.b16 %v1056
      %v1213 = vunpack.c.l.b16 %v1057
      %v1214 = vunpack.c.l.b16 %v1058
      %v1215 = vunpack.c.l.b16 %v1059
      %v1216 = vunpack.c.l.b16 %v1060
      %v1217 = vunpack.c.l.b16 %v1061
      %v1218 = vunpack.c.l.b16 %v1062
      %v1219 = vunpack.c.l.b16 %v1063
      %v1220 = vpack.c.b16 %v1213, %v1212
      %v1221 = vpack.c.b16 %v1215, %v1214
      %v1222 = vpack.c.b16 %v1217, %v1216
      %v1223 = vpack.c.b16 %v1219, %v1218
      %v1228 = vunpack.c.l.b16 %v1081
      %v1229 = vunpack.c.l.b16 %v1091
      %v1230 = vunpack.c.l.b16 %v1105
      %v1231 = vunpack.c.l.b16 %v1115
      %v1232 = vunpack.c.l.b16 %v1129
      %v1233 = vunpack.c.l.b16 %v1139
      %v1234 = vunpack.c.l.b16 %v1153
      %v1235 = vunpack.c.l.b16 %v1163
      %v1236 = vpack.c.b16 %v1229, %v1228
      %v1237 = vpack.c.b16 %v1231, %v1230
      %v1238 = vpack.c.b16 %v1233, %v1232
      %v1239 = vpack.c.b16 %v1235, %v1234
      %v1244 = vunpack.c.l.b16 %v1183
      %v1245 = vunpack.c.l.b16 %v1186
      %v1246 = vunpack.c.l.b16 %v1190
      %v1247 = vunpack.c.l.b16 %v1193
      %v1248 = vunpack.c.l.b16 %v1197
      %v1249 = vunpack.c.l.b16 %v1200
      %v1250 = vunpack.c.l.b16 %v1204
      %v1251 = vunpack.c.l.b16 %v1207
      %v1252 = vpack.c.b16 %v1245, %v1244
      %v1253 = vpack.c.b16 %v1247, %v1246
      %v1254 = vpack.c.b16 %v1249, %v1248
      %v1255 = vpack.c.b16 %v1251, %v1250
      %s1260 = scalar_lea.vmem %s3, 192
      %v1261 = vld [vmem:[%s1260] sm:$0xf]
      %v1262 = vld [vmem:[%s1260 + $0x4] sm:$0xf]
      %v1263 = vld [vmem:[%s1260 + $0x8] sm:$0xf]
      %v1264 = vld [vmem:[%s1260 + $0xc] sm:$0xf]
      %v1265 = vld [vmem:[%s1260 + $0x10] sm:$0xf]
      %v1266 = vld [vmem:[%s1260 + $0x14] sm:$0xf]
      %v1267 = vld [vmem:[%s1260 + $0x18] sm:$0xf]
      %v1268 = vld [vmem:[%s1260 + $0x1c] sm:$0xf]
      %v1269 = vld [vmem:[%s1260 + $0x20] sm:$0xf]
      %v1270 = vld [vmem:[%s1260 + $0x24] sm:$0xf]
      %v1271 = vld [vmem:[%s1260 + $0x28] sm:$0xf]
      %v1272 = vld [vmem:[%s1260 + $0x2c] sm:$0xf]
      %v1273 = vld [vmem:[%s1260 + $0x30] sm:$0xf]
      %v1274 = vld [vmem:[%s1260 + $0x34] sm:$0xf]
      %v1275 = vld [vmem:[%s1260 + $0x38] sm:$0xf]
      %v1276 = vld [vmem:[%s1260 + $0x3c] sm:$0xf]
      %v1277 = vld [vmem:[%s1260 + $0x40] sm:$0xf]
      %v1278 = vld [vmem:[%s1260 + $0x44] sm:$0xf]
      %v1279 = vld [vmem:[%s1260 + $0x48] sm:$0xf]
      %v1280 = vld [vmem:[%s1260 + $0x4c] sm:$0xf]
      %v1281 = vld [vmem:[%s1260 + $0x50] sm:$0xf]
      %v1282 = vld [vmem:[%s1260 + $0x54] sm:$0xf]
      %v1283 = vld [vmem:[%s1260 + $0x58] sm:$0xf]
      %v1284 = vld [vmem:[%s1260 + $0x5c] sm:$0xf]
      %v1285 = vld [vmem:[%s1260 + $0x60] sm:$0xf]
      %v1286 = vld [vmem:[%s1260 + $0x64] sm:$0xf]
      %v1287 = vld [vmem:[%s1260 + $0x68] sm:$0xf]
      %v1288 = vld [vmem:[%s1260 + $0x6c] sm:$0xf]
      %v1289 = vld [vmem:[%s1260 + $0x70] sm:$0xf]
      %v1290 = vld [vmem:[%s1260 + $0x74] sm:$0xf]
      %v1291 = vld [vmem:[%s1260 + $0x78] sm:$0xf]
      %v1292 = vld [vmem:[%s1260 + $0x7c] sm:$0xf]
      %v1293 = vld [vmem:[%s1260 + $0x80] sm:$0xf]
      %v1294 = vld [vmem:[%s1260 + $0x84] sm:$0xf]
      %v1295 = vld [vmem:[%s1260 + $0x88] sm:$0xf]
      %v1296 = vld [vmem:[%s1260 + $0x8c] sm:$0xf]
      %v1297 = vld [vmem:[%s1260 + $0x90] sm:$0xf]
      %v1298 = vld [vmem:[%s1260 + $0x94] sm:$0xf]
      %v1299 = vld [vmem:[%s1260 + $0x98] sm:$0xf]
      %v1300 = vld [vmem:[%s1260 + $0x9c] sm:$0xf]
      %v1301 = vld [vmem:[%s1260 + $0xa0] sm:$0xf]
      %v1302 = vld [vmem:[%s1260 + $0xa4] sm:$0xf]
      %v1303 = vld [vmem:[%s1260 + $0xa8] sm:$0xf]
      %v1304 = vld [vmem:[%s1260 + $0xac] sm:$0xf]
      %v1305 = vld [vmem:[%s1260 + $0xb0] sm:$0xf]
      %v1306 = vld [vmem:[%s1260 + $0xb4] sm:$0xf]
      %v1307 = vld [vmem:[%s1260 + $0xb8] sm:$0xf]
      %v1308 = vld [vmem:[%s1260 + $0xbc] sm:$0xf]
      %v1357 = vunpack.c.l.b16 %v1261
      %v1358 = vunpack.c.l.b16 %v1262
      %v1359 = vunpack.c.l.b16 %v1263
      %v1360 = vunpack.c.l.b16 %v1264
      %v1361 = vunpack.c.l.b16 %v1265
      %v1362 = vunpack.c.l.b16 %v1266
      %v1363 = vunpack.c.l.b16 %v1267
      %v1364 = vunpack.c.l.b16 %v1268
      %v1365 = vunpack.c.l.b16 %v1269
      %v1366 = vunpack.c.l.b16 %v1270
      %v1367 = vunpack.c.l.b16 %v1271
      %v1368 = vunpack.c.l.b16 %v1272
      %v1369 = vunpack.c.l.b16 %v1273
      %v1370 = vunpack.c.l.b16 %v1274
      %v1371 = vunpack.c.l.b16 %v1275
      %v1372 = vunpack.c.l.b16 %v1276
      %v1373 = vunpack.c.l.b16 %v1277
      %v1374 = vunpack.c.l.b16 %v1278
      %v1375 = vunpack.c.l.b16 %v1279
      %v1376 = vunpack.c.l.b16 %v1280
      %v1377 = vunpack.c.l.b16 %v1281
      %v1378 = vunpack.c.l.b16 %v1282
      %v1379 = vunpack.c.l.b16 %v1283
      %v1380 = vunpack.c.l.b16 %v1284
      %v1381 = vunpack.c.l.b16 %v1285
      %v1382 = vunpack.c.l.b16 %v1286
      %v1383 = vunpack.c.l.b16 %v1287
      %v1384 = vunpack.c.l.b16 %v1288
      %v1385 = vunpack.c.l.b16 %v1289
      %v1386 = vunpack.c.l.b16 %v1290
      %v1387 = vunpack.c.l.b16 %v1291
      %v1388 = vunpack.c.l.b16 %v1292
      %v1389 = vunpack.c.l.b16 %v1293
      %v1390 = vunpack.c.l.b16 %v1294
      %v1391 = vunpack.c.l.b16 %v1295
      %v1392 = vunpack.c.l.b16 %v1296
      %v1393 = vunpack.c.l.b16 %v1297
      %v1394 = vunpack.c.l.b16 %v1298
      %v1395 = vunpack.c.l.b16 %v1299
      %v1396 = vunpack.c.l.b16 %v1300
      %v1397 = vunpack.c.l.b16 %v1301
      %v1398 = vunpack.c.l.b16 %v1302
      %v1399 = vunpack.c.l.b16 %v1303
      %v1400 = vunpack.c.l.b16 %v1304
      %v1401 = vunpack.c.l.b16 %v1305
      %v1402 = vunpack.c.l.b16 %v1306
      %v1403 = vunpack.c.l.b16 %v1307
      %v1404 = vunpack.c.l.b16 %v1308
      %v1405 = vpack.c.b16 %v1358, %v1357
      %v1406 = vpack.c.b16 %v1360, %v1359
      %v1407 = vpack.c.b16 %v1362, %v1361
      %v1408 = vpack.c.b16 %v1364, %v1363
      %v1409 = vpack.c.b16 %v1366, %v1365
      %v1410 = vpack.c.b16 %v1368, %v1367
      %v1411 = vpack.c.b16 %v1370, %v1369
      %v1412 = vpack.c.b16 %v1372, %v1371
      %v1413 = vpack.c.b16 %v1374, %v1373
      %v1414 = vpack.c.b16 %v1376, %v1375
      %v1415 = vpack.c.b16 %v1378, %v1377
      %v1416 = vpack.c.b16 %v1380, %v1379
      %v1417 = vpack.c.b16 %v1382, %v1381
      %v1418 = vpack.c.b16 %v1384, %v1383
      %v1419 = vpack.c.b16 %v1386, %v1385
      %v1420 = vpack.c.b16 %v1388, %v1387
      %v1421 = vpack.c.b16 %v1390, %v1389
      %v1422 = vpack.c.b16 %v1392, %v1391
      %v1423 = vpack.c.b16 %v1394, %v1393
      %v1424 = vpack.c.b16 %v1396, %v1395
      %v1425 = vpack.c.b16 %v1398, %v1397
      %v1426 = vpack.c.b16 %v1400, %v1399
      %v1427 = vpack.c.b16 %v1402, %v1401
      %v1428 = vpack.c.b16 %v1404, %v1403
      %1453 = vmatprep.subr.bf16.mxu0 0
      %1454 = vmatpush1.bf16.msra.mxu0 %v1405
      %1455 = vmatprep.subr.bf16.mxu0 0
      %1456 = vmatpush1.bf16.msra.mxu0 %v1406
      %1457 = vmatprep.subr.bf16.mxu0 0
      %1458 = vmatpush1.bf16.msra.mxu0 %v1407
      %1459 = vmatprep.subr.bf16.mxu0 0
      %1460 = vmatpush1.bf16.msra.mxu0 %v1408
      %1461 = vmatprep.subr.bf16.mxu0 0
      %1462 = vmatpush1.bf16.msra.mxu0 %v1409
      %1463 = vmatprep.subr.bf16.mxu0 0
      %1464 = vmatpush1.bf16.msra.mxu0 %v1410
      %1465 = vmatprep.subr.bf16.mxu0 0
      %1466 = vmatpush1.bf16.msra.mxu0 %v1411
      %1467 = vmatprep.subr.bf16.mxu0 0
      %1468 = vmatpush1.bf16.msra.mxu0 %v1412
      %1469 = vmatprep.subr.bf16.mxu0 0
      %1470 = vmatpush1.bf16.msra.mxu0 %v1413
      %1471 = vmatprep.subr.bf16.mxu0 0
      %1472 = vmatpush1.bf16.msra.mxu0 %v1414
      %1473 = vmatprep.subr.bf16.mxu0 0
      %1474 = vmatpush1.bf16.msra.mxu0 %v1415
      %1475 = vmatprep.subr.bf16.mxu0 0
      %1476 = vmatpush1.bf16.msra.mxu0 %v1416
      %1477 = vmatprep.subr.bf16.mxu0 0
      %1478 = vmatpush1.bf16.msra.mxu0 %v1417
      %1479 = vmatprep.subr.bf16.mxu0 0
      %1480 = vmatpush1.bf16.msra.mxu0 %v1418
      %1481 = vmatprep.subr.bf16.mxu0 0
      %1482 = vmatpush1.bf16.msra.mxu0 %v1419
      %1483 = vmatprep.subr.bf16.mxu0 0
      %1484 = vmatpush1.bf16.msra.mxu0 %v1420
      %1485 = vmatprep.mubr.bf16.mxu0 %v1236
      %1486 = vmatmul.mubr.bf16.gmra.mrb[0].mxu0 %v1220
      %v1487 = vpop.f32.mrb[0].mxu0
      %v1488 = vadd.f32 0.0, %v1487
      %v1489 = vpop.f32.mrb[0].mxu0
      %v1490 = vpop.f32.mrb[0].mxu0
      %v1491 = vadd.f32 0.0, %v1490
      %v1492 = vpop.f32.mrb[0].mxu0
      %1493 = vmatprep.mubr.bf16.mxu0 %v1237
      %1494 = vmatmul.mubr.bf16.gmra.mrb[0].mxu0 %v1221
      %v1495 = vpop.f32.mrb[0].mxu0
      %v1496 = vadd.f32 0.0, %v1495
      %v1497 = vpop.f32.mrb[0].mxu0
      %v1498 = vpop.f32.mrb[0].mxu0
      %v1499 = vadd.f32 0.0, %v1498
      %v1500 = vpop.f32.mrb[0].mxu0
      %1501 = vmatprep.mubr.bf16.mxu0 %v1238
      %1502 = vmatmul.mubr.bf16.gmra.mrb[0].mxu0 %v1222
      %v1503 = vpop.f32.mrb[0].mxu0
      %v1504 = vadd.f32 0.0, %v1503
      %v1505 = vpop.f32.mrb[0].mxu0
      %v1506 = vpop.f32.mrb[0].mxu0
      %v1507 = vadd.f32 0.0, %v1506
      %v1508 = vpop.f32.mrb[0].mxu0
      %1509 = vmatprep.mubr.bf16.mxu0 %v1239
      %1510 = vmatmul.mubr.bf16.gmra.mrb[0].mxu0 %v1223
      %v1511 = vpop.f32.mrb[0].mxu0
      %v1512 = vadd.f32 0.0, %v1511
      %v1513 = vpop.f32.mrb[0].mxu0
      %v1514 = vpop.f32.mrb[0].mxu0
      %v1515 = vadd.f32 0.0, %v1514
      %v1516 = vpop.f32.mrb[0].mxu0
      %1517 = vdwg.mxu0
      %1518 = vmatprep.subr.bf16.mxu0 0
      %1519 = vmatpush1.bf16.msra.mxu0 %v1421
      %1520 = vmatprep.subr.bf16.mxu0 0
      %1521 = vmatpush1.bf16.msra.mxu0 %v1422
      %1522 = vmatprep.subr.bf16.mxu0 0
      %1523 = vmatpush1.bf16.msra.mxu0 %v1423
      %1524 = vmatprep.subr.bf16.mxu0 0
      %1525 = vmatpush1.bf16.msra.mxu0 %v1424
      %1526 = vmatprep.subr.bf16.mxu0 0
      %1527 = vmatpush1.bf16.msra.mxu0 %v1425
      %1528 = vmatprep.subr.bf16.mxu0 0
      %1529 = vmatpush1.bf16.msra.mxu0 %v1426
      %1530 = vmatprep.subr.bf16.mxu0 0
      %1531 = vmatpush1.bf16.msra.mxu0 %v1427
      %1532 = vmatprep.subr.bf16.mxu0 0
      %1533 = vmatpush1.bf16.msra.mxu0 %v1428
      %1534 = vmatprep.subr.bf16.mxu0 0
      %1535 = vmatpush1.bf16.msra.mxu0 0
      %1536 = vmatprep.subr.bf16.mxu0 0
      %1537 = vmatpush1.bf16.msra.mxu0 0
      %1538 = vmatprep.subr.bf16.mxu0 0
      %1539 = vmatpush1.bf16.msra.mxu0 0
      %1540 = vmatprep.subr.bf16.mxu0 0
      %1541 = vmatpush1.bf16.msra.mxu0 0
      %1542 = vmatprep.subr.bf16.mxu0 0
      %1543 = vmatpush1.bf16.msra.mxu0 0
      %1544 = vmatprep.subr.bf16.mxu0 0
      %1545 = vmatpush1.bf16.msra.mxu0 0
      %1546 = vmatprep.subr.bf16.mxu0 0
      %1547 = vmatpush1.bf16.msra.mxu0 0
      %1548 = vmatprep.subr.bf16.mxu0 0
      %1549 = vmatpush1.bf16.msra.mxu0 0
      %1550 = vmatprep.mubr.bf16.mxu0 0
      %1551 = vmatmul.mubr.bf16.gmra.mrb[0].mxu0 %v1252
      %v1552 = vpop.f32.mrb[0].mxu0
      %v1553 = vadd.f32 %v1488, %v1552
      %v1554 = vpop.f32.mrb[0].mxu0
      %v1555 = vpop.f32.mrb[0].mxu0
      %v1556 = vadd.f32 %v1491, %v1555
      %v1557 = vpop.f32.mrb[0].mxu0
      %1558 = vmatprep.mubr.bf16.mxu0 0
      %1559 = vmatmul.mubr.bf16.gmra.mrb[0].mxu0 %v1253
      %v1560 = vpop.f32.mrb[0].mxu0
      %v1561 = vadd.f32 %v1496, %v1560
      %v1562 = vpop.f32.mrb[0].mxu0
      %v1563 = vpop.f32.mrb[0].mxu0
      %v1564 = vadd.f32 %v1499, %v1563
      %v1565 = vpop.f32.mrb[0].mxu0
      %1566 = vmatprep.mubr.bf16.mxu0 0
      %1567 = vmatmul.mubr.bf16.gmra.mrb[0].mxu0 %v1254
      %v1568 = vpop.f32.mrb[0].mxu0
      %v1569 = vadd.f32 %v1504, %v1568
      %v1570 = vpop.f32.mrb[0].mxu0
      %v1571 = vpop.f32.mrb[0].mxu0
      %v1572 = vadd.f32 %v1507, %v1571
      %v1573 = vpop.f32.mrb[0].mxu0
      %1574 = vmatprep.mubr.bf16.mxu0 0
      %1575 = vmatmul.mubr.bf16.gmra.mrb[0].mxu0 %v1255
      %v1576 = vpop.f32.mrb[0].mxu0
      %v1577 = vadd.f32 %v1512, %v1576
      %v1578 = vpop.f32.mrb[0].mxu0
      %v1579 = vpop.f32.mrb[0].mxu0
      %v1580 = vadd.f32 %v1515, %v1579
      %v1581 = vpop.f32.mrb[0].mxu0
      %1582 = vdwg.mxu0
      %v1631 = vunpack.c.l.b16 %v1008
      %v1632 = vunpack.c.l.b16 %v1009
      %v1633 = vunpack.c.l.b16 %v1010
      %v1634 = vunpack.c.l.b16 %v1011
      %v1635 = vunpack.c.l.b16 %v1012
      %v1636 = vunpack.c.l.b16 %v1013
      %v1637 = vunpack.c.l.b16 %v1014
      %v1638 = vunpack.c.l.b16 %v1015
      %v1639 = vunpack.c.l.b16 %v1016
      %v1640 = vunpack.c.l.b16 %v1017
      %v1641 = vunpack.c.l.b16 %v1018
      %v1642 = vunpack.c.l.b16 %v1019
      %v1643 = vunpack.c.l.b16 %v1020
      %v1644 = vunpack.c.l.b16 %v1021
      %v1645 = vunpack.c.l.b16 %v1022
      %v1646 = vunpack.c.l.b16 %v1023
      %v1647 = vunpack.c.l.b16 %v1024
      %v1648 = vunpack.c.l.b16 %v1025
      %v1649 = vunpack.c.l.b16 %v1026
      %v1650 = vunpack.c.l.b16 %v1027
      %v1651 = vunpack.c.l.b16 %v1028
      %v1652 = vunpack.c.l.b16 %v1029
      %v1653 = vunpack.c.l.b16 %v1030
      %v1654 = vunpack.c.l.b16 %v1031
      %v1655 = vunpack.c.l.b16 %v1032
      %v1656 = vunpack.c.l.b16 %v1033
      %v1657 = vunpack.c.l.b16 %v1034
      %v1658 = vunpack.c.l.b16 %v1035
      %v1659 = vunpack.c.l.b16 %v1036
      %v1660 = vunpack.c.l.b16 %v1037
      %v1661 = vunpack.c.l.b16 %v1038
      %v1662 = vunpack.c.l.b16 %v1039
      %v1663 = vunpack.c.l.b16 %v1040
      %v1664 = vunpack.c.l.b16 %v1041
      %v1665 = vunpack.c.l.b16 %v1042
      %v1666 = vunpack.c.l.b16 %v1043
      %v1667 = vunpack.c.l.b16 %v1044
      %v1668 = vunpack.c.l.b16 %v1045
      %v1669 = vunpack.c.l.b16 %v1046
      %v1670 = vunpack.c.l.b16 %v1047
      %v1671 = vunpack.c.l.b16 %v1048
      %v1672 = vunpack.c.l.b16 %v1049
      %v1673 = vunpack.c.l.b16 %v1050
      %v1674 = vunpack.c.l.b16 %v1051
      %v1675 = vunpack.c.l.b16 %v1052
      %v1676 = vunpack.c.l.b16 %v1053
      %v1677 = vunpack.c.l.b16 %v1054
      %v1678 = vunpack.c.l.b16 %v1055
      %v1679 = vpack.c.b16 %v1632, %v1631
      %v1680 = vpack.c.b16 %v1634, %v1633
      %v1681 = vpack.c.b16 %v1636, %v1635
      %v1682 = vpack.c.b16 %v1638, %v1637
      %v1683 = vpack.c.b16 %v1640, %v1639
      %v1684 = vpack.c.b16 %v1642, %v1641
      %v1685 = vpack.c.b16 %v1644, %v1643
      %v1686 = vpack.c.b16 %v1646, %v1645
      %v1687 = vpack.c.b16 %v1648, %v1647
      %v1688 = vpack.c.b16 %v1650, %v1649
      %v1689 = vpack.c.b16 %v1652, %v1651
      %v1690 = vpack.c.b16 %v1654, %v1653
      %v1691 = vpack.c.b16 %v1656, %v1655
      %v1692 = vpack.c.b16 %v1658, %v1657
      %v1693 = vpack.c.b16 %v1660, %v1659
      %v1694 = vpack.c.b16 %v1662, %v1661
      %v1695 = vpack.c.b16 %v1664, %v1663
      %v1696 = vpack.c.b16 %v1666, %v1665
      %v1697 = vpack.c.b16 %v1668, %v1667
      %v1698 = vpack.c.b16 %v1670, %v1669
      %v1699 = vpack.c.b16 %v1672, %v1671
      %v1700 = vpack.c.b16 %v1674, %v1673
      %v1701 = vpack.c.b16 %v1676, %v1675
      %v1702 = vpack.c.b16 %v1678, %v1677
      %1727 = vmatprep.subr.bf16.mxu0 0
      %1728 = vmatpush1.bf16.msra.mxu0 %v1679
      %1729 = vmatprep.subr.bf16.mxu0 0
      %1730 = vmatpush1.bf16.msra.mxu0 %v1680
      %1731 = vmatprep.subr.bf16.mxu0 0
      %1732 = vmatpush1.bf16.msra.mxu0 %v1681
      %1733 = vmatprep.subr.bf16.mxu0 0
      %1734 = vmatpush1.bf16.msra.mxu0 %v1682
      %1735 = vmatprep.subr.bf16.mxu0 0
      %1736 = vmatpush1.bf16.msra.mxu0 %v1683
      %1737 = vmatprep.subr.bf16.mxu0 0
      %1738 = vmatpush1.bf16.msra.mxu0 %v1684
      %1739 = vmatprep.subr.bf16.mxu0 0
      %1740 = vmatpush1.bf16.msra.mxu0 %v1685
      %1741 = vmatprep.subr.bf16.mxu0 0
      %1742 = vmatpush1.bf16.msra.mxu0 %v1686
      %1743 = vmatprep.subr.bf16.mxu0 0
      %1744 = vmatpush1.bf16.msra.mxu0 %v1687
      %1745 = vmatprep.subr.bf16.mxu0 0
      %1746 = vmatpush1.bf16.msra.mxu0 %v1688
      %1747 = vmatprep.subr.bf16.mxu0 0
      %1748 = vmatpush1.bf16.msra.mxu0 %v1689
      %1749 = vmatprep.subr.bf16.mxu0 0
      %1750 = vmatpush1.bf16.msra.mxu0 %v1690
      %1751 = vmatprep.subr.bf16.mxu0 0
      %1752 = vmatpush1.bf16.msra.mxu0 %v1691
      %1753 = vmatprep.subr.bf16.mxu0 0
      %1754 = vmatpush1.bf16.msra.mxu0 %v1692
      %1755 = vmatprep.subr.bf16.mxu0 0
      %1756 = vmatpush1.bf16.msra.mxu0 %v1693
      %1757 = vmatprep.subr.bf16.mxu0 0
      %1758 = vmatpush1.bf16.msra.mxu0 %v1694
      %1759 = vmatprep.mubr.bf16.mxu0 %v984
      %1760 = vmatmul.mubr.bf16.gmra.mrb[0].mxu0 %v968
      %v1761 = vpop.f32.mrb[0].mxu0
      %v1762 = vadd.f32 %v1553, %v1761
      %v1763 = vpop.f32.mrb[0].mxu0
      %v1764 = vpop.f32.mrb[0].mxu0
      %v1765 = vadd.f32 %v1556, %v1764
      %v1766 = vpop.f32.mrb[0].mxu0
      %1767 = vmatprep.mubr.bf16.mxu0 %v985
      %1768 = vmatmul.mubr.bf16.gmra.mrb[0].mxu0 %v969
      %v1769 = vpop.f32.mrb[0].mxu0
      %v1770 = vadd.f32 %v1561, %v1769
      %v1771 = vpop.f32.mrb[0].mxu0
      %v1772 = vpop.f32.mrb[0].mxu0
      %v1773 = vadd.f32 %v1564, %v1772
      %v1774 = vpop.f32.mrb[0].mxu0
      %1775 = vmatprep.mubr.bf16.mxu0 %v986
      %1776 = vmatmul.mubr.bf16.gmra.mrb[0].mxu0 %v970
      %v1777 = vpop.f32.mrb[0].mxu0
      %v1778 = vadd.f32 %v1569, %v1777
      %v1779 = vpop.f32.mrb[0].mxu0
      %v1780 = vpop.f32.mrb[0].mxu0
      %v1781 = vadd.f32 %v1572, %v1780
      %v1782 = vpop.f32.mrb[0].mxu0
      %1783 = vmatprep.mubr.bf16.mxu0 %v987
      %1784 = vmatmul.mubr.bf16.gmra.mrb[0].mxu0 %v971
      %v1785 = vpop.f32.mrb[0].mxu0
      %v1786 = vadd.f32 %v1577, %v1785
      %v1787 = vpop.f32.mrb[0].mxu0
      %v1788 = vpop.f32.mrb[0].mxu0
      %v1789 = vadd.f32 %v1580, %v1788
      %v1790 = vpop.f32.mrb[0].mxu0
      %1791 = vdwg.mxu0
      %1792 = vmatprep.subr.bf16.mxu0 0
      %1793 = vmatpush1.bf16.msra.mxu0 %v1695
      %1794 = vmatprep.subr.bf16.mxu0 0
      %1795 = vmatpush1.bf16.msra.mxu0 %v1696
      %1796 = vmatprep.subr.bf16.mxu0 0
      %1797 = vmatpush1.bf16.msra.mxu0 %v1697
      %1798 = vmatprep.subr.bf16.mxu0 0
      %1799 = vmatpush1.bf16.msra.mxu0 %v1698
      %1800 = vmatprep.subr.bf16.mxu0 0
      %1801 = vmatpush1.bf16.msra.mxu0 %v1699
      %1802 = vmatprep.subr.bf16.mxu0 0
      %1803 = vmatpush1.bf16.msra.mxu0 %v1700
      %1804 = vmatprep.subr.bf16.mxu0 0
      %1805 = vmatpush1.bf16.msra.mxu0 %v1701
      %1806 = vmatprep.subr.bf16.mxu0 0
      %1807 = vmatpush1.bf16.msra.mxu0 %v1702
      %1808 = vmatprep.subr.bf16.mxu0 0
      %1809 = vmatpush1.bf16.msra.mxu0 0
      %1810 = vmatprep.subr.bf16.mxu0 0
      %1811 = vmatpush1.bf16.msra.mxu0 0
      %1812 = vmatprep.subr.bf16.mxu0 0
      %1813 = vmatpush1.bf16.msra.mxu0 0
      %1814 = vmatprep.subr.bf16.mxu0 0
      %1815 = vmatpush1.bf16.msra.mxu0 0
      %1816 = vmatprep.subr.bf16.mxu0 0
      %1817 = vmatpush1.bf16.msra.mxu0 0
      %1818 = vmatprep.subr.bf16.mxu0 0
      %1819 = vmatpush1.bf16.msra.mxu0 0
      %1820 = vmatprep.subr.bf16.mxu0 0
      %1821 = vmatpush1.bf16.msra.mxu0 0
      %1822 = vmatprep.subr.bf16.mxu0 0
      %1823 = vmatpush1.bf16.msra.mxu0 0
      %1824 = vmatprep.mubr.bf16.mxu0 0
      %1825 = vmatmul.mubr.bf16.gmra.mrb[0].mxu0 %v1000
      %v1826 = vpop.f32.mrb[0].mxu0
      %v1827 = vadd.f32 %v1762, %v1826
      %v1828 = vpop.f32.mrb[0].mxu0
      %v1829 = vpop.f32.mrb[0].mxu0
      %v1830 = vadd.f32 %v1765, %v1829
      %v1831 = vpop.f32.mrb[0].mxu0
      %1832 = vmatprep.mubr.bf16.mxu0 0
      %1833 = vmatmul.mubr.bf16.gmra.mrb[0].mxu0 %v1001
      %v1834 = vpop.f32.mrb[0].mxu0
      %v1835 = vadd.f32 %v1770, %v1834
      %v1836 = vpop.f32.mrb[0].mxu0
      %v1837 = vpop.f32.mrb[0].mxu0
      %v1838 = vadd.f32 %v1773, %v1837
      %v1839 = vpop.f32.mrb[0].mxu0
      %1840 = vmatprep.mubr.bf16.mxu0 0
      %1841 = vmatmul.mubr.bf16.gmra.mrb[0].mxu0 %v1002
      %v1842 = vpop.f32.mrb[0].mxu0
      %v1843 = vadd.f32 %v1778, %v1842
      %v1844 = vpop.f32.mrb[0].mxu0
      %v1845 = vpop.f32.mrb[0].mxu0
      %v1846 = vadd.f32 %v1781, %v1845
      %v1847 = vpop.f32.mrb[0].mxu0
      %1848 = vmatprep.mubr.bf16.mxu0 0
      %1849 = vmatmul.mubr.bf16.gmra.mrb[0].mxu0 %v1003
      %v1850 = vpop.f32.mrb[0].mxu0
      %v1851 = vadd.f32 %v1786, %v1850
      %v1852 = vpop.f32.mrb[0].mxu0
      %v1853 = vpop.f32.mrb[0].mxu0
      %v1854 = vadd.f32 %v1789, %v1853
      %v1855 = vpop.f32.mrb[0].mxu0
      %1856 = vdwg.mxu0
      %s1857 = scalar_lea.vmem [#allocation2], 24
      %v1858 = vld [vmem:[%s1857] sm:$0xf]
      %v1859 = vld [vmem:[%s1857 + $0x4] sm:$0xf]
      %v1860 = vld [vmem:[%s1857 + $0xc] sm:$0xf]
      %v1861 = vld [vmem:[%s1857 + $0x10] sm:$0xf]
      %v1862 = vld [vmem:[%s1857 + $0x18] sm:$0xf]
      %v1863 = vld [vmem:[%s1857 + $0x1c] sm:$0xf]
      %v1864 = vld [vmem:[%s1857 + $0x24] sm:$0xf]
      %v1865 = vld [vmem:[%s1857 + $0x28] sm:$0xf]
      %v1866 = vld [vmem:[%s1857 + $0x8] sm:$0x1]
      %v1867 = vld [vmem:[%s1857 + $0x14] sm:$0x1]
      %v1868 = vld [vmem:[%s1857 + $0x20] sm:$0x1]
      %v1869 = vld [vmem:[%s1857 + $0x2c] sm:$0x1]
      %v1871 = vshrl.u32 %v1858, 16
      %v1873 = vrot.slane %v1871, 4
      %v1874 = vshll.u32 %v1858, 16
      %v1876 = vrot.slane %v1874, 5
      %v1877 = vor.u32 %v1873, %v1876
      %v1878 = vrot.slane %v1877, 4
      %v1880 = vshll.u32 %v1859, 16
      %v1882 = vrot.slane %v1880, 5
      %v1883 = vsel %vm812, %v1878, %v1882
      %v1884 = vshrl.u32 %v1859, 16
      %v1886 = vrot.slane %v1884, 4
      %v1887 = vor.u32 %v1886, %v1882
      %v1888 = vrot.slane %v1887, 4
      %v1890 = vshll.u32 %v1866, 16
      %v1892 = vrot.slane %v1890, 5
      %v1893 = vsel %vm812, %v1888, %v1892
      %v1895 = vshrl.u32 %v1860, 16
      %v1897 = vrot.slane %v1895, 4
      %v1898 = vshll.u32 %v1860, 16
      %v1900 = vrot.slane %v1898, 5
      %v1901 = vor.u32 %v1897, %v1900
      %v1902 = vrot.slane %v1901, 4
      %v1904 = vshll.u32 %v1861, 16
      %v1906 = vrot.slane %v1904, 5
      %v1907 = vsel %vm812, %v1902, %v1906
      %v1908 = vshrl.u32 %v1861, 16
      %v1910 = vrot.slane %v1908, 4
      %v1911 = vor.u32 %v1910, %v1906
      %v1912 = vrot.slane %v1911, 4
      %v1914 = vshll.u32 %v1867, 16
      %v1916 = vrot.slane %v1914, 5
      %v1917 = vsel %vm812, %v1912, %v1916
      %v1919 = vshrl.u32 %v1862, 16
      %v1921 = vrot.slane %v1919, 4
      %v1922 = vshll.u32 %v1862, 16
      %v1924 = vrot.slane %v1922, 5
      %v1925 = vor.u32 %v1921, %v1924
      %v1926 = vrot.slane %v1925, 4
      %v1928 = vshll.u32 %v1863, 16
      %v1930 = vrot.slane %v1928, 5
      %v1931 = vsel %vm812, %v1926, %v1930
      %v1932 = vshrl.u32 %v1863, 16
      %v1934 = vrot.slane %v1932, 4
      %v1935 = vor.u32 %v1934, %v1930
      %v1936 = vrot.slane %v1935, 4
      %v1938 = vshll.u32 %v1868, 16
      %v1940 = vrot.slane %v1938, 5
      %v1941 = vsel %vm812, %v1936, %v1940
      %v1943 = vshrl.u32 %v1864, 16
      %v1945 = vrot.slane %v1943, 4
      %v1946 = vshll.u32 %v1864, 16
      %v1948 = vrot.slane %v1946, 5
      %v1949 = vor.u32 %v1945, %v1948
      %v1950 = vrot.slane %v1949, 4
      %v1952 = vshll.u32 %v1865, 16
      %v1954 = vrot.slane %v1952, 5
      %v1955 = vsel %vm812, %v1950, %v1954
      %v1956 = vshrl.u32 %v1865, 16
      %v1958 = vrot.slane %v1956, 4
      %v1959 = vor.u32 %v1958, %v1954
      %v1960 = vrot.slane %v1959, 4
      %v1962 = vshll.u32 %v1869, 16
      %v1964 = vrot.slane %v1962, 5
      %v1965 = vsel %vm812, %v1960, %v1964
      %v1966 = vld [vmem:[%s1857] sm:$0xe]
      %v1967 = vld [vmem:[%s1857 + $0xc] sm:$0xe]
      %v1968 = vld [vmem:[%s1857 + $0x18] sm:$0xe]
      %v1969 = vld [vmem:[%s1857 + $0x24] sm:$0xe]
      %v1982 = vrot.slane %v1966, 5
      %v1983 = vrot.slane %v1982, 4
      %v1984 = vrot.slane %v1859, 5
      %v1985 = vsel %vm927, %v1983, %v1984
      %v1986 = vrot.slane %v1984, 4
      %v1987 = vrot.slane %v1866, 5
      %v1988 = vsel %vm927, %v1986, %v1987
      %v1989 = vrot.slane %v1967, 5
      %v1990 = vrot.slane %v1989, 4
      %v1991 = vrot.slane %v1861, 5
      %v1992 = vsel %vm927, %v1990, %v1991
      %v1993 = vrot.slane %v1991, 4
      %v1994 = vrot.slane %v1867, 5
      %v1995 = vsel %vm927, %v1993, %v1994
      %v1996 = vrot.slane %v1968, 5
      %v1997 = vrot.slane %v1996, 4
      %v1998 = vrot.slane %v1863, 5
      %v1999 = vsel %vm927, %v1997, %v1998
      %v2000 = vrot.slane %v1998, 4
      %v2001 = vrot.slane %v1868, 5
      %v2002 = vsel %vm927, %v2000, %v2001
      %v2003 = vrot.slane %v1969, 5
      %v2004 = vrot.slane %v2003, 4
      %v2005 = vrot.slane %v1865, 5
      %v2006 = vsel %vm927, %v2004, %v2005
      %v2007 = vrot.slane %v2005, 4
      %v2008 = vrot.slane %v1869, 5
      %v2009 = vsel %vm927, %v2007, %v2008
      %v2014 = vunpack.c.l.b16 %v1858
      %v2015 = vunpack.c.l.b16 %v1859
      %v2016 = vunpack.c.l.b16 %v1860
      %v2017 = vunpack.c.l.b16 %v1861
      %v2018 = vunpack.c.l.b16 %v1862
      %v2019 = vunpack.c.l.b16 %v1863
      %v2020 = vunpack.c.l.b16 %v1864
      %v2021 = vunpack.c.l.b16 %v1865
      %v2022 = vpack.c.b16 %v2015, %v2014
      %v2023 = vpack.c.b16 %v2017, %v2016
      %v2024 = vpack.c.b16 %v2019, %v2018
      %v2025 = vpack.c.b16 %v2021, %v2020
      %v2030 = vunpack.c.l.b16 %v1883
      %v2031 = vunpack.c.l.b16 %v1893
      %v2032 = vunpack.c.l.b16 %v1907
      %v2033 = vunpack.c.l.b16 %v1917
      %v2034 = vunpack.c.l.b16 %v1931
      %v2035 = vunpack.c.l.b16 %v1941
      %v2036 = vunpack.c.l.b16 %v1955
      %v2037 = vunpack.c.l.b16 %v1965
      %v2038 = vpack.c.b16 %v2031, %v2030
      %v2039 = vpack.c.b16 %v2033, %v2032
      %v2040 = vpack.c.b16 %v2035, %v2034
      %v2041 = vpack.c.b16 %v2037, %v2036
      %v2046 = vunpack.c.l.b16 %v1985
      %v2047 = vunpack.c.l.b16 %v1988
      %v2048 = vunpack.c.l.b16 %v1992
      %v2049 = vunpack.c.l.b16 %v1995
      %v2050 = vunpack.c.l.b16 %v1999
      %v2051 = vunpack.c.l.b16 %v2002
      %v2052 = vunpack.c.l.b16 %v2006
      %v2053 = vunpack.c.l.b16 %v2009
      %v2054 = vpack.c.b16 %v2047, %v2046
      %v2055 = vpack.c.b16 %v2049, %v2048
      %v2056 = vpack.c.b16 %v2051, %v2050
      %v2057 = vpack.c.b16 %v2053, %v2052
      %s2062 = scalar_lea.vmem %s3, 384
      %v2063 = vld [vmem:[%s2062] sm:$0xf]
      %v2064 = vld [vmem:[%s2062 + $0x4] sm:$0xf]
      %v2065 = vld [vmem:[%s2062 + $0x8] sm:$0xf]
      %v2066 = vld [vmem:[%s2062 + $0xc] sm:$0xf]
      %v2067 = vld [vmem:[%s2062 + $0x10] sm:$0xf]
      %v2068 = vld [vmem:[%s2062 + $0x14] sm:$0xf]
      %v2069 = vld [vmem:[%s2062 + $0x18] sm:$0xf]
      %v2070 = vld [vmem:[%s2062 + $0x1c] sm:$0xf]
      %v2071 = vld [vmem:[%s2062 + $0x20] sm:$0xf]
      %v2072 = vld [vmem:[%s2062 + $0x24] sm:$0xf]
      %v2073 = vld [vmem:[%s2062 + $0x28] sm:$0xf]
      %v2074 = vld [vmem:[%s2062 + $0x2c] sm:$0xf]
      %v2075 = vld [vmem:[%s2062 + $0x30] sm:$0xf]
      %v2076 = vld [vmem:[%s2062 + $0x34] sm:$0xf]
      %v2077 = vld [vmem:[%s2062 + $0x38] sm:$0xf]
      %v2078 = vld [vmem:[%s2062 + $0x3c] sm:$0xf]
      %v2079 = vld [vmem:[%s2062 + $0x40] sm:$0xf]
      %v2080 = vld [vmem:[%s2062 + $0x44] sm:$0xf]
      %v2081 = vld [vmem:[%s2062 + $0x48] sm:$0xf]
      %v2082 = vld [vmem:[%s2062 + $0x4c] sm:$0xf]
      %v2083 = vld [vmem:[%s2062 + $0x50] sm:$0xf]
      %v2084 = vld [vmem:[%s2062 + $0x54] sm:$0xf]
      %v2085 = vld [vmem:[%s2062 + $0x58] sm:$0xf]
      %v2086 = vld [vmem:[%s2062 + $0x5c] sm:$0xf]
      %v2087 = vld [vmem:[%s2062 + $0x60] sm:$0xf]
      %v2088 = vld [vmem:[%s2062 + $0x64] sm:$0xf]
      %v2089 = vld [vmem:[%s2062 + $0x68] sm:$0xf]
      %v2090 = vld [vmem:[%s2062 + $0x6c] sm:$0xf]
      %v2091 = vld [vmem:[%s2062 + $0x70] sm:$0xf]
      %v2092 = vld [vmem:[%s2062 + $0x74] sm:$0xf]
      %v2093 = vld [vmem:[%s2062 + $0x78] sm:$0xf]
      %v2094 = vld [vmem:[%s2062 + $0x7c] sm:$0xf]
      %v2095 = vld [vmem:[%s2062 + $0x80] sm:$0xf]
      %v2096 = vld [vmem:[%s2062 + $0x84] sm:$0xf]
      %v2097 = vld [vmem:[%s2062 + $0x88] sm:$0xf]
      %v2098 = vld [vmem:[%s2062 + $0x8c] sm:$0xf]
      %v2099 = vld [vmem:[%s2062 + $0x90] sm:$0xf]
      %v2100 = vld [vmem:[%s2062 + $0x94] sm:$0xf]
      %v2101 = vld [vmem:[%s2062 + $0x98] sm:$0xf]
      %v2102 = vld [vmem:[%s2062 + $0x9c] sm:$0xf]
      %v2103 = vld [vmem:[%s2062 + $0xa0] sm:$0xf]
      %v2104 = vld [vmem:[%s2062 + $0xa4] sm:$0xf]
      %v2105 = vld [vmem:[%s2062 + $0xa8] sm:$0xf]
      %v2106 = vld [vmem:[%s2062 + $0xac] sm:$0xf]
      %v2107 = vld [vmem:[%s2062 + $0xb0] sm:$0xf]
      %v2108 = vld [vmem:[%s2062 + $0xb4] sm:$0xf]
      %v2109 = vld [vmem:[%s2062 + $0xb8] sm:$0xf]
      %v2110 = vld [vmem:[%s2062 + $0xbc] sm:$0xf]
      %v2159 = vunpack.c.l.b16 %v2063
      %v2160 = vunpack.c.l.b16 %v2064
      %v2161 = vunpack.c.l.b16 %v2065
      %v2162 = vunpack.c.l.b16 %v2066
      %v2163 = vunpack.c.l.b16 %v2067
      %v2164 = vunpack.c.l.b16 %v2068
      %v2165 = vunpack.c.l.b16 %v2069
      %v2166 = vunpack.c.l.b16 %v2070
      %v2167 = vunpack.c.l.b16 %v2071
      %v2168 = vunpack.c.l.b16 %v2072
      %v2169 = vunpack.c.l.b16 %v2073
      %v2170 = vunpack.c.l.b16 %v2074
      %v2171 = vunpack.c.l.b16 %v2075
      %v2172 = vunpack.c.l.b16 %v2076
      %v2173 = vunpack.c.l.b16 %v2077
      %v2174 = vunpack.c.l.b16 %v2078
      %v2175 = vunpack.c.l.b16 %v2079
      %v2176 = vunpack.c.l.b16 %v2080
      %v2177 = vunpack.c.l.b16 %v2081
      %v2178 = vunpack.c.l.b16 %v2082
      %v2179 = vunpack.c.l.b16 %v2083
      %v2180 = vunpack.c.l.b16 %v2084
      %v2181 = vunpack.c.l.b16 %v2085
      %v2182 = vunpack.c.l.b16 %v2086
      %v2183 = vunpack.c.l.b16 %v2087
      %v2184 = vunpack.c.l.b16 %v2088
      %v2185 = vunpack.c.l.b16 %v2089
      %v2186 = vunpack.c.l.b16 %v2090
      %v2187 = vunpack.c.l.b16 %v2091
      %v2188 = vunpack.c.l.b16 %v2092
      %v2189 = vunpack.c.l.b16 %v2093
      %v2190 = vunpack.c.l.b16 %v2094
      %v2191 = vunpack.c.l.b16 %v2095
      %v2192 = vunpack.c.l.b16 %v2096
      %v2193 = vunpack.c.l.b16 %v2097
      %v2194 = vunpack.c.l.b16 %v2098
      %v2195 = vunpack.c.l.b16 %v2099
      %v2196 = vunpack.c.l.b16 %v2100
      %v2197 = vunpack.c.l.b16 %v2101
      %v2198 = vunpack.c.l.b16 %v2102
      %v2199 = vunpack.c.l.b16 %v2103
      %v2200 = vunpack.c.l.b16 %v2104
      %v2201 = vunpack.c.l.b16 %v2105
      %v2202 = vunpack.c.l.b16 %v2106
      %v2203 = vunpack.c.l.b16 %v2107
      %v2204 = vunpack.c.l.b16 %v2108
      %v2205 = vunpack.c.l.b16 %v2109
      %v2206 = vunpack.c.l.b16 %v2110
      %v2207 = vpack.c.b16 %v2160, %v2159
      %v2208 = vpack.c.b16 %v2162, %v2161
      %v2209 = vpack.c.b16 %v2164, %v2163
      %v2210 = vpack.c.b16 %v2166, %v2165
      %v2211 = vpack.c.b16 %v2168, %v2167
      %v2212 = vpack.c.b16 %v2170, %v2169
      %v2213 = vpack.c.b16 %v2172, %v2171
      %v2214 = vpack.c.b16 %v2174, %v2173
      %v2215 = vpack.c.b16 %v2176, %v2175
      %v2216 = vpack.c.b16 %v2178, %v2177
      %v2217 = vpack.c.b16 %v2180, %v2179
      %v2218 = vpack.c.b16 %v2182, %v2181
      %v2219 = vpack.c.b16 %v2184, %v2183
      %v2220 = vpack.c.b16 %v2186, %v2185
      %v2221 = vpack.c.b16 %v2188, %v2187
      %v2222 = vpack.c.b16 %v2190, %v2189
      %v2223 = vpack.c.b16 %v2192, %v2191
      %v2224 = vpack.c.b16 %v2194, %v2193
      %v2225 = vpack.c.b16 %v2196, %v2195
      %v2226 = vpack.c.b16 %v2198, %v2197
      %v2227 = vpack.c.b16 %v2200, %v2199
      %v2228 = vpack.c.b16 %v2202, %v2201
      %v2229 = vpack.c.b16 %v2204, %v2203
      %v2230 = vpack.c.b16 %v2206, %v2205
      %2255 = vmatprep.subr.bf16.mxu0 0
      %2256 = vmatpush1.bf16.msra.mxu0 %v2207
      %2257 = vmatprep.subr.bf16.mxu0 0
      %2258 = vmatpush1.bf16.msra.mxu0 %v2208
      %2259 = vmatprep.subr.bf16.mxu0 0
      %2260 = vmatpush1.bf16.msra.mxu0 %v2209
      %2261 = vmatprep.subr.bf16.mxu0 0
      %2262 = vmatpush1.bf16.msra.mxu0 %v2210
      %2263 = vmatprep.subr.bf16.mxu0 0
      %2264 = vmatpush1.bf16.msra.mxu0 %v2211
      %2265 = vmatprep.subr.bf16.mxu0 0
      %2266 = vmatpush1.bf16.msra.mxu0 %v2212
      %2267 = vmatprep.subr.bf16.mxu0 0
      %2268 = vmatpush1.bf16.msra.mxu0 %v2213
      %2269 = vmatprep.subr.bf16.mxu0 0
      %2270 = vmatpush1.bf16.msra.mxu0 %v2214
      %2271 = vmatprep.subr.bf16.mxu0 0
      %2272 = vmatpush1.bf16.msra.mxu0 %v2215
      %2273 = vmatprep.subr.bf16.mxu0 0
      %2274 = vmatpush1.bf16.msra.mxu0 %v2216
      %2275 = vmatprep.subr.bf16.mxu0 0
      %2276 = vmatpush1.bf16.msra.mxu0 %v2217
      %2277 = vmatprep.subr.bf16.mxu0 0
      %2278 = vmatpush1.bf16.msra.mxu0 %v2218
      %2279 = vmatprep.subr.bf16.mxu0 0
      %2280 = vmatpush1.bf16.msra.mxu0 %v2219
      %2281 = vmatprep.subr.bf16.mxu0 0
      %2282 = vmatpush1.bf16.msra.mxu0 %v2220
      %2283 = vmatprep.subr.bf16.mxu0 0
      %2284 = vmatpush1.bf16.msra.mxu0 %v2221
      %2285 = vmatprep.subr.bf16.mxu0 0
      %2286 = vmatpush1.bf16.msra.mxu0 %v2222
      %2287 = vmatprep.mubr.bf16.mxu0 %v2038
      %2288 = vmatmul.mubr.bf16.gmra.mrb[0].mxu0 %v2022
      %v2289 = vpop.f32.mrb[0].mxu0
      %v2290 = vadd.f32 0.0, %v2289
      %v2291 = vpop.f32.mrb[0].mxu0
      %v2292 = vpop.f32.mrb[0].mxu0
      %v2293 = vadd.f32 0.0, %v2292
      %v2294 = vpop.f32.mrb[0].mxu0
      %2295 = vmatprep.mubr.bf16.mxu0 %v2039
      %2296 = vmatmul.mubr.bf16.gmra.mrb[0].mxu0 %v2023
      %v2297 = vpop.f32.mrb[0].mxu0
      %v2298 = vadd.f32 0.0, %v2297
      %v2299 = vpop.f32.mrb[0].mxu0
      %v2300 = vpop.f32.mrb[0].mxu0
      %v2301 = vadd.f32 0.0, %v2300
      %v2302 = vpop.f32.mrb[0].mxu0
      %2303 = vmatprep.mubr.bf16.mxu0 %v2040
      %2304 = vmatmul.mubr.bf16.gmra.mrb[0].mxu0 %v2024
      %v2305 = vpop.f32.mrb[0].mxu0
      %v2306 = vadd.f32 0.0, %v2305
      %v2307 = vpop.f32.mrb[0].mxu0
      %v2308 = vpop.f32.mrb[0].mxu0
      %v2309 = vadd.f32 0.0, %v2308
      %v2310 = vpop.f32.mrb[0].mxu0
      %2311 = vmatprep.mubr.bf16.mxu0 %v2041
      %2312 = vmatmul.mubr.bf16.gmra.mrb[0].mxu0 %v2025
      %v2313 = vpop.f32.mrb[0].mxu0
      %v2314 = vadd.f32 0.0, %v2313
      %v2315 = vpop.f32.mrb[0].mxu0
      %v2316 = vpop.f32.mrb[0].mxu0
      %v2317 = vadd.f32 0.0, %v2316
      %v2318 = vpop.f32.mrb[0].mxu0
      %2319 = vdwg.mxu0
      %2320 = vmatprep.subr.bf16.mxu0 0
      %2321 = vmatpush1.bf16.msra.mxu0 %v2223
      %2322 = vmatprep.subr.bf16.mxu0 0
      %2323 = vmatpush1.bf16.msra.mxu0 %v2224
      %2324 = vmatprep.subr.bf16.mxu0 0
      %2325 = vmatpush1.bf16.msra.mxu0 %v2225
      %2326 = vmatprep.subr.bf16.mxu0 0
      %2327 = vmatpush1.bf16.msra.mxu0 %v2226
      %2328 = vmatprep.subr.bf16.mxu0 0
      %2329 = vmatpush1.bf16.msra.mxu0 %v2227
      %2330 = vmatprep.subr.bf16.mxu0 0
      %2331 = vmatpush1.bf16.msra.mxu0 %v2228
      %2332 = vmatprep.subr.bf16.mxu0 0
      %2333 = vmatpush1.bf16.msra.mxu0 %v2229
      %2334 = vmatprep.subr.bf16.mxu0 0
      %2335 = vmatpush1.bf16.msra.mxu0 %v2230
      %2336 = vmatprep.subr.bf16.mxu0 0
      %2337 = vmatpush1.bf16.msra.mxu0 0
      %2338 = vmatprep.subr.bf16.mxu0 0
      %2339 = vmatpush1.bf16.msra.mxu0 0
      %2340 = vmatprep.subr.bf16.mxu0 0
      %2341 = vmatpush1.bf16.msra.mxu0 0
      %2342 = vmatprep.subr.bf16.mxu0 0
      %2343 = vmatpush1.bf16.msra.mxu0 0
      %2344 = vmatprep.subr.bf16.mxu0 0
      %2345 = vmatpush1.bf16.msra.mxu0 0
      %2346 = vmatprep.subr.bf16.mxu0 0
      %2347 = vmatpush1.bf16.msra.mxu0 0
      %2348 = vmatprep.subr.bf16.mxu0 0
      %2349 = vmatpush1.bf16.msra.mxu0 0
      %2350 = vmatprep.subr.bf16.mxu0 0
      %2351 = vmatpush1.bf16.msra.mxu0 0
      %2352 = vmatprep.mubr.bf16.mxu0 0
      %2353 = vmatmul.mubr.bf16.gmra.mrb[0].mxu0 %v2054
      %v2354 = vpop.f32.mrb[0].mxu0
      %v2355 = vadd.f32 %v2290, %v2354
      %v2356 = vpop.f32.mrb[0].mxu0
      %v2357 = vpop.f32.mrb[0].mxu0
      %v2358 = vadd.f32 %v2293, %v2357
      %v2359 = vpop.f32.mrb[0].mxu0
      %2360 = vmatprep.mubr.bf16.mxu0 0
      %2361 = vmatmul.mubr.bf16.gmra.mrb[0].mxu0 %v2055
      %v2362 = vpop.f32.mrb[0].mxu0
      %v2363 = vadd.f32 %v2298, %v2362
      %v2364 = vpop.f32.mrb[0].mxu0
      %v2365 = vpop.f32.mrb[0].mxu0
      %v2366 = vadd.f32 %v2301, %v2365
      %v2367 = vpop.f32.mrb[0].mxu0
      %2368 = vmatprep.mubr.bf16.mxu0 0
      %2369 = vmatmul.mubr.bf16.gmra.mrb[0].mxu0 %v2056
      %v2370 = vpop.f32.mrb[0].mxu0
      %v2371 = vadd.f32 %v2306, %v2370
      %v2372 = vpop.f32.mrb[0].mxu0
      %v2373 = vpop.f32.mrb[0].mxu0
      %v2374 = vadd.f32 %v2309, %v2373
      %v2375 = vpop.f32.mrb[0].mxu0
      %2376 = vmatprep.mubr.bf16.mxu0 0
      %2377 = vmatmul.mubr.bf16.gmra.mrb[0].mxu0 %v2057
      %v2378 = vpop.f32.mrb[0].mxu0
      %v2379 = vadd.f32 %v2314, %v2378
      %v2380 = vpop.f32.mrb[0].mxu0
      %v2381 = vpop.f32.mrb[0].mxu0
      %v2382 = vadd.f32 %v2317, %v2381
      %v2383 = vpop.f32.mrb[0].mxu0
      %2384 = vdwg.mxu0
      %v2385 = vadd.f32 %v1827, %v2355
      %v2386 = vadd.f32 %v1830, %v2358
      %v2387 = vadd.f32 %v1835, %v2363
      %v2388 = vadd.f32 %v1838, %v2366
      %v2389 = vadd.f32 %v1843, %v2371
      %v2390 = vadd.f32 %v1846, %v2374
      %v2391 = vadd.f32 %v1851, %v2379
      %v2392 = vadd.f32 %v1854, %v2382
      %v2393 = vadd.f32 %v2385, %v2386
      %v2394 = vadd.f32 %v2393, %v2387
      %v2395 = vadd.f32 %v2394, %v2388
      %v2396 = vadd.f32 %v2395, %v2389
      %v2397 = vadd.f32 %v2396, %v2390
      %v2398 = vadd.f32 %v2397, %v2391
      %v2399 = vadd.f32 %v2398, %v2392
      %v2400 = vrot.slane %v2399, 4
      %v2401 = vadd.f32 %v2399, %v2400
      %v2402 = vrot.slane %v2401, 2
      %v2403 = vadd.f32 %v2401, %v2402
      %v2404 = vrot.slane %v2403, 1
      %v2405 = vadd.f32 %v2403, %v2404
      %2406 = vst [vmem:[%s467] sm:$0x1] %v2405
      %v2407 = vmul.f32 %v2385, %v2385
      %v2408 = vmul.f32 %v2386, %v2386
      %v2409 = vmul.f32 %v2387, %v2387
      %v2410 = vmul.f32 %v2388, %v2388
      %v2411 = vmul.f32 %v2389, %v2389
      %v2412 = vmul.f32 %v2390, %v2390
      %v2413 = vmul.f32 %v2391, %v2391
      %v2414 = vmul.f32 %v2392, %v2392
      %v2415 = vadd.f32 %v2407, %v2408
      %v2416 = vadd.f32 %v2415, %v2409
      %v2417 = vadd.f32 %v2416, %v2410
      %v2418 = vadd.f32 %v2417, %v2411
      %v2419 = vadd.f32 %v2418, %v2412
      %v2420 = vadd.f32 %v2419, %v2413
      %v2421 = vadd.f32 %v2420, %v2414
      %v2422 = vrot.slane %v2421, 4
      %v2423 = vadd.f32 %v2421, %v2422
      %v2424 = vrot.slane %v2423, 2
      %v2425 = vadd.f32 %v2423, %v2424
      %v2426 = vrot.slane %v2425, 1
      %v2427 = vadd.f32 %v2425, %v2426
      %2428 = vst [vmem:[%s467 + $0x1] sm:$0x1] %v2427
      %2429 = vst [vmem:[%s458] sm:$0xff] %v2385
      %2430 = vst [vmem:[%s458 + $0x8] sm:$0xff] %v2386
      %2431 = vst [vmem:[%s458 + $0x10] sm:$0xff] %v2387
      %2432 = vst [vmem:[%s458 + $0x18] sm:$0xff] %v2388
      %2433 = vst [vmem:[%s458 + $0x20] sm:$0xff] %v2389
      %2434 = vst [vmem:[%s458 + $0x28] sm:$0xff] %v2390
      %2435 = vst [vmem:[%s458 + $0x30] sm:$0xff] %v2391
      %2436 = vst [vmem:[%s458 + $0x38] sm:$0xff] %v2392
      %s2437 = smul.u32 4, %s24
      %p2438 = scmp.lt.s32.totalorder %s23, 1
      %s2439 = scalar_select %p2438, %s23, 1
      %p2440 = scmp.lt.s32.totalorder %s2437, 15
      %s2441 = scalar_select %p2440, %s2437, 15
      %s2442 = smul.addr %s2441, 2
      %s2443 = smul.addr %s2439, 32
      %s2444 = sadd.s32 %s2442, %s2443
      %s2445 = smul.addr %s2444, 8
      %s2446 = scalar_lea.vmem %s6, %s2445
      %p2447 = scmp.lt.s32.totalorder %s23, 1
      %s2448 = scalar_select %p2447, %s23, 1
      %p2449 = scmp.lt.s32.totalorder %s24, 3
      %s2450 = scalar_select %p2449, %s24, 3
      %s2451 = smul.addr %s2448, 4
      %s2452 = sadd.s32 %s2450, %s2451
      %s2453 = smul.addr %s2452, 2
      %s2454 = scalar_lea.vmem %s7, %s2453
      // Predicated region
      $region45: #{double_conv.4} parent=43 // pred_check
        %p2455 = pneg %p214
      $region46: #{double_conv.4} parent=43 // pred_check_branch
        %2457 = sbr.rel (%p2455) target = $region48
      $region47: #{double_conv.4} parent=43 // pred_region
        %s2458 = smul.u32 4, %s24
      $region48: #{double_conv.4} parent=43 // pred_fallthru
        _
      // Predicated region
      $region49: #{double_conv.4} parent=43 // pred_check
        %p2459 = pneg %p242
      $region50: #{double_conv.4} parent=43 // pred_check_branch
        %2461 = sbr.rel (%p2459) target = $region52
      $region51: #{double_conv.4} parent=43 // pred_region
        _
      $region52: #{double_conv.4} parent=43 // pred_fallthru
        _
    $region44: #{double_conv.4} parent=5 // pred_fallthru
      _
    %p2462 = scmp.le.s32.totalorder 2, %s14
    // Predicated region
    $region53: #{double_conv.4} parent=5 // pred_check
      %p2463 = pneg %p2462
    $region54: #{double_conv.4} parent=5 // pred_check_branch
      %2465 = sbr.rel (%p2463) target = $region56
    $region55: #{double_conv.4} parent=5 // pred_region
      %s2466 = ssub.s32 %s14, 2
      // Predicated region
      $region57: #{double_conv.4} parent=55 // pred_check
        %p2467 = pneg %p220
      $region58: #{double_conv.4} parent=55 // pred_check_branch
        %2469 = sbr.rel (%p2467) target = $region60
      $region59: #{double_conv.4} parent=55 // pred_region
        %s2470 = smul.u32 4, %s26
        %p2471 = scmp.lt.s32.totalorder %s25, 1
        %s2472 = scalar_select %p2471, %s25, 1
        %p2473 = scmp.lt.s32.totalorder %s2470, 15
        %s2474 = scalar_select %p2473, %s2470, 15
        %s2475 = smul.addr %s2474, 2
        %s2476 = smul.addr %s2472, 32
        %s2477 = sadd.s32 %s2475, %s2476
        %s2478 = smul.addr %s2477, 8
        %s2479 = scalar_lea.vmem %s6, %s2478
      $region60: #{double_conv.4} parent=55 // pred_fallthru
        _
      // Predicated region
      $region61: #{double_conv.4} parent=55 // pred_check
        %p2480 = pneg %p248
      $region62: #{double_conv.4} parent=55 // pred_check_branch
        %2482 = sbr.rel (%p2480) target = $region64
      $region63: #{double_conv.4} parent=55 // pred_region
        %p2483 = scmp.lt.s32.totalorder %s25, 1
        %s2484 = scalar_select %p2483, %s25, 1
        %p2485 = scmp.lt.s32.totalorder %s26, 3
        %s2486 = scalar_select %p2485, %s26, 3
        %s2487 = smul.addr %s2484, 4
        %s2488 = sadd.s32 %s2486, %s2487
        %s2489 = smul.addr %s2488, 2
        %s2490 = scalar_lea.vmem %s7, %s2489
      $region64: #{double_conv.4} parent=55 // pred_fallthru
        _
    $region56: #{double_conv.4} parent=5 // pred_fallthru
      _
  $region6: #{double_conv.4} parent=0 // loop_footer
    %s18 = sadd.s32 1, %s14
  $region7: #{double_conv.4} parent=0 // loop_footer_branch
    %13 = sbr.rel target = $region3
  $region8: #{double_conv.4} parent=0 // loop_exit
    _

</llo_original>
